<compile_context>
chip_gen: v6e
topology: v6e:2x2x1
jax: 0.10.0
libtpu: 0.0.40
codegen_flags: <defaults>
</compile_context>

<pallas_src>
import jax
import jax.numpy as jnp
from jax.experimental import pallas as pl
from jax.experimental.pallas import tpu as pltpu


def _geometry(H, W, patch_size, overlap):
    # mirrors SlidingWindow.__init__ / forward geometry (0 < overlap < 0.5)
    assert 0.0 < overlap < 0.5, "forward() as written requires 0 < overlap < 0.5"
    stride = int((1.0 - overlap) * patch_size)
    Hp = H + (patch_size - H % stride)            # pshape formula from forward()
    Wp = W + (patch_size - W % stride)
    n_ph = (Hp - patch_size) // stride + 1
    n_pw = (Wp - patch_size) // stride + 1
    return stride, Hp, Wp, n_ph, n_pw


def _round_up(x, m):
    return ((x + m - 1) // m) * m


def _make_kernel(CIN, COUT):
    def kernel(x_ref, w_ref, b_ref, gh_ref, mw_ref, mwt_ref, scale_ref, o_ref):
        # x_ref     : (CIN, HPAD, WPAD)  VMEM   one batch element
        # w_ref     : (CIN, COUT)        SMEM   conv1x1 weights (scalar reads)
        # b_ref     : (COUT,)            SMEM   bias
        # gh_ref    : (HPAD, HPAD)       VMEM   Gh = Mh @ Mh^T  (patch-row coverage gram)
        # mw_ref    : (WPAD, NPWP)       VMEM   0/1 patch-column coverage matrix
        # mwt_ref   : (NPWP, WPAD)       VMEM   its transpose
        # scale_ref : (HPAD, WPAD)       VMEM   1 / (hit_count * P*P), 0 off-coverage
        # o_ref     : (COUT, HPAD, WPAD) VMEM
        xs = [x_ref[ci] for ci in range(CIN)]          # major-dim slices, hoisted
        gh = gh_ref[...]
        mw = mw_ref[...]
        mwt = mwt_ref[...]
        scale = scale_ref[...]

        for co in range(COUT):
            # ---- pointwise model part: z = relu(conv1x1(x) + b), computed once/voxel
            a = xs[0] * w_ref[0, co]
            for ci in range(1, CIN):
                a = a + xs[ci] * w_ref[ci, co]
            z = jnp.maximum(a + b_ref[co], 0.0)                           # (HPAD, WPAD)

            # ---- per-row sums over every patch-column window (lane contraction, MXU)
            t = jnp.dot(z, mw, preferred_element_type=jnp.float32)        # (HPAD, NPWP)
            # ---- box-sum along H and spread back over covering rows in one gram matmul
            u = jnp.dot(gh, t, preferred_element_type=jnp.float32)        # (HPAD, NPWP)
            # ---- spread over covering patch-columns (MXU) and apply fold-mean corr.
            corr = jnp.dot(u, mwt, preferred_element_type=jnp.float32)    # (HPAD, WPAD)
            o_ref[co] = z - corr * scale

    return kernel


def sliding_window(x, w, b, *, patch_size=8, overlap=0.25):
    """x: (B, Cin, H, W) float32; w: (Cin, Cout); b: (Cout,). Returns (B, Cout, H, W)."""
    B, Cin, H, W = x.shape
    Cout = w.shape[1]
    P = patch_size
    S, Hp, Wp, n_ph, n_pw = _geometry(H, W, patch_size, overlap)
    Hpad = _round_up(Hp, 8)          # sublane-aligned
    Wpad = _round_up(Wp, 128)        # lane-dense rows / unmasked stores
    npwp = _round_up(n_pw, 8)        # pad the tiny patch-column axis

    # TODO(synk): nitorch.core.utils.ensure_shape pad/crop side assumed 'post' (trailing).
    x_pad = jnp.pad(x.astype(jnp.float32),
                    ((0, 0), (0, 0), (0, Hpad - H), (0, Wpad - W)))

    # static 0/1 patch coverage along W (padded columns pj >= n_pw are dead/zero)
    wi = jnp.arange(Wpad)[:, None]
    pj = jnp.arange(npwp)[None, :]
    mw = ((wi >= pj * S) & (wi < pj * S + P) & (pj < n_pw)).astype(jnp.float32)

    # static 0/1 patch coverage along H and its gram Gh = Mh Mh^T: (Gh z)(h,:) sums z
    # over every patch-row covering h and over that patch-row's P source rows.
    hi = jnp.arange(Hpad)[:, None]
    pi = jnp.arange(n_ph)[None, :]
    mh = ((hi >= pi * S) & (hi < pi * S + P)).astype(jnp.float32)         # (Hpad, n_ph)
    gh = mh @ mh.T                                                        # (Hpad, Hpad)

    # static hit-count map (pure geometry) -> reciprocal, fused with the 1/P^2 of the mean
    cnt = mh.sum(1)[:, None] * mw.sum(1)[None, :]                         # (Hpad, Wpad)
    scale = jnp.where(cnt > 0, 1.0 / (cnt * (P * P)), 0.0).astype(jnp.float32)

    kernel = _make_kernel(Cin, Cout)

    out_pad = pl.pallas_call(
        kernel,
        out_shape=jax.ShapeDtypeStruct((B, Cout, Hpad, Wpad), jnp.float32),
        grid=(B,),
        in_specs=[
            pl.BlockSpec((None, Cin, Hpad, Wpad), lambda i: (i, 0, 0, 0)),  # x (one sample)
            pl.BlockSpec(memory_space=pltpu.MemorySpace.SMEM),              # conv weights
            pl.BlockSpec(memory_space=pltpu.MemorySpace.SMEM),              # bias
            pl.BlockSpec((Hpad, Hpad), lambda i: (0, 0)),                   # Gh
            pl.BlockSpec((Wpad, npwp), lambda i: (0, 0)),                   # Mw
            pl.BlockSpec((npwp, Wpad), lambda i: (0, 0)),                   # Mw^T
            pl.BlockSpec((Hpad, Wpad), lambda i: (0, 0)),                   # 1/(cnt*P*P)
        ],
        out_specs=pl.BlockSpec((None, Cout, Hpad, Wpad), lambda i: (i, 0, 0, 0)),
        compiler_params=pltpu.CompilerParams(
            dimension_semantics=("parallel",)),   # batch splits across TCs on v7x
    )(x_pad, w.astype(jnp.float32), b.astype(jnp.float32), gh, mw, mw.T, scale)
    # TODO(synk): for very large H*W, stream H-bands with an extra grid axis instead of
    # keeping a whole (C, Hpad, Wpad) sample resident (v7x has only 64 MiB VMEM).

    return out_pad[:, :, :H, :W]      # crop back to the original spatial shape


def sliding_window_ref(x, w, b, *, patch_size=8, overlap=0.25):
    """Pure-JAX reference of the literal pad/unfold/model/fold-mean/crop pipeline."""
    B, Cin, H, W = x.shape
    Cout = w.shape[1]
    P = patch_size
    S, Hp, Wp, n_ph, n_pw = _geometry(H, W, patch_size, overlap)
    xp = jnp.pad(x.astype(jnp.float32), ((0, 0), (0, 0), (0, Hp - H), (0, Wp - W)))
    acc = jnp.zeros((B, Cout, Hp, Wp), jnp.float32)
    cnt = jnp.zeros((1, 1, Hp, Wp), jnp.float32)
    wf = w.astype(jnp.float32)
    for pi in range(n_ph):
        for pj in range(n_pw):
            h0, w0 = pi * S, pj * S
            p = xp[:, :, h0:h0 + P, w0:w0 + P]
            z = jnp.einsum('bchw,cd->bdhw', p, wf) + b.reshape(1, Cout, 1, 1)
            z = jnp.maximum(z, 0.0)
            z = z - jnp.mean(z, axis=(2, 3), keepdims=True)
            acc = acc.at[:, :, h0:h0 + P, w0:w0 + P].add(z)
            cnt = cnt.at[:, :, h0:h0 + P, w0:w0 + P].add(1.0)
    return (acc / cnt)[:, :, :H, :W]


if __name__ == "__main__":
    key = jax.random.PRNGKey(0)
    kx, kw, kb = jax.random.split(key, 3)
    B, Cin, H, W = 2, 4, 16, 16
    Cout = 8
    x = jax.random.normal(kx, (B, Cin, H, W), jnp.float32)
    w = 0.3 * jax.random.normal(kw, (Cin, Cout), jnp.float32)
    b = 0.1 * jax.random.normal(kb, (Cout,), jnp.float32)

    out = sliding_window(x, w, b, patch_size=8, overlap=0.25)
    out = jax.block_until_ready(out)

    ref = sliding_window_ref(x, w, b, patch_size=8, overlap=0.25)
    assert out.shape == (B, Cout, H, W), out.shape
    err = float(jnp.max(jnp.abs(out - ref)))
    # tolerance leaves headroom for MXU f32 pass rounding in the box-sum matmuls
    assert err < 1e-2, f"max abs err vs reference = {err}"
    print("KERNEL_OK")
</pallas_src>

<mosaic_0001>
module attributes {stable_mosaic.version = 11 : i64} {
  func.func @kernel(%arg0: i32, %arg1: memref<1x4x24x128xf32, #tpu.memory_space<vmem>>, %arg2: memref<4x8xf32, #tpu.memory_space<smem>>, %arg3: memref<8xf32, #tpu.memory_space<smem>>, %arg4: memref<24x24xf32, #tpu.memory_space<vmem>>, %arg5: memref<128x8xf32, #tpu.memory_space<vmem>>, %arg6: memref<8x128xf32, #tpu.memory_space<vmem>>, %arg7: memref<24x128xf32, #tpu.memory_space<vmem>>, %arg8: memref<1x8x24x128xf32, #tpu.memory_space<vmem>>) attributes {dimension_semantics = [#tpu.dimension_semantics<parallel>], iteration_bounds = array<i64: 2>, scalar_prefetch = 0 : i64, scratch_operands = 0 : i64, tpu.core_type = #tpu.core_type<tc>, window_params = [{transform_indices = @transform_0, window_bounds = array<i64: 1, 4, 24, 128>}, {transform_indices = @transform_1, window_bounds = array<i64: 4, 8>}, {transform_indices = @transform_2, window_bounds = array<i64: 8>}, {pipeline_mode = #tpu.pipeline_mode<synchronous>, transform_indices = @transform_3, window_bounds = array<i64: 24, 24>}, {pipeline_mode = #tpu.pipeline_mode<synchronous>, transform_indices = @transform_4, window_bounds = array<i64: 128, 8>}, {pipeline_mode = #tpu.pipeline_mode<synchronous>, transform_indices = @transform_5, window_bounds = array<i64: 8, 128>}, {pipeline_mode = #tpu.pipeline_mode<synchronous>, transform_indices = @transform_6, window_bounds = array<i64: 24, 128>}, {transform_indices = @transform_7, window_bounds = array<i64: 1, 8, 24, 128>}]} {
    %c0 = arith.constant 0 : index
    %c0_0 = arith.constant 0 : index
    %c0_1 = arith.constant 0 : index
    %c0_2 = arith.constant 0 : index
    %0 = vector.load %arg1[%c0, %c0_0, %c0_1, %c0_2] : memref<1x4x24x128xf32, #tpu.memory_space<vmem>>, vector<1x1x24x128xf32>
    %1 = vector.shape_cast %0 : vector<1x1x24x128xf32> to vector<24x128xf32>
    %c0_3 = arith.constant 0 : index
    %c1 = arith.constant 1 : index
    %c0_4 = arith.constant 0 : index
    %c0_5 = arith.constant 0 : index
    %2 = vector.load %arg1[%c0_3, %c1, %c0_4, %c0_5] : memref<1x4x24x128xf32, #tpu.memory_space<vmem>>, vector<1x1x24x128xf32>
    %3 = vector.shape_cast %2 : vector<1x1x24x128xf32> to vector<24x128xf32>
    %c0_6 = arith.constant 0 : index
    %c2 = arith.constant 2 : index
    %c0_7 = arith.constant 0 : index
    %c0_8 = arith.constant 0 : index
    %4 = vector.load %arg1[%c0_6, %c2, %c0_7, %c0_8] : memref<1x4x24x128xf32, #tpu.memory_space<vmem>>, vector<1x1x24x128xf32>
    %5 = vector.shape_cast %4 : vector<1x1x24x128xf32> to vector<24x128xf32>
    %c0_9 = arith.constant 0 : index
    %c3 = arith.constant 3 : index
    %c0_10 = arith.constant 0 : index
    %c0_11 = arith.constant 0 : index
    %6 = vector.load %arg1[%c0_9, %c3, %c0_10, %c0_11] : memref<1x4x24x128xf32, #tpu.memory_space<vmem>>, vector<1x1x24x128xf32>
    %7 = vector.shape_cast %6 : vector<1x1x24x128xf32> to vector<24x128xf32>
    %c0_12 = arith.constant 0 : index
    %c0_13 = arith.constant 0 : index
    %8 = vector.load %arg4[%c0_12, %c0_13] : memref<24x24xf32, #tpu.memory_space<vmem>>, vector<24x24xf32>
    %c0_14 = arith.constant 0 : index
    %c0_15 = arith.constant 0 : index
    %9 = vector.load %arg5[%c0_14, %c0_15] : memref<128x8xf32, #tpu.memory_space<vmem>>, vector<128x8xf32>
    %c0_16 = arith.constant 0 : index
    %c0_17 = arith.constant 0 : index
    %10 = vector.load %arg6[%c0_16, %c0_17] : memref<8x128xf32, #tpu.memory_space<vmem>>, vector<8x128xf32>
    %c0_18 = arith.constant 0 : index
    %c0_19 = arith.constant 0 : index
    %11 = vector.load %arg7[%c0_18, %c0_19] : memref<24x128xf32, #tpu.memory_space<vmem>>, vector<24x128xf32>
    %c0_20 = arith.constant 0 : index
    %c0_21 = arith.constant 0 : index
    %12 = memref.load %arg2[%c0_20, %c0_21] : memref<4x8xf32, #tpu.memory_space<smem>>
    %13 = vector.broadcast %12 : f32 to vector<24x128xf32>
    %14 = arith.mulf %1, %13 : vector<24x128xf32>
    %c1_22 = arith.constant 1 : index
    %c0_23 = arith.constant 0 : index
    %15 = memref.load %arg2[%c1_22, %c0_23] : memref<4x8xf32, #tpu.memory_space<smem>>
    %16 = vector.broadcast %15 : f32 to vector<24x128xf32>
    %17 = arith.mulf %3, %16 : vector<24x128xf32>
    %18 = arith.addf %14, %17 : vector<24x128xf32>
    %c2_24 = arith.constant 2 : index
    %c0_25 = arith.constant 0 : index
    %19 = memref.load %arg2[%c2_24, %c0_25] : memref<4x8xf32, #tpu.memory_space<smem>>
    %20 = vector.broadcast %19 : f32 to vector<24x128xf32>
    %21 = arith.mulf %5, %20 : vector<24x128xf32>
    %22 = arith.addf %18, %21 : vector<24x128xf32>
    %c3_26 = arith.constant 3 : index
    %c0_27 = arith.constant 0 : index
    %23 = memref.load %arg2[%c3_26, %c0_27] : memref<4x8xf32, #tpu.memory_space<smem>>
    %24 = vector.broadcast %23 : f32 to vector<24x128xf32>
    %25 = arith.mulf %7, %24 : vector<24x128xf32>
    %26 = arith.addf %22, %25 : vector<24x128xf32>
    %c0_28 = arith.constant 0 : index
    %27 = memref.load %arg3[%c0_28] : memref<8xf32, #tpu.memory_space<smem>>
    %28 = vector.broadcast %27 : f32 to vector<24x128xf32>
    %29 = arith.addf %26, %28 : vector<24x128xf32>
    %cst = arith.constant 0.000000e+00 : f32
    %30 = vector.broadcast %cst : f32 to vector<24x128xf32>
    %31 = arith.maximumf %29, %30 : vector<24x128xf32>
    %cst_29 = arith.constant dense<0.000000e+00> : vector<24x8xf32>
    %32 = tpu.matmul %31, %9, %cst_29 {dimension_numbers = #tpu.dot_dimension_numbers<[1], [0], [0], [1], [0, 0, 1, 1], [], []>} : vector<24x128xf32>, vector<128x8xf32>, vector<24x8xf32> -> vector<24x8xf32>
    %cst_30 = arith.constant dense<0.000000e+00> : vector<24x8xf32>
    %33 = tpu.matmul %8, %32, %cst_30 {dimension_numbers = #tpu.dot_dimension_numbers<[1], [0], [0], [1], [0, 0, 1, 1], [], []>} : vector<24x24xf32>, vector<24x8xf32>, vector<24x8xf32> -> vector<24x8xf32>
    %cst_31 = arith.constant dense<0.000000e+00> : vector<24x128xf32>
    %34 = tpu.matmul %33, %10, %cst_31 {dimension_numbers = #tpu.dot_dimension_numbers<[1], [0], [0], [1], [0, 0, 1, 1], [], []>} : vector<24x8xf32>, vector<8x128xf32>, vector<24x128xf32> -> vector<24x128xf32>
    %35 = arith.mulf %34, %11 : vector<24x128xf32>
    %36 = arith.subf %31, %35 : vector<24x128xf32>
    %c0_32 = arith.constant 0 : index
    %c0_33 = arith.constant 0 : index
    %c0_34 = arith.constant 0 : index
    %c0_35 = arith.constant 0 : index
    %37 = vector.load %arg8[%c0_32, %c0_33, %c0_34, %c0_35] : memref<1x8x24x128xf32, #tpu.memory_space<vmem>>, vector<1x1x24x128xf32>
    %38 = vector.shape_cast %37 : vector<1x1x24x128xf32> to vector<24x128xf32>
    %39 = vector.shape_cast %36 : vector<24x128xf32> to vector<1x1x24x128xf32>
    tpu.vector_store %arg8[%c0_32, %c0_33, %c0_34, %c0_35], %39 {strides = array<i32>} : memref<1x8x24x128xf32, #tpu.memory_space<vmem>>, vector<1x1x24x128xf32>,
    %c0_36 = arith.constant 0 : index
    %c1_37 = arith.constant 1 : index
    %40 = memref.load %arg2[%c0_36, %c1_37] : memref<4x8xf32, #tpu.memory_space<smem>>
    %41 = vector.broadcast %40 : f32 to vector<24x128xf32>
    %42 = arith.mulf %1, %41 : vector<24x128xf32>
    %c1_38 = arith.constant 1 : index
    %c1_39 = arith.constant 1 : index
    %43 = memref.load %arg2[%c1_38, %c1_39] : memref<4x8xf32, #tpu.memory_space<smem>>
    %44 = vector.broadcast %43 : f32 to vector<24x128xf32>
    %45 = arith.mulf %3, %44 : vector<24x128xf32>
    %46 = arith.addf %42, %45 : vector<24x128xf32>
    %c2_40 = arith.constant 2 : index
    %c1_41 = arith.constant 1 : index
    %47 = memref.load %arg2[%c2_40, %c1_41] : memref<4x8xf32, #tpu.memory_space<smem>>
    %48 = vector.broadcast %47 : f32 to vector<24x128xf32>
    %49 = arith.mulf %5, %48 : vector<24x128xf32>
    %50 = arith.addf %46, %49 : vector<24x128xf32>
    %c3_42 = arith.constant 3 : index
    %c1_43 = arith.constant 1 : index
    %51 = memref.load %arg2[%c3_42, %c1_43] : memref<4x8xf32, #tpu.memory_space<smem>>
    %52 = vector.broadcast %51 : f32 to vector<24x128xf32>
    %53 = arith.mulf %7, %52 : vector<24x128xf32>
    %54 = arith.addf %50, %53 : vector<24x128xf32>
    %c1_44 = arith.constant 1 : index
    %55 = memref.load %arg3[%c1_44] : memref<8xf32, #tpu.memory_space<smem>>
    %56 = vector.broadcast %55 : f32 to vector<24x128xf32>
    %57 = arith.addf %54, %56 : vector<24x128xf32>
    %cst_45 = arith.constant 0.000000e+00 : f32
    %58 = vector.broadcast %cst_45 : f32 to vector<24x128xf32>
    %59 = arith.maximumf %57, %58 : vector<24x128xf32>
    %cst_46 = arith.constant dense<0.000000e+00> : vector<24x8xf32>
    %60 = tpu.matmul %59, %9, %cst_46 {dimension_numbers = #tpu.dot_dimension_numbers<[1], [0], [0], [1], [0, 0, 1, 1], [], []>} : vector<24x128xf32>, vector<128x8xf32>, vector<24x8xf32> -> vector<24x8xf32>
    %cst_47 = arith.constant dense<0.000000e+00> : vector<24x8xf32>
    %61 = tpu.matmul %8, %60, %cst_47 {dimension_numbers = #tpu.dot_dimension_numbers<[1], [0], [0], [1], [0, 0, 1, 1], [], []>} : vector<24x24xf32>, vector<24x8xf32>, vector<24x8xf32> -> vector<24x8xf32>
    %cst_48 = arith.constant dense<0.000000e+00> : vector<24x128xf32>
    %62 = tpu.matmul %61, %10, %cst_48 {dimension_numbers = #tpu.dot_dimension_numbers<[1], [0], [0], [1], [0, 0, 1, 1], [], []>} : vector<24x8xf32>, vector<8x128xf32>, vector<24x128xf32> -> vector<24x128xf32>
    %63 = arith.mulf %62, %11 : vector<24x128xf32>
    %64 = arith.subf %59, %63 : vector<24x128xf32>
    %c0_49 = arith.constant 0 : index
    %c1_50 = arith.constant 1 : index
    %c0_51 = arith.constant 0 : index
    %c0_52 = arith.constant 0 : index
    %65 = vector.load %arg8[%c0_49, %c1_50, %c0_51, %c0_52] : memref<1x8x24x128xf32, #tpu.memory_space<vmem>>, vector<1x1x24x128xf32>
    %66 = vector.shape_cast %65 : vector<1x1x24x128xf32> to vector<24x128xf32>
    %67 = vector.shape_cast %64 : vector<24x128xf32> to vector<1x1x24x128xf32>
    tpu.vector_store %arg8[%c0_49, %c1_50, %c0_51, %c0_52], %67 {strides = array<i32>} : memref<1x8x24x128xf32, #tpu.memory_space<vmem>>, vector<1x1x24x128xf32>,
    %c0_53 = arith.constant 0 : index
    %c2_54 = arith.constant 2 : index
    %68 = memref.load %arg2[%c0_53, %c2_54] : memref<4x8xf32, #tpu.memory_space<smem>>
    %69 = vector.broadcast %68 : f32 to vector<24x128xf32>
    %70 = arith.mulf %1, %69 : vector<24x128xf32>
    %c1_55 = arith.constant 1 : index
    %c2_56 = arith.constant 2 : index
    %71 = memref.load %arg2[%c1_55, %c2_56] : memref<4x8xf32, #tpu.memory_space<smem>>
    %72 = vector.broadcast %71 : f32 to vector<24x128xf32>
    %73 = arith.mulf %3, %72 : vector<24x128xf32>
    %74 = arith.addf %70, %73 : vector<24x128xf32>
    %c2_57 = arith.constant 2 : index
    %c2_58 = arith.constant 2 : index
    %75 = memref.load %arg2[%c2_57, %c2_58] : memref<4x8xf32, #tpu.memory_space<smem>>
    %76 = vector.broadcast %75 : f32 to vector<24x128xf32>
    %77 = arith.mulf %5, %76 : vector<24x128xf32>
    %78 = arith.addf %74, %77 : vector<24x128xf32>
    %c3_59 = arith.constant 3 : index
    %c2_60 = arith.constant 2 : index
    %79 = memref.load %arg2[%c3_59, %c2_60] : memref<4x8xf32, #tpu.memory_space<smem>>
    %80 = vector.broadcast %79 : f32 to vector<24x128xf32>
    %81 = arith.mulf %7, %80 : vector<24x128xf32>
    %82 = arith.addf %78, %81 : vector<24x128xf32>
    %c2_61 = arith.constant 2 : index
    %83 = memref.load %arg3[%c2_61] : memref<8xf32, #tpu.memory_space<smem>>
    %84 = vector.broadcast %83 : f32 to vector<24x128xf32>
    %85 = arith.addf %82, %84 : vector<24x128xf32>
    %cst_62 = arith.constant 0.000000e+00 : f32
    %86 = vector.broadcast %cst_62 : f32 to vector<24x128xf32>
    %87 = arith.maximumf %85, %86 : vector<24x128xf32>
    %cst_63 = arith.constant dense<0.000000e+00> : vector<24x8xf32>
    %88 = tpu.matmul %87, %9, %cst_63 {dimension_numbers = #tpu.dot_dimension_numbers<[1], [0], [0], [1], [0, 0, 1, 1], [], []>} : vector<24x128xf32>, vector<128x8xf32>, vector<24x8xf32> -> vector<24x8xf32>
    %cst_64 = arith.constant dense<0.000000e+00> : vector<24x8xf32>
    %89 = tpu.matmul %8, %88, %cst_64 {dimension_numbers = #tpu.dot_dimension_numbers<[1], [0], [0], [1], [0, 0, 1, 1], [], []>} : vector<24x24xf32>, vector<24x8xf32>, vector<24x8xf32> -> vector<24x8xf32>
    %cst_65 = arith.constant dense<0.000000e+00> : vector<24x128xf32>
    %90 = tpu.matmul %89, %10, %cst_65 {dimension_numbers = #tpu.dot_dimension_numbers<[1], [0], [0], [1], [0, 0, 1, 1], [], []>} : vector<24x8xf32>, vector<8x128xf32>, vector<24x128xf32> -> vector<24x128xf32>
    %91 = arith.mulf %90, %11 : vector<24x128xf32>
    %92 = arith.subf %87, %91 : vector<24x128xf32>
    %c0_66 = arith.constant 0 : index
    %c2_67 = arith.constant 2 : index
    %c0_68 = arith.constant 0 : index
    %c0_69 = arith.constant 0 : index
    %93 = vector.load %arg8[%c0_66, %c2_67, %c0_68, %c0_69] : memref<1x8x24x128xf32, #tpu.memory_space<vmem>>, vector<1x1x24x128xf32>
    %94 = vector.shape_cast %93 : vector<1x1x24x128xf32> to vector<24x128xf32>
    %95 = vector.shape_cast %92 : vector<24x128xf32> to vector<1x1x24x128xf32>
    tpu.vector_store %arg8[%c0_66, %c2_67, %c0_68, %c0_69], %95 {strides = array<i32>} : memref<1x8x24x128xf32, #tpu.memory_space<vmem>>, vector<1x1x24x128xf32>,
    %c0_70 = arith.constant 0 : index
    %c3_71 = arith.constant 3 : index
    %96 = memref.load %arg2[%c0_70, %c3_71] : memref<4x8xf32, #tpu.memory_space<smem>>
    %97 = vector.broadcast %96 : f32 to vector<24x128xf32>
    %98 = arith.mulf %1, %97 : vector<24x128xf32>
    %c1_72 = arith.constant 1 : index
    %c3_73 = arith.constant 3 : index
    %99 = memref.load %arg2[%c1_72, %c3_73] : memref<4x8xf32, #tpu.memory_space<smem>>
    %100 = vector.broadcast %99 : f32 to vector<24x128xf32>
    %101 = arith.mulf %3, %100 : vector<24x128xf32>
    %102 = arith.addf %98, %101 : vector<24x128xf32>
    %c2_74 = arith.constant 2 : index
    %c3_75 = arith.constant 3 : index
    %103 = memref.load %arg2[%c2_74, %c3_75] : memref<4x8xf32, #tpu.memory_space<smem>>
    %104 = vector.broadcast %103 : f32 to vector<24x128xf32>
    %105 = arith.mulf %5, %104 : vector<24x128xf32>
    %106 = arith.addf %102, %105 : vector<24x128xf32>
    %c3_76 = arith.constant 3 : index
    %c3_77 = arith.constant 3 : index
    %107 = memref.load %arg2[%c3_76, %c3_77] : memref<4x8xf32, #tpu.memory_space<smem>>
    %108 = vector.broadcast %107 : f32 to vector<24x128xf32>
    %109 = arith.mulf %7, %108 : vector<24x128xf32>
    %110 = arith.addf %106, %109 : vector<24x128xf32>
    %c3_78 = arith.constant 3 : index
    %111 = memref.load %arg3[%c3_78] : memref<8xf32, #tpu.memory_space<smem>>
    %112 = vector.broadcast %111 : f32 to vector<24x128xf32>
    %113 = arith.addf %110, %112 : vector<24x128xf32>
    %cst_79 = arith.constant 0.000000e+00 : f32
    %114 = vector.broadcast %cst_79 : f32 to vector<24x128xf32>
    %115 = arith.maximumf %113, %114 : vector<24x128xf32>
    %cst_80 = arith.constant dense<0.000000e+00> : vector<24x8xf32>
    %116 = tpu.matmul %115, %9, %cst_80 {dimension_numbers = #tpu.dot_dimension_numbers<[1], [0], [0], [1], [0, 0, 1, 1], [], []>} : vector<24x128xf32>, vector<128x8xf32>, vector<24x8xf32> -> vector<24x8xf32>
    %cst_81 = arith.constant dense<0.000000e+00> : vector<24x8xf32>
    %117 = tpu.matmul %8, %116, %cst_81 {dimension_numbers = #tpu.dot_dimension_numbers<[1], [0], [0], [1], [0, 0, 1, 1], [], []>} : vector<24x24xf32>, vector<24x8xf32>, vector<24x8xf32> -> vector<24x8xf32>
    %cst_82 = arith.constant dense<0.000000e+00> : vector<24x128xf32>
    %118 = tpu.matmul %117, %10, %cst_82 {dimension_numbers = #tpu.dot_dimension_numbers<[1], [0], [0], [1], [0, 0, 1, 1], [], []>} : vector<24x8xf32>, vector<8x128xf32>, vector<24x128xf32> -> vector<24x128xf32>
    %119 = arith.mulf %118, %11 : vector<24x128xf32>
    %120 = arith.subf %115, %119 : vector<24x128xf32>
    %c0_83 = arith.constant 0 : index
    %c3_84 = arith.constant 3 : index
    %c0_85 = arith.constant 0 : index
    %c0_86 = arith.constant 0 : index
    %121 = vector.load %arg8[%c0_83, %c3_84, %c0_85, %c0_86] : memref<1x8x24x128xf32, #tpu.memory_space<vmem>>, vector<1x1x24x128xf32>
    %122 = vector.shape_cast %121 : vector<1x1x24x128xf32> to vector<24x128xf32>
    %123 = vector.shape_cast %120 : vector<24x128xf32> to vector<1x1x24x128xf32>
    tpu.vector_store %arg8[%c0_83, %c3_84, %c0_85, %c0_86], %123 {strides = array<i32>} : memref<1x8x24x128xf32, #tpu.memory_space<vmem>>, vector<1x1x24x128xf32>,
    %c0_87 = arith.constant 0 : index
    %c4 = arith.constant 4 : index
    %124 = memref.load %arg2[%c0_87, %c4] : memref<4x8xf32, #tpu.memory_space<smem>>
    %125 = vector.broadcast %124 : f32 to vector<24x128xf32>
    %126 = arith.mulf %1, %125 : vector<24x128xf32>
    %c1_88 = arith.constant 1 : index
    %c4_89 = arith.constant 4 : index
    %127 = memref.load %arg2[%c1_88, %c4_89] : memref<4x8xf32, #tpu.memory_space<smem>>
    %128 = vector.broadcast %127 : f32 to vector<24x128xf32>
    %129 = arith.mulf %3, %128 : vector<24x128xf32>
    %130 = arith.addf %126, %129 : vector<24x128xf32>
    %c2_90 = arith.constant 2 : index
    %c4_91 = arith.constant 4 : index
    %131 = memref.load %arg2[%c2_90, %c4_91] : memref<4x8xf32, #tpu.memory_space<smem>>
    %132 = vector.broadcast %131 : f32 to vector<24x128xf32>
    %133 = arith.mulf %5, %132 : vector<24x128xf32>
    %134 = arith.addf %130, %133 : vector<24x128xf32>
    %c3_92 = arith.constant 3 : index
    %c4_93 = arith.constant 4 : index
    %135 = memref.load %arg2[%c3_92, %c4_93] : memref<4x8xf32, #tpu.memory_space<smem>>
    %136 = vector.broadcast %135 : f32 to vector<24x128xf32>
    %137 = arith.mulf %7, %136 : vector<24x128xf32>
    %138 = arith.addf %134, %137 : vector<24x128xf32>
    %c4_94 = arith.constant 4 : index
    %139 = memref.load %arg3[%c4_94] : memref<8xf32, #tpu.memory_space<smem>>
    %140 = vector.broadcast %139 : f32 to vector<24x128xf32>
    %141 = arith.addf %138, %140 : vector<24x128xf32>
    %cst_95 = arith.constant 0.000000e+00 : f32
    %142 = vector.broadcast %cst_95 : f32 to vector<24x128xf32>
    %143 = arith.maximumf %141, %142 : vector<24x128xf32>
    %cst_96 = arith.constant dense<0.000000e+00> : vector<24x8xf32>
    %144 = tpu.matmul %143, %9, %cst_96 {dimension_numbers = #tpu.dot_dimension_numbers<[1], [0], [0], [1], [0, 0, 1, 1], [], []>} : vector<24x128xf32>, vector<128x8xf32>, vector<24x8xf32> -> vector<24x8xf32>
    %cst_97 = arith.constant dense<0.000000e+00> : vector<24x8xf32>
    %145 = tpu.matmul %8, %144, %cst_97 {dimension_numbers = #tpu.dot_dimension_numbers<[1], [0], [0], [1], [0, 0, 1, 1], [], []>} : vector<24x24xf32>, vector<24x8xf32>, vector<24x8xf32> -> vector<24x8xf32>
    %cst_98 = arith.constant dense<0.000000e+00> : vector<24x128xf32>
    %146 = tpu.matmul %145, %10, %cst_98 {dimension_numbers = #tpu.dot_dimension_numbers<[1], [0], [0], [1], [0, 0, 1, 1], [], []>} : vector<24x8xf32>, vector<8x128xf32>, vector<24x128xf32> -> vector<24x128xf32>
    %147 = arith.mulf %146, %11 : vector<24x128xf32>
    %148 = arith.subf %143, %147 : vector<24x128xf32>
    %c0_99 = arith.constant 0 : index
    %c4_100 = arith.constant 4 : index
    %c0_101 = arith.constant 0 : index
    %c0_102 = arith.constant 0 : index
    %149 = vector.load %arg8[%c0_99, %c4_100, %c0_101, %c0_102] : memref<1x8x24x128xf32, #tpu.memory_space<vmem>>, vector<1x1x24x128xf32>
    %150 = vector.shape_cast %149 : vector<1x1x24x128xf32> to vector<24x128xf32>
    %151 = vector.shape_cast %148 : vector<24x128xf32> to vector<1x1x24x128xf32>
    tpu.vector_store %arg8[%c0_99, %c4_100, %c0_101, %c0_102], %151 {strides = array<i32>} : memref<1x8x24x128xf32, #tpu.memory_space<vmem>>, vector<1x1x24x128xf32>,
    %c0_103 = arith.constant 0 : index
    %c5 = arith.constant 5 : index
    %152 = memref.load %arg2[%c0_103, %c5] : memref<4x8xf32, #tpu.memory_space<smem>>
    %153 = vector.broadcast %152 : f32 to vector<24x128xf32>
    %154 = arith.mulf %1, %153 : vector<24x128xf32>
    %c1_104 = arith.constant 1 : index
    %c5_105 = arith.constant 5 : index
    %155 = memref.load %arg2[%c1_104, %c5_105] : memref<4x8xf32, #tpu.memory_space<smem>>
    %156 = vector.broadcast %155 : f32 to vector<24x128xf32>
    %157 = arith.mulf %3, %156 : vector<24x128xf32>
    %158 = arith.addf %154, %157 : vector<24x128xf32>
    %c2_106 = arith.constant 2 : index
    %c5_107 = arith.constant 5 : index
    %159 = memref.load %arg2[%c2_106, %c5_107] : memref<4x8xf32, #tpu.memory_space<smem>>
    %160 = vector.broadcast %159 : f32 to vector<24x128xf32>
    %161 = arith.mulf %5, %160 : vector<24x128xf32>
    %162 = arith.addf %158, %161 : vector<24x128xf32>
    %c3_108 = arith.constant 3 : index
    %c5_109 = arith.constant 5 : index
    %163 = memref.load %arg2[%c3_108, %c5_109] : memref<4x8xf32, #tpu.memory_space<smem>>
    %164 = vector.broadcast %163 : f32 to vector<24x128xf32>
    %165 = arith.mulf %7, %164 : vector<24x128xf32>
    %166 = arith.addf %162, %165 : vector<24x128xf32>
    %c5_110 = arith.constant 5 : index
    %167 = memref.load %arg3[%c5_110] : memref<8xf32, #tpu.memory_space<smem>>
    %168 = vector.broadcast %167 : f32 to vector<24x128xf32>
    %169 = arith.addf %166, %168 : vector<24x128xf32>
    %cst_111 = arith.constant 0.000000e+00 : f32
    %170 = vector.broadcast %cst_111 : f32 to vector<24x128xf32>
    %171 = arith.maximumf %169, %170 : vector<24x128xf32>
    %cst_112 = arith.constant dense<0.000000e+00> : vector<24x8xf32>
    %172 = tpu.matmul %171, %9, %cst_112 {dimension_numbers = #tpu.dot_dimension_numbers<[1], [0], [0], [1], [0, 0, 1, 1], [], []>} : vector<24x128xf32>, vector<128x8xf32>, vector<24x8xf32> -> vector<24x8xf32>
    %cst_113 = arith.constant dense<0.000000e+00> : vector<24x8xf32>
    %173 = tpu.matmul %8, %172, %cst_113 {dimension_numbers = #tpu.dot_dimension_numbers<[1], [0], [0], [1], [0, 0, 1, 1], [], []>} : vector<24x24xf32>, vector<24x8xf32>, vector<24x8xf32> -> vector<24x8xf32>
    %cst_114 = arith.constant dense<0.000000e+00> : vector<24x128xf32>
    %174 = tpu.matmul %173, %10, %cst_114 {dimension_numbers = #tpu.dot_dimension_numbers<[1], [0], [0], [1], [0, 0, 1, 1], [], []>} : vector<24x8xf32>, vector<8x128xf32>, vector<24x128xf32> -> vector<24x128xf32>
    %175 = arith.mulf %174, %11 : vector<24x128xf32>
    %176 = arith.subf %171, %175 : vector<24x128xf32>
    %c0_115 = arith.constant 0 : index
    %c5_116 = arith.constant 5 : index
    %c0_117 = arith.constant 0 : index
    %c0_118 = arith.constant 0 : index
    %177 = vector.load %arg8[%c0_115, %c5_116, %c0_117, %c0_118] : memref<1x8x24x128xf32, #tpu.memory_space<vmem>>, vector<1x1x24x128xf32>
    %178 = vector.shape_cast %177 : vector<1x1x24x128xf32> to vector<24x128xf32>
    %179 = vector.shape_cast %176 : vector<24x128xf32> to vector<1x1x24x128xf32>
    tpu.vector_store %arg8[%c0_115, %c5_116, %c0_117, %c0_118], %179 {strides = array<i32>} : memref<1x8x24x128xf32, #tpu.memory_space<vmem>>, vector<1x1x24x128xf32>,
    %c0_119 = arith.constant 0 : index
    %c6 = arith.constant 6 : index
    %180 = memref.load %arg2[%c0_119, %c6] : memref<4x8xf32, #tpu.memory_space<smem>>
    %181 = vector.broadcast %180 : f32 to vector<24x128xf32>
    %182 = arith.mulf %1, %181 : vector<24x128xf32>
    %c1_120 = arith.constant 1 : index
    %c6_121 = arith.constant 6 : index
    %183 = memref.load %arg2[%c1_120, %c6_121] : memref<4x8xf32, #tpu.memory_space<smem>>
    %184 = vector.broadcast %183 : f32 to vector<24x128xf32>
    %185 = arith.mulf %3, %184 : vector<24x128xf32>
    %186 = arith.addf %182, %185 : vector<24x128xf32>
    %c2_122 = arith.constant 2 : index
    %c6_123 = arith.constant 6 : index
    %187 = memref.load %arg2[%c2_122, %c6_123] : memref<4x8xf32, #tpu.memory_space<smem>>
    %188 = vector.broadcast %187 : f32 to vector<24x128xf32>
    %189 = arith.mulf %5, %188 : vector<24x128xf32>
    %190 = arith.addf %186, %189 : vector<24x128xf32>
    %c3_124 = arith.constant 3 : index
    %c6_125 = arith.constant 6 : index
    %191 = memref.load %arg2[%c3_124, %c6_125] : memref<4x8xf32, #tpu.memory_space<smem>>
    %192 = vector.broadcast %191 : f32 to vector<24x128xf32>
    %193 = arith.mulf %7, %192 : vector<24x128xf32>
    %194 = arith.addf %190, %193 : vector<24x128xf32>
    %c6_126 = arith.constant 6 : index
    %195 = memref.load %arg3[%c6_126] : memref<8xf32, #tpu.memory_space<smem>>
    %196 = vector.broadcast %195 : f32 to vector<24x128xf32>
    %197 = arith.addf %194, %196 : vector<24x128xf32>
    %cst_127 = arith.constant 0.000000e+00 : f32
    %198 = vector.broadcast %cst_127 : f32 to vector<24x128xf32>
    %199 = arith.maximumf %197, %198 : vector<24x128xf32>
    %cst_128 = arith.constant dense<0.000000e+00> : vector<24x8xf32>
    %200 = tpu.matmul %199, %9, %cst_128 {dimension_numbers = #tpu.dot_dimension_numbers<[1], [0], [0], [1], [0, 0, 1, 1], [], []>} : vector<24x128xf32>, vector<128x8xf32>, vector<24x8xf32> -> vector<24x8xf32>
    %cst_129 = arith.constant dense<0.000000e+00> : vector<24x8xf32>
    %201 = tpu.matmul %8, %200, %cst_129 {dimension_numbers = #tpu.dot_dimension_numbers<[1], [0], [0], [1], [0, 0, 1, 1], [], []>} : vector<24x24xf32>, vector<24x8xf32>, vector<24x8xf32> -> vector<24x8xf32>
    %cst_130 = arith.constant dense<0.000000e+00> : vector<24x128xf32>
    %202 = tpu.matmul %201, %10, %cst_130 {dimension_numbers = #tpu.dot_dimension_numbers<[1], [0], [0], [1], [0, 0, 1, 1], [], []>} : vector<24x8xf32>, vector<8x128xf32>, vector<24x128xf32> -> vector<24x128xf32>
    %203 = arith.mulf %202, %11 : vector<24x128xf32>
    %204 = arith.subf %199, %203 : vector<24x128xf32>
    %c0_131 = arith.constant 0 : index
    %c6_132 = arith.constant 6 : index
    %c0_133 = arith.constant 0 : index
    %c0_134 = arith.constant 0 : index
    %205 = vector.load %arg8[%c0_131, %c6_132, %c0_133, %c0_134] : memref<1x8x24x128xf32, #tpu.memory_space<vmem>>, vector<1x1x24x128xf32>
    %206 = vector.shape_cast %205 : vector<1x1x24x128xf32> to vector<24x128xf32>
    %207 = vector.shape_cast %204 : vector<24x128xf32> to vector<1x1x24x128xf32>
    tpu.vector_store %arg8[%c0_131, %c6_132, %c0_133, %c0_134], %207 {strides = array<i32>} : memref<1x8x24x128xf32, #tpu.memory_space<vmem>>, vector<1x1x24x128xf32>,
    %c0_135 = arith.constant 0 : index
    %c7 = arith.constant 7 : index
    %208 = memref.load %arg2[%c0_135, %c7] : memref<4x8xf32, #tpu.memory_space<smem>>
    %209 = vector.broadcast %208 : f32 to vector<24x128xf32>
    %210 = arith.mulf %1, %209 : vector<24x128xf32>
    %c1_136 = arith.constant 1 : index
    %c7_137 = arith.constant 7 : index
    %211 = memref.load %arg2[%c1_136, %c7_137] : memref<4x8xf32, #tpu.memory_space<smem>>
    %212 = vector.broadcast %211 : f32 to vector<24x128xf32>
    %213 = arith.mulf %3, %212 : vector<24x128xf32>
    %214 = arith.addf %210, %213 : vector<24x128xf32>
    %c2_138 = arith.constant 2 : index
    %c7_139 = arith.constant 7 : index
    %215 = memref.load %arg2[%c2_138, %c7_139] : memref<4x8xf32, #tpu.memory_space<smem>>
    %216 = vector.broadcast %215 : f32 to vector<24x128xf32>
    %217 = arith.mulf %5, %216 : vector<24x128xf32>
    %218 = arith.addf %214, %217 : vector<24x128xf32>
    %c3_140 = arith.constant 3 : index
    %c7_141 = arith.constant 7 : index
    %219 = memref.load %arg2[%c3_140, %c7_141] : memref<4x8xf32, #tpu.memory_space<smem>>
    %220 = vector.broadcast %219 : f32 to vector<24x128xf32>
    %221 = arith.mulf %7, %220 : vector<24x128xf32>
    %222 = arith.addf %218, %221 : vector<24x128xf32>
    %c7_142 = arith.constant 7 : index
    %223 = memref.load %arg3[%c7_142] : memref<8xf32, #tpu.memory_space<smem>>
    %224 = vector.broadcast %223 : f32 to vector<24x128xf32>
    %225 = arith.addf %222, %224 : vector<24x128xf32>
    %cst_143 = arith.constant 0.000000e+00 : f32
    %226 = vector.broadcast %cst_143 : f32 to vector<24x128xf32>
    %227 = arith.maximumf %225, %226 : vector<24x128xf32>
    %cst_144 = arith.constant dense<0.000000e+00> : vector<24x8xf32>
    %228 = tpu.matmul %227, %9, %cst_144 {dimension_numbers = #tpu.dot_dimension_numbers<[1], [0], [0], [1], [0, 0, 1, 1], [], []>} : vector<24x128xf32>, vector<128x8xf32>, vector<24x8xf32> -> vector<24x8xf32>
    %cst_145 = arith.constant dense<0.000000e+00> : vector<24x8xf32>
    %229 = tpu.matmul %8, %228, %cst_145 {dimension_numbers = #tpu.dot_dimension_numbers<[1], [0], [0], [1], [0, 0, 1, 1], [], []>} : vector<24x24xf32>, vector<24x8xf32>, vector<24x8xf32> -> vector<24x8xf32>
    %cst_146 = arith.constant dense<0.000000e+00> : vector<24x128xf32>
    %230 = tpu.matmul %229, %10, %cst_146 {dimension_numbers = #tpu.dot_dimension_numbers<[1], [0], [0], [1], [0, 0, 1, 1], [], []>} : vector<24x8xf32>, vector<8x128xf32>, vector<24x128xf32> -> vector<24x128xf32>
    %231 = arith.mulf %230, %11 : vector<24x128xf32>
    %232 = arith.subf %227, %231 : vector<24x128xf32>
    %c0_147 = arith.constant 0 : index
    %c7_148 = arith.constant 7 : index
    %c0_149 = arith.constant 0 : index
    %c0_150 = arith.constant 0 : index
    %233 = vector.load %arg8[%c0_147, %c7_148, %c0_149, %c0_150] : memref<1x8x24x128xf32, #tpu.memory_space<vmem>>, vector<1x1x24x128xf32>
    %234 = vector.shape_cast %233 : vector<1x1x24x128xf32> to vector<24x128xf32>
    %235 = vector.shape_cast %232 : vector<24x128xf32> to vector<1x1x24x128xf32>
    tpu.vector_store %arg8[%c0_147, %c7_148, %c0_149, %c0_150], %235 {strides = array<i32>} : memref<1x8x24x128xf32, #tpu.memory_space<vmem>>, vector<1x1x24x128xf32>,
    return
  }
  func.func @transform_0(%arg0: i32) -> (i32, i32, i32, i32) {
    %c0_i32 = arith.constant 0 : i32
    %c0_i32_0 = arith.constant 0 : i32
    %c0_i32_1 = arith.constant 0 : i32
    %c0_i32_2 = arith.constant 0 : i32
    return %arg0, %c0_i32, %c0_i32_0, %c0_i32_1 : i32, i32, i32, i32
  }
  func.func @transform_1(%arg0: i32) -> (i32, i32) {
    %c0_i32 = arith.constant 0 : i32
    %c0_i32_0 = arith.constant 0 : i32
    %c0_i32_1 = arith.constant 0 : i32
    return %c0_i32, %c0_i32_0 : i32, i32
  }
  func.func @transform_2(%arg0: i32) -> i32 {
    %c0_i32 = arith.constant 0 : i32
    %c0_i32_0 = arith.constant 0 : i32
    return %c0_i32 : i32
  }
  func.func @transform_3(%arg0: i32) -> (i32, i32) {
    %c0_i32 = arith.constant 0 : i32
    %c0_i32_0 = arith.constant 0 : i32
    %c0_i32_1 = arith.constant 0 : i32
    return %c0_i32, %c0_i32_0 : i32, i32
  }
  func.func @transform_4(%arg0: i32) -> (i32, i32) {
    %c0_i32 = arith.constant 0 : i32
    %c0_i32_0 = arith.constant 0 : i32
    %c0_i32_1 = arith.constant 0 : i32
    return %c0_i32, %c0_i32_0 : i32, i32
  }
  func.func @transform_5(%arg0: i32) -> (i32, i32) {
    %c0_i32 = arith.constant 0 : i32
    %c0_i32_0 = arith.constant 0 : i32
    %c0_i32_1 = arith.constant 0 : i32
    return %c0_i32, %c0_i32_0 : i32, i32
  }
  func.func @transform_6(%arg0: i32) -> (i32, i32) {
    %c0_i32 = arith.constant 0 : i32
    %c0_i32_0 = arith.constant 0 : i32
    %c0_i32_1 = arith.constant 0 : i32
    return %c0_i32, %c0_i32_0 : i32, i32
  }
  func.func @transform_7(%arg0: i32) -> (i32, i32, i32, i32) {
    %c0_i32 = arith.constant 0 : i32
    %c0_i32_0 = arith.constant 0 : i32
    %c0_i32_1 = arith.constant 0 : i32
    %c0_i32_2 = arith.constant 0 : i32
    return %arg0, %c0_i32, %c0_i32_0, %c0_i32_1 : i32, i32, i32, i32
  }
}

</mosaic_0001>

<llo_original>
// kernel: tpu_custom_call.1
$region0: #{tpu_custom_call.1}
  #allocation0 [shape = 'u32[]', space=smem, size = 0x4, offset = 0x4, fixed_abs, tag = 'smem constant byte address 0x4 - core index']
  #allocation1 [shape = 'u32[144,128]{1,0:T(1,128)}', space=vmem, size = 0x12000, scoped, tag = 'internal scratch']
  %s0 = inlined_call_operand.hbm [shape: f32[2,4,24,128], index: 0, kind: input, shape index: {}]
  %s1 = inlined_call_operand.vmem [shape: f32[4,8], index: 1, kind: input, shape index: {}]
  %s2 = inlined_call_operand.vmem [shape: f32[8], index: 2, kind: input, shape index: {}]
  %s3 = inlined_call_operand.vmem [shape: f32[24,24], index: 3, kind: input, shape index: {}]
  %s4 = inlined_call_operand.vmem [shape: f32[128,8], index: 4, kind: input, shape index: {}]
  %s5 = inlined_call_operand.vmem [shape: f32[8,128], index: 5, kind: input, shape index: {}]
  %s6 = inlined_call_operand.vmem [shape: f32[24,128], index: 6, kind: input, shape index: {}]
  %s7 = inlined_call_operand.hbm [shape: f32[2,8,24,128], index: 7, kind: output, shape index: {}]
  %s8 = sld [smem:[#allocation0]]
  $region73: #{tpu_custom_call.1} parent=0
    _
  %s10 = ssub.s32 1, %s8
  %s11 = scalar_select 0, %s10, %s8
  $region1: #{tpu_custom_call.1} parent=0
    #allocation2 [shape = 'u8[98304]{0}', space=vmem, size = 0x18000, scoped, tag = 'input window, operand 0']
    #allocation3 [shape = 's32[2]{0}', space=sflag, size = 0x8, scoped, tag = 'scoped memory for tpu_custom_call.1']
    #allocation4 [shape = 's32[2]{0}', space=sflag, size = 0x8, scoped, tag = 'scoped memory for tpu_custom_call.1']
    #allocation5 [shape = 's32[2]{0}', space=sflag, size = 0x8, scoped, tag = 'scoped memory for tpu_custom_call.1']
    #allocation6 [shape = 'u8[2048]{0}', space=smem, size = 0x800, scoped, tag = 'input window, operand 1, single buffered']
    #allocation7 [shape = 'u8[512]{0}', space=smem, size = 0x200, scoped, tag = 'input window, operand 2, single buffered']
    #allocation8 [shape = 's32[1]{0}', space=sflag, size = 0x4, scoped, tag = 'scoped memory for tpu_custom_call.1']
    #allocation9 [shape = 'u8[196608]{0}', space=vmem, size = 0x30000, scoped, tag = 'output window, operand 0']
    %12 = vsyncpa [#allocation3], 0
    %s13 = scalar_lea.sflag [#allocation3], 1
    %14 = vsyncpa %s13, 0
    %15 = vsyncpa [#allocation5], 0
    %16 = vsyncpa [#allocation8], 0
    %17 = vsyncpa [#allocation4], 0
    %s18 = scalar_lea.sflag [#allocation4], 1
    %19 = vsyncpa %s18, 0
    loop: start=0, step=1, limit=4
    $region2: #{tpu_custom_call.1} parent=1 // loop_pre_header
      _
    $region3: #{tpu_custom_call.1} parent=1 // loop_header
      %s21 = sphi 0, %s25
      %p22 = scmp.ge.s32.totalorder %s21, 4
      %s31 = sphi 0, %s33
      %s34 = sphi 0, %s31
      %s35 = sphi 0, %s34
      %s51 = sphi 0, %s35
      %s55 = sphi 0, %s55
      %s57 = sphi 0, %s55
      %s58 = sphi 0, %s57
      %s72 = sphi 0, %s58
      %s76 = sphi 0, %s76
      %s78 = sphi 0, %s76
      %s79 = sphi 0, %s78
      %s93 = sphi 0, %s79
      %s97 = sphi 0, %s97
      %s99 = sphi 0, %s97
      %s100 = sphi 0, %s99
      %s114 = sphi 0, %s100
      %s118 = sphi 0, %s118
      %s120 = sphi 0, %s118
      %s121 = sphi 0, %s120
      %s135 = sphi 0, %s121
      %s139 = sphi 0, %s139
      %s141 = sphi 0, %s139
      %s142 = sphi 0, %s141
      %s156 = sphi 0, %s142
      %s160 = sphi 0, %s160
      %s162 = sphi 0, %s160
      %s163 = sphi 0, %s162
      %s177 = sphi 0, %s163
      %s183 = sphi 0, %s185
      %s186 = sphi 0, %s183
      %s187 = sphi 0, %s186
      %s203 = sphi 0, %s187
    $region4: #{tpu_custom_call.1} parent=1 // loop_header_branch
      %24 = sbr.rel (%p22) target = $region8
    $region5: #{tpu_custom_call.1} parent=1 // loop_body
      %s26 = ssub.s32 %s21, 1
      %s27 = ssub.s32 %s21, 2
      %s28 = sadd.s32 %s21, 1
      %s29 = ssub.s32 %s21, %s28
      %p30 = scmp.eq.s32.totalorder %s29, 0
      %s32 = sadd.s32 %s31, 1
      %s33 = scalar_select %p30, %s31, %s32
      %p36 = pneg %p30
      %p37 = scmp.eq.s32.totalorder %s21, 1
      %p38 = por %p36, %p37
      %p39 = scmp.ne.s32.totalorder %s31, %s34
      %p40 = scmp.eq.s32.totalorder %s21, 0
      %p41 = por %p39, %p40
      %p42 = scmp.ne.s32.totalorder %s31, %s34
      %p43 = scmp.eq.s32.totalorder %s26, 1
      %p44 = por %p42, %p43
      %p45 = scmp.ne.s32.totalorder %s34, %s35
      %p46 = scmp.eq.s32.totalorder %s26, 0
      %p47 = por %p45, %p46
      %p48 = scmp.ne.s32.totalorder %s34, %s35
      %p49 = scmp.eq.s32.totalorder %s27, 1
      %p50 = por %p48, %p49
      %p52 = scmp.ne.s32.totalorder %s35, %s51
      %p53 = scmp.eq.s32.totalorder %s27, 0
      %p54 = por %p52, %p53
      %s56 = sadd.s32 %s55, 1
      %p59 = scmp.eq.s32.totalorder %s21, 1
      %p60 = scmp.ne.s32.totalorder %s55, %s57
      %p61 = scmp.eq.s32.totalorder %s21, 0
      %p62 = por %p60, %p61
      %p63 = scmp.ne.s32.totalorder %s55, %s57
      %p64 = scmp.eq.s32.totalorder %s26, 1
      %p65 = por %p63, %p64
      %p66 = scmp.ne.s32.totalorder %s57, %s58
      %p67 = scmp.eq.s32.totalorder %s26, 0
      %p68 = por %p66, %p67
      %p69 = scmp.ne.s32.totalorder %s57, %s58
      %p70 = scmp.eq.s32.totalorder %s27, 1
      %p71 = por %p69, %p70
      %p73 = scmp.ne.s32.totalorder %s58, %s72
      %p74 = scmp.eq.s32.totalorder %s27, 0
      %p75 = por %p73, %p74
      %s77 = sadd.s32 %s76, 1
      %p80 = scmp.eq.s32.totalorder %s21, 1
      %p81 = scmp.ne.s32.totalorder %s76, %s78
      %p82 = scmp.eq.s32.totalorder %s21, 0
      %p83 = por %p81, %p82
      %p84 = scmp.ne.s32.totalorder %s76, %s78
      %p85 = scmp.eq.s32.totalorder %s26, 1
      %p86 = por %p84, %p85
      %p87 = scmp.ne.s32.totalorder %s78, %s79
      %p88 = scmp.eq.s32.totalorder %s26, 0
      %p89 = por %p87, %p88
      %p90 = scmp.ne.s32.totalorder %s78, %s79
      %p91 = scmp.eq.s32.totalorder %s27, 1
      %p92 = por %p90, %p91
      %p94 = scmp.ne.s32.totalorder %s79, %s93
      %p95 = scmp.eq.s32.totalorder %s27, 0
      %p96 = por %p94, %p95
      %s98 = sadd.s32 %s97, 1
      %p101 = scmp.eq.s32.totalorder %s21, 1
      %p102 = scmp.ne.s32.totalorder %s97, %s99
      %p103 = scmp.eq.s32.totalorder %s21, 0
      %p104 = por %p102, %p103
      %p105 = scmp.ne.s32.totalorder %s97, %s99
      %p106 = scmp.eq.s32.totalorder %s26, 1
      %p107 = por %p105, %p106
      %p108 = scmp.ne.s32.totalorder %s99, %s100
      %p109 = scmp.eq.s32.totalorder %s26, 0
      %p110 = por %p108, %p109
      %p111 = scmp.ne.s32.totalorder %s99, %s100
      %p112 = scmp.eq.s32.totalorder %s27, 1
      %p113 = por %p111, %p112
      %p115 = scmp.ne.s32.totalorder %s100, %s114
      %p116 = scmp.eq.s32.totalorder %s27, 0
      %p117 = por %p115, %p116
      %s119 = sadd.s32 %s118, 1
      %p122 = scmp.eq.s32.totalorder %s21, 1
      %p123 = scmp.ne.s32.totalorder %s118, %s120
      %p124 = scmp.eq.s32.totalorder %s21, 0
      %p125 = por %p123, %p124
      %p126 = scmp.ne.s32.totalorder %s118, %s120
      %p127 = scmp.eq.s32.totalorder %s26, 1
      %p128 = por %p126, %p127
      %p129 = scmp.ne.s32.totalorder %s120, %s121
      %p130 = scmp.eq.s32.totalorder %s26, 0
      %p131 = por %p129, %p130
      %p132 = scmp.ne.s32.totalorder %s120, %s121
      %p133 = scmp.eq.s32.totalorder %s27, 1
      %p134 = por %p132, %p133
      %p136 = scmp.ne.s32.totalorder %s121, %s135
      %p137 = scmp.eq.s32.totalorder %s27, 0
      %p138 = por %p136, %p137
      %s140 = sadd.s32 %s139, 1
      %p143 = scmp.eq.s32.totalorder %s21, 1
      %p144 = scmp.ne.s32.totalorder %s139, %s141
      %p145 = scmp.eq.s32.totalorder %s21, 0
      %p146 = por %p144, %p145
      %p147 = scmp.ne.s32.totalorder %s139, %s141
      %p148 = scmp.eq.s32.totalorder %s26, 1
      %p149 = por %p147, %p148
      %p150 = scmp.ne.s32.totalorder %s141, %s142
      %p151 = scmp.eq.s32.totalorder %s26, 0
      %p152 = por %p150, %p151
      %p153 = scmp.ne.s32.totalorder %s141, %s142
      %p154 = scmp.eq.s32.totalorder %s27, 1
      %p155 = por %p153, %p154
      %p157 = scmp.ne.s32.totalorder %s142, %s156
      %p158 = scmp.eq.s32.totalorder %s27, 0
      %p159 = por %p157, %p158
      %s161 = sadd.s32 %s160, 1
      %p164 = scmp.eq.s32.totalorder %s21, 1
      %p165 = scmp.ne.s32.totalorder %s160, %s162
      %p166 = scmp.eq.s32.totalorder %s21, 0
      %p167 = por %p165, %p166
      %p168 = scmp.ne.s32.totalorder %s160, %s162
      %p169 = scmp.eq.s32.totalorder %s26, 1
      %p170 = por %p168, %p169
      %p171 = scmp.ne.s32.totalorder %s162, %s163
      %p172 = scmp.eq.s32.totalorder %s26, 0
      %p173 = por %p171, %p172
      %p174 = scmp.ne.s32.totalorder %s162, %s163
      %p175 = scmp.eq.s32.totalorder %s27, 1
      %p176 = por %p174, %p175
      %p178 = scmp.ne.s32.totalorder %s163, %s177
      %p179 = scmp.eq.s32.totalorder %s27, 0
      %p180 = por %p178, %p179
      %s181 = ssub.s32 %s21, %s28
      %p182 = scmp.eq.s32.totalorder %s181, 0
      %s184 = sadd.s32 %s183, 1
      %s185 = scalar_select %p182, %s183, %s184
      %p188 = pneg %p182
      %p189 = scmp.eq.s32.totalorder %s21, 1
      %p190 = por %p188, %p189
      %p191 = scmp.ne.s32.totalorder %s183, %s186
      %p192 = scmp.eq.s32.totalorder %s21, 0
      %p193 = por %p191, %p192
      %p194 = scmp.ne.s32.totalorder %s183, %s186
      %p195 = scmp.eq.s32.totalorder %s26, 1
      %p196 = por %p194, %p195
      %p197 = scmp.ne.s32.totalorder %s186, %s187
      %p198 = scmp.eq.s32.totalorder %s26, 0
      %p199 = por %p197, %p198
      %p200 = scmp.ne.s32.totalorder %s186, %s187
      %p201 = scmp.eq.s32.totalorder %s27, 1
      %p202 = por %p200, %p201
      %p204 = scmp.ne.s32.totalorder %s187, %s203
      %p205 = scmp.eq.s32.totalorder %s27, 0
      %p206 = por %p204, %p205
      %p207 = scmp.le.s32.totalorder 1, %s21
      %p208 = scmp.lt.s32.totalorder %s21, 3
      %p209 = pnand %p207, %p208
      %p210 = pneg %p209
      // Predicated region
      $region9: #{tpu_custom_call.1} parent=5 // pred_check
        _
      $region10: #{tpu_custom_call.1} parent=5 // pred_check_branch
        %212 = sbr.rel (%p209) target = $region12
      $region11: #{tpu_custom_call.1} parent=5 // pred_region
        %s213 = ssub.s32 %s21, 1
        // Predicated region
        $region13: #{tpu_custom_call.1} parent=11 // pred_check
          %p214 = pneg %p68
        $region14: #{tpu_custom_call.1} parent=11 // pred_check_branch
          %216 = sbr.rel (%p214) target = $region16
        $region15: #{tpu_custom_call.1} parent=11 // pred_region
          %s218 = ssub.s32 64, 64
          %219 = vsyncadd [#allocation5], %s218
          %s221 = sshll.u32 %s1, 4
          %s222 = int_to_ptr.vmem [resolvable:$true] %s221
          %224 = dma.vmem_to_smem %s222, 64, [#allocation6], [#allocation5]
        $region16: #{tpu_custom_call.1} parent=11 // pred_fallthru
          _
        // Predicated region
        $region17: #{tpu_custom_call.1} parent=11 // pred_check
          %p225 = pneg %p89
        $region18: #{tpu_custom_call.1} parent=11 // pred_check_branch
          %227 = sbr.rel (%p225) target = $region20
        $region19: #{tpu_custom_call.1} parent=11 // pred_region
          %s229 = ssub.s32 16, 16
          %230 = vsyncadd [#allocation8], %s229
          %s232 = sshll.u32 %s2, 4
          %s233 = int_to_ptr.vmem [resolvable:$true] %s232
          %235 = dma.vmem_to_smem %s233, 16, [#allocation7], [#allocation8]
        $region20: #{tpu_custom_call.1} parent=11 // pred_fallthru
          _
        // Predicated region
        $region21: #{tpu_custom_call.1} parent=11 // pred_check
          %p236 = pneg %p110
        $region22: #{tpu_custom_call.1} parent=11 // pred_check_branch
          %238 = sbr.rel (%p236) target = $region24
        $region23: #{tpu_custom_call.1} parent=11 // pred_region
          _
        $region24: #{tpu_custom_call.1} parent=11 // pred_fallthru
          _
        // Predicated region
        $region25: #{tpu_custom_call.1} parent=11 // pred_check
          %p239 = pneg %p131
        $region26: #{tpu_custom_call.1} parent=11 // pred_check_branch
          %241 = sbr.rel (%p239) target = $region28
        $region27: #{tpu_custom_call.1} parent=11 // pred_region
          _
        $region28: #{tpu_custom_call.1} parent=11 // pred_fallthru
          _
        // Predicated region
        $region29: #{tpu_custom_call.1} parent=11 // pred_check
          %p242 = pneg %p152
        $region30: #{tpu_custom_call.1} parent=11 // pred_check_branch
          %244 = sbr.rel (%p242) target = $region32
        $region31: #{tpu_custom_call.1} parent=11 // pred_region
          _
        $region32: #{tpu_custom_call.1} parent=11 // pred_fallthru
          _
        // Predicated region
        $region33: #{tpu_custom_call.1} parent=11 // pred_check
          %p245 = pneg %p173
        $region34: #{tpu_custom_call.1} parent=11 // pred_check_branch
          %247 = sbr.rel (%p245) target = $region36
        $region35: #{tpu_custom_call.1} parent=11 // pred_region
          _
        $region36: #{tpu_custom_call.1} parent=11 // pred_fallthru
          _
      $region12: #{tpu_custom_call.1} parent=5 // pred_fallthru
        _
      %p248 = scmp.lt.s32.totalorder %s21, 2
      // Predicated region
      $region37: #{tpu_custom_call.1} parent=5 // pred_check
        %p249 = pneg %p248
      $region38: #{tpu_custom_call.1} parent=5 // pred_check_branch
        %251 = sbr.rel (%p249) target = $region40
      $region39: #{tpu_custom_call.1} parent=5 // pred_region
        // Predicated region
        $region41: #{tpu_custom_call.1} parent=39 // pred_check
          %p252 = pneg %p41
        $region42: #{tpu_custom_call.1} parent=39 // pred_check_branch
          %254 = sbr.rel (%p252) target = $region44
        $region43: #{tpu_custom_call.1} parent=39 // pred_region
          %s255 = sand.u32 %s31, 1
          %s256 = scalar_lea.sflag [#allocation3], %s255
          %s257 = sand.u32 %s31, 1
          %s258 = smul.addr %s257, 96
          %s259 = scalar_lea.vmem [#allocation2], %s258
          %s261 = ssub.s32 1536, 1536
          %262 = vsyncadd %s256, %s261
          %s263 = smul.addr %s21, 12
          %s264 = smul.addr %s263, 128
          %s265 = scalar_lea.hbm %s0, %s264
          %s266 = sshll.u32 %s259, 4
          %s267 = int_to_ptr.vmem [resolvable:$true] %s266
          %272 = dma.hbm_to_vmem [thread:$0]  %s265, 1536, %s267, %s256, 128, 128, 8
        $region44: #{tpu_custom_call.1} parent=39 // pred_fallthru
          _
      $region40: #{tpu_custom_call.1} parent=5 // pred_fallthru
        _
      %p273 = scmp.le.s32.totalorder 1, %s21
      %p274 = scmp.lt.s32.totalorder %s21, 3
      %p275 = pnand %p273, %p274
      %p276 = pneg %p275
      // Predicated region
      $region45: #{tpu_custom_call.1} parent=5 // pred_check
        _
      $region46: #{tpu_custom_call.1} parent=5 // pred_check_branch
        %278 = sbr.rel (%p275) target = $region48
      $region47: #{tpu_custom_call.1} parent=5 // pred_region
        %s279 = ssub.s32 %s21, 1
        %s280 = sand.u32 %s34, 1
        %s281 = scalar_lea.sflag [#allocation3], %s280
        %s282 = sand.u32 %s34, 1
        %s283 = smul.addr %s282, 96
        %s284 = scalar_lea.vmem [#allocation2], %s283
        // Predicated region
        $region49: #{tpu_custom_call.1} parent=47 // pred_check
          %p285 = pneg %p47
        $region50: #{tpu_custom_call.1} parent=47 // pred_check_branch
          %287 = sbr.rel (%p285) target = $region52
        $region51: #{tpu_custom_call.1} parent=47 // pred_region
          %288 = dma.done %s281, 1536
        $region52: #{tpu_custom_call.1} parent=47 // pred_fallthru
          _
        // Predicated region
        $region53: #{tpu_custom_call.1} parent=47 // pred_check
          %p289 = pneg %p68
        $region54: #{tpu_custom_call.1} parent=47 // pred_check_branch
          %291 = sbr.rel (%p289) target = $region56
        $region55: #{tpu_custom_call.1} parent=47 // pred_region
          %292 = dma.done [#allocation5], 64
        $region56: #{tpu_custom_call.1} parent=47 // pred_fallthru
          _
        // Predicated region
        $region57: #{tpu_custom_call.1} parent=47 // pred_check
          %p293 = pneg %p89
        $region58: #{tpu_custom_call.1} parent=47 // pred_check_branch
          %295 = sbr.rel (%p293) target = $region60
        $region59: #{tpu_custom_call.1} parent=47 // pred_region
          %296 = dma.done [#allocation8], 16
        $region60: #{tpu_custom_call.1} parent=47 // pred_fallthru
          _
        %297 = sfence
        %s298 = sand.u32 %s34, 1
        %s299 = scalar_lea.sflag [#allocation3], %s298
        %s300 = sand.u32 %s34, 1
        %s301 = smul.addr %s300, 96
        %s302 = scalar_lea.vmem [#allocation2], %s301
        %p303 = pneg %p47
        %p304 = pneg %p44
        %p305 = pneg %p68
        %p306 = pneg %p65
        %p307 = pneg %p89
        %p308 = pneg %p86
        %p309 = pneg %p110
        %p310 = pneg %p107
        %p311 = pneg %p131
        %p312 = pneg %p128
        %p313 = pneg %p152
        %p314 = pneg %p149
        %p315 = pneg %p173
        %p316 = pneg %p170
        %p317 = pneg %p199
        %p318 = pneg %p196
        %s319 = sand.u32 %s186, 1
        %s320 = scalar_lea.sflag [#allocation4], %s319
        %s321 = sand.u32 %s186, 1
        %s322 = smul.addr %s321, 192
        %s323 = scalar_lea.vmem [#allocation9], %s322
        %v324 = vld [vmem:[%s284] sm:$0xff]
        %v325 = vld [vmem:[%s284 + $0x8] sm:$0xff]
        %v326 = vld [vmem:[%s284 + $0x10] sm:$0xff]
        %s327 = scalar_lea.vmem %s284, 24 [#allocation2]
        %v328 = vld [vmem:[%s327] sm:$0xff]
        %v329 = vld [vmem:[%s327 + $0x8] sm:$0xff]
        %v330 = vld [vmem:[%s327 + $0x10] sm:$0xff]
        %s331 = scalar_lea.vmem %s284, 48 [#allocation2]
        %v332 = vld [vmem:[%s331] sm:$0xff]
        %v333 = vld [vmem:[%s331 + $0x8] sm:$0xff]
        %v334 = vld [vmem:[%s331 + $0x10] sm:$0xff]
        %s335 = scalar_lea.vmem %s284, 72 [#allocation2]
        %v336 = vld [vmem:[%s335] sm:$0xff]
        %v337 = vld [vmem:[%s335 + $0x8] sm:$0xff]
        %v338 = vld [vmem:[%s335 + $0x10] sm:$0xff]
        %v339 = vld [vmem:[%s3] sm:$0xff]
        %v340 = vld [vmem:[%s3 + $0x8] sm:$0xff]
        %v341 = vld [vmem:[%s3 + $0x10] sm:$0xff]
        %v342 = vld [vmem:[%s4] sm:$0xff]
        %v343 = vld [vmem:[%s4 + $0x8] sm:$0xff]
        %v344 = vld [vmem:[%s4 + $0x10] sm:$0xff]
        %v345 = vld [vmem:[%s4 + $0x18] sm:$0xff]
        %v346 = vld [vmem:[%s4 + $0x20] sm:$0xff]
        %v347 = vld [vmem:[%s4 + $0x28] sm:$0xff]
        %v348 = vld [vmem:[%s4 + $0x30] sm:$0xff]
        %v349 = vld [vmem:[%s4 + $0x38] sm:$0xff]
        %v350 = vld [vmem:[%s4 + $0x40] sm:$0xff]
        %v351 = vld [vmem:[%s4 + $0x48] sm:$0xff]
        %v352 = vld [vmem:[%s4 + $0x50] sm:$0xff]
        %v353 = vld [vmem:[%s4 + $0x58] sm:$0xff]
        %v354 = vld [vmem:[%s4 + $0x60] sm:$0xff]
        %v355 = vld [vmem:[%s4 + $0x68] sm:$0xff]
        %v356 = vld [vmem:[%s4 + $0x70] sm:$0xff]
        %v357 = vld [vmem:[%s4 + $0x78] sm:$0xff]
        %v358 = vld [vmem:[%s5] sm:$0xff]
        %v359 = vld [vmem:[%s6] sm:$0xff]
        %v360 = vld [vmem:[%s6 + $0x8] sm:$0xff]
        %v361 = vld [vmem:[%s6 + $0x10] sm:$0xff]
        %s362 = sld [smem:[#allocation6]]
        %v363 = vstv %s362
        %v364 = vmul.f32 %v324, %v363
        %v365 = vmul.f32 %v325, %v363
        %v366 = vmul.f32 %v326, %v363
        %s367 = sld [smem:[#allocation6 + $0x80]]
        %v368 = vstv %s367
        %v369 = vmul.f32 %v328, %v368
        %v370 = vmul.f32 %v329, %v368
        %v371 = vmul.f32 %v330, %v368
        %v372 = vadd.f32 %v364, %v369
        %v373 = vadd.f32 %v365, %v370
        %v374 = vadd.f32 %v366, %v371
        %s375 = sld [smem:[#allocation6 + $0x100]]
        %v376 = vstv %s375
        %v377 = vmul.f32 %v332, %v376
        %v378 = vmul.f32 %v333, %v376
        %v379 = vmul.f32 %v334, %v376
        %v380 = vadd.f32 %v372, %v377
        %v381 = vadd.f32 %v373, %v378
        %v382 = vadd.f32 %v374, %v379
        %s383 = sld [smem:[#allocation6 + $0x180]]
        %v384 = vstv %s383
        %v385 = vmul.f32 %v336, %v384
        %v386 = vmul.f32 %v337, %v384
        %v387 = vmul.f32 %v338, %v384
        %v388 = vadd.f32 %v380, %v385
        %v389 = vadd.f32 %v381, %v386
        %v390 = vadd.f32 %v382, %v387
        %s391 = sld [smem:[#allocation7]]
        %v392 = vstv %s391
        %v393 = vadd.f32 %v388, %v392
        %v394 = vadd.f32 %v389, %v392
        %v395 = vadd.f32 %v390, %v392
        %v396 = vmax.f32 %v393, 0.0
        %v397 = vmax.f32 %v394, 0.0
        %v398 = vmax.f32 %v395, 0.0
        %399 = vmatprep.subr.mxu0 0.0
        %400 = vmatpush1.msra.mxu0 %v357
        %401 = vmatprep.subr.mxu0 0.0
        %402 = vmatpush1.msra.mxu0 %v356
        %403 = vmatprep.subr.mxu0 0.0
        %404 = vmatpush1.msra.mxu0 %v355
        %405 = vmatprep.subr.mxu0 0.0
        %406 = vmatpush1.msra.mxu0 %v354
        %407 = vmatprep.subr.mxu0 0.0
        %408 = vmatpush1.msra.mxu0 %v353
        %409 = vmatprep.subr.mxu0 0.0
        %410 = vmatpush1.msra.mxu0 %v352
        %411 = vmatprep.subr.mxu0 0.0
        %412 = vmatpush1.msra.mxu0 %v351
        %413 = vmatprep.subr.mxu0 0.0
        %414 = vmatpush1.msra.mxu0 %v350
        %415 = vmatprep.subr.mxu0 0.0
        %416 = vmatpush1.msra.mxu0 %v349
        %417 = vmatprep.subr.mxu0 0.0
        %418 = vmatpush1.msra.mxu0 %v348
        %419 = vmatprep.subr.mxu0 0.0
        %420 = vmatpush1.msra.mxu0 %v347
        %421 = vmatprep.subr.mxu0 0.0
        %422 = vmatpush1.msra.mxu0 %v346
        %423 = vmatprep.subr.mxu0 0.0
        %424 = vmatpush1.msra.mxu0 %v345
        %425 = vmatprep.subr.mxu0 0.0
        %426 = vmatpush1.msra.mxu0 %v344
        %427 = vmatprep.subr.mxu0 0.0
        %428 = vmatpush1.msra.mxu0 %v343
        %429 = vmatprep.subr.mxu0 0.0
        %430 = vmatpush1.msra.mxu0 %v342
        %431 = vmatprep.subr.mxu0 0.0
        %432 = vmatpush2.msra.mxu0 0.0
        %433 = vmatprep.subr.mxu0 0.0
        %434 = vmatpush2.msra.mxu0 0.0
        %435 = vmatprep.subr.mxu0 0.0
        %436 = vmatpush2.msra.mxu0 0.0
        %437 = vmatprep.subr.mxu0 0.0
        %438 = vmatpush2.msra.mxu0 0.0
        %439 = vmatprep.subr.mxu0 0.0
        %440 = vmatpush2.msra.mxu0 0.0
        %441 = vmatprep.subr.mxu0 0.0
        %442 = vmatpush2.msra.mxu0 0.0
        %443 = vmatprep.subr.mxu0 0.0
        %444 = vmatpush2.msra.mxu0 0.0
        %445 = vmatprep.subr.mxu0 0.0
        %446 = vmatpush2.msra.mxu0 0.0
        %447 = vmatprep.subr.mxu0 0.0
        %448 = vmatpush2.msra.mxu0 0.0
        %449 = vmatprep.subr.mxu0 0.0
        %450 = vmatpush2.msra.mxu0 0.0
        %451 = vmatprep.subr.mxu0 0.0
        %452 = vmatpush2.msra.mxu0 0.0
        %453 = vmatprep.subr.mxu0 0.0
        %454 = vmatpush2.msra.mxu0 0.0
        %455 = vmatprep.subr.mxu0 0.0
        %456 = vmatpush2.msra.mxu0 0.0
        %457 = vmatprep.subr.mxu0 0.0
        %458 = vmatpush2.msra.mxu0 0.0
        %459 = vmatprep.subr.mxu0 0.0
        %460 = vmatpush2.msra.mxu0 0.0
        %461 = vmatprep.subr.mxu0 0.0
        %462 = vmatpush2.msra.mxu0 0.0
        %463 = vmatprep.mubr.f32.mxu0 0.0
        %464 = vmatmul.mubr.f32.gmra.mxu0 %v396
        %v465 = vpop.f32.mrf.mxu0
        %v466 = vadd.f32 0.0, %v465
        %v467 = vpop.f32.mrf.mxu0
        %468 = vmatprep.mubr.f32.mxu0 0.0
        %469 = vmatmul.mubr.f32.gmra.mxu0 %v397
        %v470 = vpop.f32.mrf.mxu0
        %v471 = vadd.f32 0.0, %v470
        %v472 = vpop.f32.mrf.mxu0
        %473 = vmatprep.mubr.f32.mxu0 0.0
        %474 = vmatmul.mubr.f32.gmra.mxu0 %v398
        %v475 = vpop.f32.mrf.mxu0
        %v476 = vadd.f32 0.0, %v475
        %v477 = vpop.f32.mrf.mxu0
        %478 = vdwg.mxu0
        %vm479 = vcmask 195584
        %v481 = vsel %vm479, %v339, 0
        %v484 = vsel %vm479, %v340, 0
        %v487 = vsel %vm479, %v341, 0
        %489 = vmatprep.subr.mxu0 0.0
        %490 = vmatpush1.msra.mxu0 0.0
        %491 = vmatprep.subr.mxu0 0.0
        %492 = vmatpush1.msra.mxu0 0.0
        %493 = vmatprep.subr.mxu0 0.0
        %494 = vmatpush1.msra.mxu0 0.0
        %495 = vmatprep.subr.mxu0 0.0
        %496 = vmatpush1.msra.mxu0 0.0
        %497 = vmatprep.subr.mxu0 0.0
        %498 = vmatpush1.msra.mxu0 0.0
        %499 = vmatprep.subr.mxu0 0.0
        %500 = vmatpush1.msra.mxu0 0.0
        %501 = vmatprep.subr.mxu0 0.0
        %502 = vmatpush1.msra.mxu0 0.0
        %503 = vmatprep.subr.mxu0 0.0
        %504 = vmatpush1.msra.mxu0 0.0
        %505 = vmatprep.subr.mxu0 0.0
        %506 = vmatpush1.msra.mxu0 0.0
        %507 = vmatprep.subr.mxu0 0.0
        %508 = vmatpush1.msra.mxu0 0.0
        %509 = vmatprep.subr.mxu0 0.0
        %510 = vmatpush1.msra.mxu0 0.0
        %511 = vmatprep.subr.mxu0 0.0
        %512 = vmatpush1.msra.mxu0 0.0
        %513 = vmatprep.subr.mxu0 0.0
        %514 = vmatpush1.msra.mxu0 0.0
        %515 = vmatprep.subr.mxu0 0.0
        %516 = vmatpush1.msra.mxu0 %v476
        %517 = vmatprep.subr.mxu0 0.0
        %518 = vmatpush1.msra.mxu0 %v471
        %519 = vmatprep.subr.mxu0 0.0
        %520 = vmatpush1.msra.mxu0 %v466
        %521 = vmatprep.subr.mxu0 0.0
        %522 = vmatpush2.msra.mxu0 0.0
        %523 = vmatprep.subr.mxu0 0.0
        %524 = vmatpush2.msra.mxu0 0.0
        %525 = vmatprep.subr.mxu0 0.0
        %526 = vmatpush2.msra.mxu0 0.0
        %527 = vmatprep.subr.mxu0 0.0
        %528 = vmatpush2.msra.mxu0 0.0
        %529 = vmatprep.subr.mxu0 0.0
        %530 = vmatpush2.msra.mxu0 0.0
        %531 = vmatprep.subr.mxu0 0.0
        %532 = vmatpush2.msra.mxu0 0.0
        %533 = vmatprep.subr.mxu0 0.0
        %534 = vmatpush2.msra.mxu0 0.0
        %535 = vmatprep.subr.mxu0 0.0
        %536 = vmatpush2.msra.mxu0 0.0
        %537 = vmatprep.subr.mxu0 0.0
        %538 = vmatpush2.msra.mxu0 0.0
        %539 = vmatprep.subr.mxu0 0.0
        %540 = vmatpush2.msra.mxu0 0.0
        %541 = vmatprep.subr.mxu0 0.0
        %542 = vmatpush2.msra.mxu0 0.0
        %543 = vmatprep.subr.mxu0 0.0
        %544 = vmatpush2.msra.mxu0 0.0
        %545 = vmatprep.subr.mxu0 0.0
        %546 = vmatpush2.msra.mxu0 0.0
        %547 = vmatprep.subr.mxu0 0.0
        %548 = vmatpush2.msra.mxu0 0.0
        %549 = vmatprep.subr.mxu0 0.0
        %550 = vmatpush2.msra.mxu0 0.0
        %551 = vmatprep.subr.mxu0 0.0
        %552 = vmatpush2.msra.mxu0 0.0
        %553 = vmatprep.mubr.f32.mxu0 0.0
        %554 = vmatmul.mubr.f32.gmra.mxu0 %v481
        %v555 = vpop.f32.mrf.mxu0
        %v556 = vadd.f32 0.0, %v555
        %v557 = vpop.f32.mrf.mxu0
        %558 = vmatprep.mubr.f32.mxu0 0.0
        %559 = vmatmul.mubr.f32.gmra.mxu0 %v484
        %v560 = vpop.f32.mrf.mxu0
        %v561 = vadd.f32 0.0, %v560
        %v562 = vpop.f32.mrf.mxu0
        %563 = vmatprep.mubr.f32.mxu0 0.0
        %564 = vmatmul.mubr.f32.gmra.mxu0 %v487
        %v565 = vpop.f32.mrf.mxu0
        %v566 = vadd.f32 0.0, %v565
        %v567 = vpop.f32.mrf.mxu0
        %568 = vdwg.mxu0
        %vm569 = vcmask 64512
        %v571 = vsel %vm569, %v556, 0
        %v574 = vsel %vm569, %v561, 0
        %v577 = vsel %vm569, %v566, 0
        %579 = vmatprep.subr.mxu0 0.0
        %580 = vmatpush1.msra.mxu0 0.0
        %581 = vmatprep.subr.mxu0 0.0
        %582 = vmatpush1.msra.mxu0 0.0
        %583 = vmatprep.subr.mxu0 0.0
        %584 = vmatpush1.msra.mxu0 0.0
        %585 = vmatprep.subr.mxu0 0.0
        %586 = vmatpush1.msra.mxu0 0.0
        %587 = vmatprep.subr.mxu0 0.0
        %588 = vmatpush1.msra.mxu0 0.0
        %589 = vmatprep.subr.mxu0 0.0
        %590 = vmatpush1.msra.mxu0 0.0
        %591 = vmatprep.subr.mxu0 0.0
        %592 = vmatpush1.msra.mxu0 0.0
        %593 = vmatprep.subr.mxu0 0.0
        %594 = vmatpush1.msra.mxu0 0.0
        %595 = vmatprep.subr.mxu0 0.0
        %596 = vmatpush1.msra.mxu0 0.0
        %597 = vmatprep.subr.mxu0 0.0
        %598 = vmatpush1.msra.mxu0 0.0
        %599 = vmatprep.subr.mxu0 0.0
        %600 = vmatpush1.msra.mxu0 0.0
        %601 = vmatprep.subr.mxu0 0.0
        %602 = vmatpush1.msra.mxu0 0.0
        %603 = vmatprep.subr.mxu0 0.0
        %604 = vmatpush1.msra.mxu0 0.0
        %605 = vmatprep.subr.mxu0 0.0
        %606 = vmatpush1.msra.mxu0 0.0
        %607 = vmatprep.subr.mxu0 0.0
        %608 = vmatpush1.msra.mxu0 0.0
        %609 = vmatprep.subr.mxu0 0.0
        %610 = vmatpush1.msra.mxu0 %v358
        %611 = vmatprep.subr.mxu0 0.0
        %612 = vmatpush2.msra.mxu0 0.0
        %613 = vmatprep.subr.mxu0 0.0
        %614 = vmatpush2.msra.mxu0 0.0
        %615 = vmatprep.subr.mxu0 0.0
        %616 = vmatpush2.msra.mxu0 0.0
        %617 = vmatprep.subr.mxu0 0.0
        %618 = vmatpush2.msra.mxu0 0.0
        %619 = vmatprep.subr.mxu0 0.0
        %620 = vmatpush2.msra.mxu0 0.0
        %621 = vmatprep.subr.mxu0 0.0
        %622 = vmatpush2.msra.mxu0 0.0
        %623 = vmatprep.subr.mxu0 0.0
        %624 = vmatpush2.msra.mxu0 0.0
        %625 = vmatprep.subr.mxu0 0.0
        %626 = vmatpush2.msra.mxu0 0.0
        %627 = vmatprep.subr.mxu0 0.0
        %628 = vmatpush2.msra.mxu0 0.0
        %629 = vmatprep.subr.mxu0 0.0
        %630 = vmatpush2.msra.mxu0 0.0
        %631 = vmatprep.subr.mxu0 0.0
        %632 = vmatpush2.msra.mxu0 0.0
        %633 = vmatprep.subr.mxu0 0.0
        %634 = vmatpush2.msra.mxu0 0.0
        %635 = vmatprep.subr.mxu0 0.0
        %636 = vmatpush2.msra.mxu0 0.0
        %637 = vmatprep.subr.mxu0 0.0
        %638 = vmatpush2.msra.mxu0 0.0
        %639 = vmatprep.subr.mxu0 0.0
        %640 = vmatpush2.msra.mxu0 0.0
        %641 = vmatprep.subr.mxu0 0.0
        %642 = vmatpush2.msra.mxu0 0.0
        %643 = vmatprep.mubr.f32.mxu0 0.0
        %644 = vmatmul.mubr.f32.gmra.mxu0 %v571
        %v645 = vpop.f32.mrf.mxu0
        %v646 = vadd.f32 0.0, %v645
        %v647 = vpop.f32.mrf.mxu0
        %648 = vmatprep.mubr.f32.mxu0 0.0
        %649 = vmatmul.mubr.f32.gmra.mxu0 %v574
        %v650 = vpop.f32.mrf.mxu0
        %v651 = vadd.f32 0.0, %v650
        %v652 = vpop.f32.mrf.mxu0
        %653 = vmatprep.mubr.f32.mxu0 0.0
        %654 = vmatmul.mubr.f32.gmra.mxu0 %v577
        %v655 = vpop.f32.mrf.mxu0
        %v656 = vadd.f32 0.0, %v655
        %v657 = vpop.f32.mrf.mxu0
        %658 = vdwg.mxu0
        %v659 = vmul.f32 %v646, %v359
        %v660 = vmul.f32 %v651, %v360
        %v661 = vmul.f32 %v656, %v361
        %v662 = vsub.f32 %v396, %v659
        %v663 = vsub.f32 %v397, %v660
        %v664 = vsub.f32 %v398, %v661
        %665 = vst [vmem:[%s323] sm:$0xff] %v662
        %666 = vst [vmem:[%s323 + $0x8] sm:$0xff] %v663
        %667 = vst [vmem:[%s323 + $0x10] sm:$0xff] %v664
        %s668 = sld [smem:[#allocation6 + $0x1]]
        %v669 = vstv %s668
        %v670 = vmul.f32 %v324, %v669
        %v671 = vmul.f32 %v325, %v669
        %v672 = vmul.f32 %v326, %v669
        %s673 = sld [smem:[#allocation6 + $0x81]]
        %v674 = vstv %s673
        %v675 = vmul.f32 %v328, %v674
        %v676 = vmul.f32 %v329, %v674
        %v677 = vmul.f32 %v330, %v674
        %v678 = vadd.f32 %v670, %v675
        %v679 = vadd.f32 %v671, %v676
        %v680 = vadd.f32 %v672, %v677
        %s681 = sld [smem:[#allocation6 + $0x101]]
        %v682 = vstv %s681
        %v683 = vmul.f32 %v332, %v682
        %v684 = vmul.f32 %v333, %v682
        %v685 = vmul.f32 %v334, %v682
        %v686 = vadd.f32 %v678, %v683
        %v687 = vadd.f32 %v679, %v684
        %v688 = vadd.f32 %v680, %v685
        %s689 = sld [smem:[#allocation6 + $0x181]]
        %v690 = vstv %s689
        %v691 = vmul.f32 %v336, %v690
        %v692 = vmul.f32 %v337, %v690
        %v693 = vmul.f32 %v338, %v690
        %v694 = vadd.f32 %v686, %v691
        %v695 = vadd.f32 %v687, %v692
        %v696 = vadd.f32 %v688, %v693
        %s697 = sld [smem:[#allocation7 + $0x1]]
        %v698 = vstv %s697
        %v699 = vadd.f32 %v694, %v698
        %v700 = vadd.f32 %v695, %v698
        %v701 = vadd.f32 %v696, %v698
        %v702 = vmax.f32 %v699, 0.0
        %v703 = vmax.f32 %v700, 0.0
        %v704 = vmax.f32 %v701, 0.0
        %705 = vmatprep.subr.mxu0 0.0
        %706 = vmatpush1.msra.mxu0 %v357
        %707 = vmatprep.subr.mxu0 0.0
        %708 = vmatpush1.msra.mxu0 %v356
        %709 = vmatprep.subr.mxu0 0.0
        %710 = vmatpush1.msra.mxu0 %v355
        %711 = vmatprep.subr.mxu0 0.0
        %712 = vmatpush1.msra.mxu0 %v354
        %713 = vmatprep.subr.mxu0 0.0
        %714 = vmatpush1.msra.mxu0 %v353
        %715 = vmatprep.subr.mxu0 0.0
        %716 = vmatpush1.msra.mxu0 %v352
        %717 = vmatprep.subr.mxu0 0.0
        %718 = vmatpush1.msra.mxu0 %v351
        %719 = vmatprep.subr.mxu0 0.0
        %720 = vmatpush1.msra.mxu0 %v350
        %721 = vmatprep.subr.mxu0 0.0
        %722 = vmatpush1.msra.mxu0 %v349
        %723 = vmatprep.subr.mxu0 0.0
        %724 = vmatpush1.msra.mxu0 %v348
        %725 = vmatprep.subr.mxu0 0.0
        %726 = vmatpush1.msra.mxu0 %v347
        %727 = vmatprep.subr.mxu0 0.0
        %728 = vmatpush1.msra.mxu0 %v346
        %729 = vmatprep.subr.mxu0 0.0
        %730 = vmatpush1.msra.mxu0 %v345
        %731 = vmatprep.subr.mxu0 0.0
        %732 = vmatpush1.msra.mxu0 %v344
        %733 = vmatprep.subr.mxu0 0.0
        %734 = vmatpush1.msra.mxu0 %v343
        %735 = vmatprep.subr.mxu0 0.0
        %736 = vmatpush1.msra.mxu0 %v342
        %737 = vmatprep.subr.mxu0 0.0
        %738 = vmatpush2.msra.mxu0 0.0
        %739 = vmatprep.subr.mxu0 0.0
        %740 = vmatpush2.msra.mxu0 0.0
        %741 = vmatprep.subr.mxu0 0.0
        %742 = vmatpush2.msra.mxu0 0.0
        %743 = vmatprep.subr.mxu0 0.0
        %744 = vmatpush2.msra.mxu0 0.0
        %745 = vmatprep.subr.mxu0 0.0
        %746 = vmatpush2.msra.mxu0 0.0
        %747 = vmatprep.subr.mxu0 0.0
        %748 = vmatpush2.msra.mxu0 0.0
        %749 = vmatprep.subr.mxu0 0.0
        %750 = vmatpush2.msra.mxu0 0.0
        %751 = vmatprep.subr.mxu0 0.0
        %752 = vmatpush2.msra.mxu0 0.0
        %753 = vmatprep.subr.mxu0 0.0
        %754 = vmatpush2.msra.mxu0 0.0
        %755 = vmatprep.subr.mxu0 0.0
        %756 = vmatpush2.msra.mxu0 0.0
        %757 = vmatprep.subr.mxu0 0.0
        %758 = vmatpush2.msra.mxu0 0.0
        %759 = vmatprep.subr.mxu0 0.0
        %760 = vmatpush2.msra.mxu0 0.0
        %761 = vmatprep.subr.mxu0 0.0
        %762 = vmatpush2.msra.mxu0 0.0
        %763 = vmatprep.subr.mxu0 0.0
        %764 = vmatpush2.msra.mxu0 0.0
        %765 = vmatprep.subr.mxu0 0.0
        %766 = vmatpush2.msra.mxu0 0.0
        %767 = vmatprep.subr.mxu0 0.0
        %768 = vmatpush2.msra.mxu0 0.0
        %769 = vmatprep.mubr.f32.mxu0 0.0
        %770 = vmatmul.mubr.f32.gmra.mxu0 %v702
        %v771 = vpop.f32.mrf.mxu0
        %v772 = vadd.f32 0.0, %v771
        %v773 = vpop.f32.mrf.mxu0
        %774 = vmatprep.mubr.f32.mxu0 0.0
        %775 = vmatmul.mubr.f32.gmra.mxu0 %v703
        %v776 = vpop.f32.mrf.mxu0
        %v777 = vadd.f32 0.0, %v776
        %v778 = vpop.f32.mrf.mxu0
        %779 = vmatprep.mubr.f32.mxu0 0.0
        %780 = vmatmul.mubr.f32.gmra.mxu0 %v704
        %v781 = vpop.f32.mrf.mxu0
        %v782 = vadd.f32 0.0, %v781
        %v783 = vpop.f32.mrf.mxu0
        %784 = vdwg.mxu0
        %785 = vmatprep.subr.mxu0 0.0
        %786 = vmatpush1.msra.mxu0 0.0
        %787 = vmatprep.subr.mxu0 0.0
        %788 = vmatpush1.msra.mxu0 0.0
        %789 = vmatprep.subr.mxu0 0.0
        %790 = vmatpush1.msra.mxu0 0.0
        %791 = vmatprep.subr.mxu0 0.0
        %792 = vmatpush1.msra.mxu0 0.0
        %793 = vmatprep.subr.mxu0 0.0
        %794 = vmatpush1.msra.mxu0 0.0
        %795 = vmatprep.subr.mxu0 0.0
        %796 = vmatpush1.msra.mxu0 0.0
        %797 = vmatprep.subr.mxu0 0.0
        %798 = vmatpush1.msra.mxu0 0.0
        %799 = vmatprep.subr.mxu0 0.0
        %800 = vmatpush1.msra.mxu0 0.0
        %801 = vmatprep.subr.mxu0 0.0
        %802 = vmatpush1.msra.mxu0 0.0
        %803 = vmatprep.subr.mxu0 0.0
        %804 = vmatpush1.msra.mxu0 0.0
        %805 = vmatprep.subr.mxu0 0.0
        %806 = vmatpush1.msra.mxu0 0.0
        %807 = vmatprep.subr.mxu0 0.0
        %808 = vmatpush1.msra.mxu0 0.0
        %809 = vmatprep.subr.mxu0 0.0
        %810 = vmatpush1.msra.mxu0 0.0
        %811 = vmatprep.subr.mxu0 0.0
        %812 = vmatpush1.msra.mxu0 %v782
        %813 = vmatprep.subr.mxu0 0.0
        %814 = vmatpush1.msra.mxu0 %v777
        %815 = vmatprep.subr.mxu0 0.0
        %816 = vmatpush1.msra.mxu0 %v772
        %817 = vmatprep.subr.mxu0 0.0
        %818 = vmatpush2.msra.mxu0 0.0
        %819 = vmatprep.subr.mxu0 0.0
        %820 = vmatpush2.msra.mxu0 0.0
        %821 = vmatprep.subr.mxu0 0.0
        %822 = vmatpush2.msra.mxu0 0.0
        %823 = vmatprep.subr.mxu0 0.0
        %824 = vmatpush2.msra.mxu0 0.0
        %825 = vmatprep.subr.mxu0 0.0
        %826 = vmatpush2.msra.mxu0 0.0
        %827 = vmatprep.subr.mxu0 0.0
        %828 = vmatpush2.msra.mxu0 0.0
        %829 = vmatprep.subr.mxu0 0.0
        %830 = vmatpush2.msra.mxu0 0.0
        %831 = vmatprep.subr.mxu0 0.0
        %832 = vmatpush2.msra.mxu0 0.0
        %833 = vmatprep.subr.mxu0 0.0
        %834 = vmatpush2.msra.mxu0 0.0
        %835 = vmatprep.subr.mxu0 0.0
        %836 = vmatpush2.msra.mxu0 0.0
        %837 = vmatprep.subr.mxu0 0.0
        %838 = vmatpush2.msra.mxu0 0.0
        %839 = vmatprep.subr.mxu0 0.0
        %840 = vmatpush2.msra.mxu0 0.0
        %841 = vmatprep.subr.mxu0 0.0
        %842 = vmatpush2.msra.mxu0 0.0
        %843 = vmatprep.subr.mxu0 0.0
        %844 = vmatpush2.msra.mxu0 0.0
        %845 = vmatprep.subr.mxu0 0.0
        %846 = vmatpush2.msra.mxu0 0.0
        %847 = vmatprep.subr.mxu0 0.0
        %848 = vmatpush2.msra.mxu0 0.0
        %849 = vmatprep.mubr.f32.mxu0 0.0
        %850 = vmatmul.mubr.f32.gmra.mxu0 %v481
        %v851 = vpop.f32.mrf.mxu0
        %v852 = vadd.f32 0.0, %v851
        %v853 = vpop.f32.mrf.mxu0
        %854 = vmatprep.mubr.f32.mxu0 0.0
        %855 = vmatmul.mubr.f32.gmra.mxu0 %v484
        %v856 = vpop.f32.mrf.mxu0
        %v857 = vadd.f32 0.0, %v856
        %v858 = vpop.f32.mrf.mxu0
        %859 = vmatprep.mubr.f32.mxu0 0.0
        %860 = vmatmul.mubr.f32.gmra.mxu0 %v487
        %v861 = vpop.f32.mrf.mxu0
        %v862 = vadd.f32 0.0, %v861
        %v863 = vpop.f32.mrf.mxu0
        %864 = vdwg.mxu0
        %v866 = vsel %vm569, %v852, 0
        %v869 = vsel %vm569, %v857, 0
        %v872 = vsel %vm569, %v862, 0
        %874 = vmatprep.subr.mxu0 0.0
        %875 = vmatpush1.msra.mxu0 0.0
        %876 = vmatprep.subr.mxu0 0.0
        %877 = vmatpush1.msra.mxu0 0.0
        %878 = vmatprep.subr.mxu0 0.0
        %879 = vmatpush1.msra.mxu0 0.0
        %880 = vmatprep.subr.mxu0 0.0
        %881 = vmatpush1.msra.mxu0 0.0
        %882 = vmatprep.subr.mxu0 0.0
        %883 = vmatpush1.msra.mxu0 0.0
        %884 = vmatprep.subr.mxu0 0.0
        %885 = vmatpush1.msra.mxu0 0.0
        %886 = vmatprep.subr.mxu0 0.0
        %887 = vmatpush1.msra.mxu0 0.0
        %888 = vmatprep.subr.mxu0 0.0
        %889 = vmatpush1.msra.mxu0 0.0
        %890 = vmatprep.subr.mxu0 0.0
        %891 = vmatpush1.msra.mxu0 0.0
        %892 = vmatprep.subr.mxu0 0.0
        %893 = vmatpush1.msra.mxu0 0.0
        %894 = vmatprep.subr.mxu0 0.0
        %895 = vmatpush1.msra.mxu0 0.0
        %896 = vmatprep.subr.mxu0 0.0
        %897 = vmatpush1.msra.mxu0 0.0
        %898 = vmatprep.subr.mxu0 0.0
        %899 = vmatpush1.msra.mxu0 0.0
        %900 = vmatprep.subr.mxu0 0.0
        %901 = vmatpush1.msra.mxu0 0.0
        %902 = vmatprep.subr.mxu0 0.0
        %903 = vmatpush1.msra.mxu0 0.0
        %904 = vmatprep.subr.mxu0 0.0
        %905 = vmatpush1.msra.mxu0 %v358
        %906 = vmatprep.subr.mxu0 0.0
        %907 = vmatpush2.msra.mxu0 0.0
        %908 = vmatprep.subr.mxu0 0.0
        %909 = vmatpush2.msra.mxu0 0.0
        %910 = vmatprep.subr.mxu0 0.0
        %911 = vmatpush2.msra.mxu0 0.0
        %912 = vmatprep.subr.mxu0 0.0
        %913 = vmatpush2.msra.mxu0 0.0
        %914 = vmatprep.subr.mxu0 0.0
        %915 = vmatpush2.msra.mxu0 0.0
        %916 = vmatprep.subr.mxu0 0.0
        %917 = vmatpush2.msra.mxu0 0.0
        %918 = vmatprep.subr.mxu0 0.0
        %919 = vmatpush2.msra.mxu0 0.0
        %920 = vmatprep.subr.mxu0 0.0
        %921 = vmatpush2.msra.mxu0 0.0
        %922 = vmatprep.subr.mxu0 0.0
        %923 = vmatpush2.msra.mxu0 0.0
        %924 = vmatprep.subr.mxu0 0.0
        %925 = vmatpush2.msra.mxu0 0.0
        %926 = vmatprep.subr.mxu0 0.0
        %927 = vmatpush2.msra.mxu0 0.0
        %928 = vmatprep.subr.mxu0 0.0
        %929 = vmatpush2.msra.mxu0 0.0
        %930 = vmatprep.subr.mxu0 0.0
        %931 = vmatpush2.msra.mxu0 0.0
        %932 = vmatprep.subr.mxu0 0.0
        %933 = vmatpush2.msra.mxu0 0.0
        %934 = vmatprep.subr.mxu0 0.0
        %935 = vmatpush2.msra.mxu0 0.0
        %936 = vmatprep.subr.mxu0 0.0
        %937 = vmatpush2.msra.mxu0 0.0
        %938 = vmatprep.mubr.f32.mxu0 0.0
        %939 = vmatmul.mubr.f32.gmra.mxu0 %v866
        %v940 = vpop.f32.mrf.mxu0
        %v941 = vadd.f32 0.0, %v940
        %v942 = vpop.f32.mrf.mxu0
        %943 = vmatprep.mubr.f32.mxu0 0.0
        %944 = vmatmul.mubr.f32.gmra.mxu0 %v869
        %v945 = vpop.f32.mrf.mxu0
        %v946 = vadd.f32 0.0, %v945
        %v947 = vpop.f32.mrf.mxu0
        %948 = vmatprep.mubr.f32.mxu0 0.0
        %949 = vmatmul.mubr.f32.gmra.mxu0 %v872
        %v950 = vpop.f32.mrf.mxu0
        %v951 = vadd.f32 0.0, %v950
        %v952 = vpop.f32.mrf.mxu0
        %953 = vdwg.mxu0
        %v954 = vmul.f32 %v941, %v359
        %v955 = vmul.f32 %v946, %v360
        %v956 = vmul.f32 %v951, %v361
        %v957 = vsub.f32 %v702, %v954
        %v958 = vsub.f32 %v703, %v955
        %v959 = vsub.f32 %v704, %v956
        %s960 = scalar_lea.vmem %s323, 24 [#allocation9]
        %961 = vst [vmem:[%s960] sm:$0xff] %v957
        %962 = vst [vmem:[%s960 + $0x8] sm:$0xff] %v958
        %963 = vst [vmem:[%s960 + $0x10] sm:$0xff] %v959
        %s964 = sld [smem:[#allocation6 + $0x2]]
        %v965 = vstv %s964
        %v966 = vmul.f32 %v324, %v965
        %v967 = vmul.f32 %v325, %v965
        %v968 = vmul.f32 %v326, %v965
        %s969 = sld [smem:[#allocation6 + $0x82]]
        %v970 = vstv %s969
        %v971 = vmul.f32 %v328, %v970
        %v972 = vmul.f32 %v329, %v970
        %v973 = vmul.f32 %v330, %v970
        %v974 = vadd.f32 %v966, %v971
        %v975 = vadd.f32 %v967, %v972
        %v976 = vadd.f32 %v968, %v973
        %s977 = sld [smem:[#allocation6 + $0x102]]
        %v978 = vstv %s977
        %v979 = vmul.f32 %v332, %v978
        %v980 = vmul.f32 %v333, %v978
        %v981 = vmul.f32 %v334, %v978
        %v982 = vadd.f32 %v974, %v979
        %v983 = vadd.f32 %v975, %v980
        %v984 = vadd.f32 %v976, %v981
        %s985 = sld [smem:[#allocation6 + $0x182]]
        %v986 = vstv %s985
        %v987 = vmul.f32 %v336, %v986
        %v988 = vmul.f32 %v337, %v986
        %v989 = vmul.f32 %v338, %v986
        %v990 = vadd.f32 %v982, %v987
        %v991 = vadd.f32 %v983, %v988
        %v992 = vadd.f32 %v984, %v989
        %s993 = sld [smem:[#allocation7 + $0x2]]
        %v994 = vstv %s993
        %v995 = vadd.f32 %v990, %v994
        %v996 = vadd.f32 %v991, %v994
        %v997 = vadd.f32 %v992, %v994
        %v998 = vmax.f32 %v995, 0.0
        %v999 = vmax.f32 %v996, 0.0
        %v1000 = vmax.f32 %v997, 0.0
        %1001 = vmatprep.subr.mxu0 0.0
        %1002 = vmatpush1.msra.mxu0 %v357
        %1003 = vmatprep.subr.mxu0 0.0
        %1004 = vmatpush1.msra.mxu0 %v356
        %1005 = vmatprep.subr.mxu0 0.0
        %1006 = vmatpush1.msra.mxu0 %v355
        %1007 = vmatprep.subr.mxu0 0.0
        %1008 = vmatpush1.msra.mxu0 %v354
        %1009 = vmatprep.subr.mxu0 0.0
        %1010 = vmatpush1.msra.mxu0 %v353
        %1011 = vmatprep.subr.mxu0 0.0
        %1012 = vmatpush1.msra.mxu0 %v352
        %1013 = vmatprep.subr.mxu0 0.0
        %1014 = vmatpush1.msra.mxu0 %v351
        %1015 = vmatprep.subr.mxu0 0.0
        %1016 = vmatpush1.msra.mxu0 %v350
        %1017 = vmatprep.subr.mxu0 0.0
        %1018 = vmatpush1.msra.mxu0 %v349
        %1019 = vmatprep.subr.mxu0 0.0
        %1020 = vmatpush1.msra.mxu0 %v348
        %1021 = vmatprep.subr.mxu0 0.0
        %1022 = vmatpush1.msra.mxu0 %v347
        %1023 = vmatprep.subr.mxu0 0.0
        %1024 = vmatpush1.msra.mxu0 %v346
        %1025 = vmatprep.subr.mxu0 0.0
        %1026 = vmatpush1.msra.mxu0 %v345
        %1027 = vmatprep.subr.mxu0 0.0
        %1028 = vmatpush1.msra.mxu0 %v344
        %1029 = vmatprep.subr.mxu0 0.0
        %1030 = vmatpush1.msra.mxu0 %v343
        %1031 = vmatprep.subr.mxu0 0.0
        %1032 = vmatpush1.msra.mxu0 %v342
        %1033 = vmatprep.subr.mxu0 0.0
        %1034 = vmatpush2.msra.mxu0 0.0
        %1035 = vmatprep.subr.mxu0 0.0
        %1036 = vmatpush2.msra.mxu0 0.0
        %1037 = vmatprep.subr.mxu0 0.0
        %1038 = vmatpush2.msra.mxu0 0.0
        %1039 = vmatprep.subr.mxu0 0.0
        %1040 = vmatpush2.msra.mxu0 0.0
        %1041 = vmatprep.subr.mxu0 0.0
        %1042 = vmatpush2.msra.mxu0 0.0
        %1043 = vmatprep.subr.mxu0 0.0
        %1044 = vmatpush2.msra.mxu0 0.0
        %1045 = vmatprep.subr.mxu0 0.0
        %1046 = vmatpush2.msra.mxu0 0.0
        %1047 = vmatprep.subr.mxu0 0.0
        %1048 = vmatpush2.msra.mxu0 0.0
        %1049 = vmatprep.subr.mxu0 0.0
        %1050 = vmatpush2.msra.mxu0 0.0
        %1051 = vmatprep.subr.mxu0 0.0
        %1052 = vmatpush2.msra.mxu0 0.0
        %1053 = vmatprep.subr.mxu0 0.0
        %1054 = vmatpush2.msra.mxu0 0.0
        %1055 = vmatprep.subr.mxu0 0.0
        %1056 = vmatpush2.msra.mxu0 0.0
        %1057 = vmatprep.subr.mxu0 0.0
        %1058 = vmatpush2.msra.mxu0 0.0
        %1059 = vmatprep.subr.mxu0 0.0
        %1060 = vmatpush2.msra.mxu0 0.0
        %1061 = vmatprep.subr.mxu0 0.0
        %1062 = vmatpush2.msra.mxu0 0.0
        %1063 = vmatprep.subr.mxu0 0.0
        %1064 = vmatpush2.msra.mxu0 0.0
        %1065 = vmatprep.mubr.f32.mxu0 0.0
        %1066 = vmatmul.mubr.f32.gmra.mxu0 %v998
        %v1067 = vpop.f32.mrf.mxu0
        %v1068 = vadd.f32 0.0, %v1067
        %v1069 = vpop.f32.mrf.mxu0
        %1070 = vmatprep.mubr.f32.mxu0 0.0
        %1071 = vmatmul.mubr.f32.gmra.mxu0 %v999
        %v1072 = vpop.f32.mrf.mxu0
        %v1073 = vadd.f32 0.0, %v1072
        %v1074 = vpop.f32.mrf.mxu0
        %1075 = vmatprep.mubr.f32.mxu0 0.0
        %1076 = vmatmul.mubr.f32.gmra.mxu0 %v1000
        %v1077 = vpop.f32.mrf.mxu0
        %v1078 = vadd.f32 0.0, %v1077
        %v1079 = vpop.f32.mrf.mxu0
        %1080 = vdwg.mxu0
        %1081 = vmatprep.subr.mxu0 0.0
        %1082 = vmatpush1.msra.mxu0 0.0
        %1083 = vmatprep.subr.mxu0 0.0
        %1084 = vmatpush1.msra.mxu0 0.0
        %1085 = vmatprep.subr.mxu0 0.0
        %1086 = vmatpush1.msra.mxu0 0.0
        %1087 = vmatprep.subr.mxu0 0.0
        %1088 = vmatpush1.msra.mxu0 0.0
        %1089 = vmatprep.subr.mxu0 0.0
        %1090 = vmatpush1.msra.mxu0 0.0
        %1091 = vmatprep.subr.mxu0 0.0
        %1092 = vmatpush1.msra.mxu0 0.0
        %1093 = vmatprep.subr.mxu0 0.0
        %1094 = vmatpush1.msra.mxu0 0.0
        %1095 = vmatprep.subr.mxu0 0.0
        %1096 = vmatpush1.msra.mxu0 0.0
        %1097 = vmatprep.subr.mxu0 0.0
        %1098 = vmatpush1.msra.mxu0 0.0
        %1099 = vmatprep.subr.mxu0 0.0
        %1100 = vmatpush1.msra.mxu0 0.0
        %1101 = vmatprep.subr.mxu0 0.0
        %1102 = vmatpush1.msra.mxu0 0.0
        %1103 = vmatprep.subr.mxu0 0.0
        %1104 = vmatpush1.msra.mxu0 0.0
        %1105 = vmatprep.subr.mxu0 0.0
        %1106 = vmatpush1.msra.mxu0 0.0
        %1107 = vmatprep.subr.mxu0 0.0
        %1108 = vmatpush1.msra.mxu0 %v1078
        %1109 = vmatprep.subr.mxu0 0.0
        %1110 = vmatpush1.msra.mxu0 %v1073
        %1111 = vmatprep.subr.mxu0 0.0
        %1112 = vmatpush1.msra.mxu0 %v1068
        %1113 = vmatprep.subr.mxu0 0.0
        %1114 = vmatpush2.msra.mxu0 0.0
        %1115 = vmatprep.subr.mxu0 0.0
        %1116 = vmatpush2.msra.mxu0 0.0
        %1117 = vmatprep.subr.mxu0 0.0
        %1118 = vmatpush2.msra.mxu0 0.0
        %1119 = vmatprep.subr.mxu0 0.0
        %1120 = vmatpush2.msra.mxu0 0.0
        %1121 = vmatprep.subr.mxu0 0.0
        %1122 = vmatpush2.msra.mxu0 0.0
        %1123 = vmatprep.subr.mxu0 0.0
        %1124 = vmatpush2.msra.mxu0 0.0
        %1125 = vmatprep.subr.mxu0 0.0
        %1126 = vmatpush2.msra.mxu0 0.0
        %1127 = vmatprep.subr.mxu0 0.0
        %1128 = vmatpush2.msra.mxu0 0.0
        %1129 = vmatprep.subr.mxu0 0.0
        %1130 = vmatpush2.msra.mxu0 0.0
        %1131 = vmatprep.subr.mxu0 0.0
        %1132 = vmatpush2.msra.mxu0 0.0
        %1133 = vmatprep.subr.mxu0 0.0
        %1134 = vmatpush2.msra.mxu0 0.0
        %1135 = vmatprep.subr.mxu0 0.0
        %1136 = vmatpush2.msra.mxu0 0.0
        %1137 = vmatprep.subr.mxu0 0.0
        %1138 = vmatpush2.msra.mxu0 0.0
        %1139 = vmatprep.subr.mxu0 0.0
        %1140 = vmatpush2.msra.mxu0 0.0
        %1141 = vmatprep.subr.mxu0 0.0
        %1142 = vmatpush2.msra.mxu0 0.0
        %1143 = vmatprep.subr.mxu0 0.0
        %1144 = vmatpush2.msra.mxu0 0.0
        %1145 = vmatprep.mubr.f32.mxu0 0.0
        %1146 = vmatmul.mubr.f32.gmra.mxu0 %v481
        %v1147 = vpop.f32.mrf.mxu0
        %v1148 = vadd.f32 0.0, %v1147
        %v1149 = vpop.f32.mrf.mxu0
        %1150 = vmatprep.mubr.f32.mxu0 0.0
        %1151 = vmatmul.mubr.f32.gmra.mxu0 %v484
        %v1152 = vpop.f32.mrf.mxu0
        %v1153 = vadd.f32 0.0, %v1152
        %v1154 = vpop.f32.mrf.mxu0
        %1155 = vmatprep.mubr.f32.mxu0 0.0
        %1156 = vmatmul.mubr.f32.gmra.mxu0 %v487
        %v1157 = vpop.f32.mrf.mxu0
        %v1158 = vadd.f32 0.0, %v1157
        %v1159 = vpop.f32.mrf.mxu0
        %1160 = vdwg.mxu0
        %v1162 = vsel %vm569, %v1148, 0
        %v1165 = vsel %vm569, %v1153, 0
        %v1168 = vsel %vm569, %v1158, 0
        %1170 = vmatprep.subr.mxu0 0.0
        %1171 = vmatpush1.msra.mxu0 0.0
        %1172 = vmatprep.subr.mxu0 0.0
        %1173 = vmatpush1.msra.mxu0 0.0
        %1174 = vmatprep.subr.mxu0 0.0
        %1175 = vmatpush1.msra.mxu0 0.0
        %1176 = vmatprep.subr.mxu0 0.0
        %1177 = vmatpush1.msra.mxu0 0.0
        %1178 = vmatprep.subr.mxu0 0.0
        %1179 = vmatpush1.msra.mxu0 0.0
        %1180 = vmatprep.subr.mxu0 0.0
        %1181 = vmatpush1.msra.mxu0 0.0
        %1182 = vmatprep.subr.mxu0 0.0
        %1183 = vmatpush1.msra.mxu0 0.0
        %1184 = vmatprep.subr.mxu0 0.0
        %1185 = vmatpush1.msra.mxu0 0.0
        %1186 = vmatprep.subr.mxu0 0.0
        %1187 = vmatpush1.msra.mxu0 0.0
        %1188 = vmatprep.subr.mxu0 0.0
        %1189 = vmatpush1.msra.mxu0 0.0
        %1190 = vmatprep.subr.mxu0 0.0
        %1191 = vmatpush1.msra.mxu0 0.0
        %1192 = vmatprep.subr.mxu0 0.0
        %1193 = vmatpush1.msra.mxu0 0.0
        %1194 = vmatprep.subr.mxu0 0.0
        %1195 = vmatpush1.msra.mxu0 0.0
        %1196 = vmatprep.subr.mxu0 0.0
        %1197 = vmatpush1.msra.mxu0 0.0
        %1198 = vmatprep.subr.mxu0 0.0
        %1199 = vmatpush1.msra.mxu0 0.0
        %1200 = vmatprep.subr.mxu0 0.0
        %1201 = vmatpush1.msra.mxu0 %v358
        %1202 = vmatprep.subr.mxu0 0.0
        %1203 = vmatpush2.msra.mxu0 0.0
        %1204 = vmatprep.subr.mxu0 0.0
        %1205 = vmatpush2.msra.mxu0 0.0
        %1206 = vmatprep.subr.mxu0 0.0
        %1207 = vmatpush2.msra.mxu0 0.0
        %1208 = vmatprep.subr.mxu0 0.0
        %1209 = vmatpush2.msra.mxu0 0.0
        %1210 = vmatprep.subr.mxu0 0.0
        %1211 = vmatpush2.msra.mxu0 0.0
        %1212 = vmatprep.subr.mxu0 0.0
        %1213 = vmatpush2.msra.mxu0 0.0
        %1214 = vmatprep.subr.mxu0 0.0
        %1215 = vmatpush2.msra.mxu0 0.0
        %1216 = vmatprep.subr.mxu0 0.0
        %1217 = vmatpush2.msra.mxu0 0.0
        %1218 = vmatprep.subr.mxu0 0.0
        %1219 = vmatpush2.msra.mxu0 0.0
        %1220 = vmatprep.subr.mxu0 0.0
        %1221 = vmatpush2.msra.mxu0 0.0
        %1222 = vmatprep.subr.mxu0 0.0
        %1223 = vmatpush2.msra.mxu0 0.0
        %1224 = vmatprep.subr.mxu0 0.0
        %1225 = vmatpush2.msra.mxu0 0.0
        %1226 = vmatprep.subr.mxu0 0.0
        %1227 = vmatpush2.msra.mxu0 0.0
        %1228 = vmatprep.subr.mxu0 0.0
        %1229 = vmatpush2.msra.mxu0 0.0
        %1230 = vmatprep.subr.mxu0 0.0
        %1231 = vmatpush2.msra.mxu0 0.0
        %1232 = vmatprep.subr.mxu0 0.0
        %1233 = vmatpush2.msra.mxu0 0.0
        %1234 = vmatprep.mubr.f32.mxu0 0.0
        %1235 = vmatmul.mubr.f32.gmra.mxu0 %v1162
        %v1236 = vpop.f32.mrf.mxu0
        %v1237 = vadd.f32 0.0, %v1236
        %v1238 = vpop.f32.mrf.mxu0
        %1239 = vmatprep.mubr.f32.mxu0 0.0
        %1240 = vmatmul.mubr.f32.gmra.mxu0 %v1165
        %v1241 = vpop.f32.mrf.mxu0
        %v1242 = vadd.f32 0.0, %v1241
        %v1243 = vpop.f32.mrf.mxu0
        %1244 = vmatprep.mubr.f32.mxu0 0.0
        %1245 = vmatmul.mubr.f32.gmra.mxu0 %v1168
        %v1246 = vpop.f32.mrf.mxu0
        %v1247 = vadd.f32 0.0, %v1246
        %v1248 = vpop.f32.mrf.mxu0
        %1249 = vdwg.mxu0
        %v1250 = vmul.f32 %v1237, %v359
        %v1251 = vmul.f32 %v1242, %v360
        %v1252 = vmul.f32 %v1247, %v361
        %v1253 = vsub.f32 %v998, %v1250
        %v1254 = vsub.f32 %v999, %v1251
        %v1255 = vsub.f32 %v1000, %v1252
        %s1256 = scalar_lea.vmem %s323, 48 [#allocation9]
        %1257 = vst [vmem:[%s1256] sm:$0xff] %v1253
        %1258 = vst [vmem:[%s1256 + $0x8] sm:$0xff] %v1254
        %1259 = vst [vmem:[%s1256 + $0x10] sm:$0xff] %v1255
        %s1260 = sld [smem:[#allocation6 + $0x3]]
        %v1261 = vstv %s1260
        %v1262 = vmul.f32 %v324, %v1261
        %v1263 = vmul.f32 %v325, %v1261
        %v1264 = vmul.f32 %v326, %v1261
        %s1265 = sld [smem:[#allocation6 + $0x83]]
        %v1266 = vstv %s1265
        %v1267 = vmul.f32 %v328, %v1266
        %v1268 = vmul.f32 %v329, %v1266
        %v1269 = vmul.f32 %v330, %v1266
        %v1270 = vadd.f32 %v1262, %v1267
        %v1271 = vadd.f32 %v1263, %v1268
        %v1272 = vadd.f32 %v1264, %v1269
        %s1273 = sld [smem:[#allocation6 + $0x103]]
        %v1274 = vstv %s1273
        %v1275 = vmul.f32 %v332, %v1274
        %v1276 = vmul.f32 %v333, %v1274
        %v1277 = vmul.f32 %v334, %v1274
        %v1278 = vadd.f32 %v1270, %v1275
        %v1279 = vadd.f32 %v1271, %v1276
        %v1280 = vadd.f32 %v1272, %v1277
        %s1281 = sld [smem:[#allocation6 + $0x183]]
        %v1282 = vstv %s1281
        %v1283 = vmul.f32 %v336, %v1282
        %v1284 = vmul.f32 %v337, %v1282
        %v1285 = vmul.f32 %v338, %v1282
        %v1286 = vadd.f32 %v1278, %v1283
        %v1287 = vadd.f32 %v1279, %v1284
        %v1288 = vadd.f32 %v1280, %v1285
        %s1289 = sld [smem:[#allocation7 + $0x3]]
        %v1290 = vstv %s1289
        %v1291 = vadd.f32 %v1286, %v1290
        %v1292 = vadd.f32 %v1287, %v1290
        %v1293 = vadd.f32 %v1288, %v1290
        %v1294 = vmax.f32 %v1291, 0.0
        %v1295 = vmax.f32 %v1292, 0.0
        %v1296 = vmax.f32 %v1293, 0.0
        %1297 = vmatprep.subr.mxu0 0.0
        %1298 = vmatpush1.msra.mxu0 %v357
        %1299 = vmatprep.subr.mxu0 0.0
        %1300 = vmatpush1.msra.mxu0 %v356
        %1301 = vmatprep.subr.mxu0 0.0
        %1302 = vmatpush1.msra.mxu0 %v355
        %1303 = vmatprep.subr.mxu0 0.0
        %1304 = vmatpush1.msra.mxu0 %v354
        %1305 = vmatprep.subr.mxu0 0.0
        %1306 = vmatpush1.msra.mxu0 %v353
        %1307 = vmatprep.subr.mxu0 0.0
        %1308 = vmatpush1.msra.mxu0 %v352
        %1309 = vmatprep.subr.mxu0 0.0
        %1310 = vmatpush1.msra.mxu0 %v351
        %1311 = vmatprep.subr.mxu0 0.0
        %1312 = vmatpush1.msra.mxu0 %v350
        %1313 = vmatprep.subr.mxu0 0.0
        %1314 = vmatpush1.msra.mxu0 %v349
        %1315 = vmatprep.subr.mxu0 0.0
        %1316 = vmatpush1.msra.mxu0 %v348
        %1317 = vmatprep.subr.mxu0 0.0
        %1318 = vmatpush1.msra.mxu0 %v347
        %1319 = vmatprep.subr.mxu0 0.0
        %1320 = vmatpush1.msra.mxu0 %v346
        %1321 = vmatprep.subr.mxu0 0.0
        %1322 = vmatpush1.msra.mxu0 %v345
        %1323 = vmatprep.subr.mxu0 0.0
        %1324 = vmatpush1.msra.mxu0 %v344
        %1325 = vmatprep.subr.mxu0 0.0
        %1326 = vmatpush1.msra.mxu0 %v343
        %1327 = vmatprep.subr.mxu0 0.0
        %1328 = vmatpush1.msra.mxu0 %v342
        %1329 = vmatprep.subr.mxu0 0.0
        %1330 = vmatpush2.msra.mxu0 0.0
        %1331 = vmatprep.subr.mxu0 0.0
        %1332 = vmatpush2.msra.mxu0 0.0
        %1333 = vmatprep.subr.mxu0 0.0
        %1334 = vmatpush2.msra.mxu0 0.0
        %1335 = vmatprep.subr.mxu0 0.0
        %1336 = vmatpush2.msra.mxu0 0.0
        %1337 = vmatprep.subr.mxu0 0.0
        %1338 = vmatpush2.msra.mxu0 0.0
        %1339 = vmatprep.subr.mxu0 0.0
        %1340 = vmatpush2.msra.mxu0 0.0
        %1341 = vmatprep.subr.mxu0 0.0
        %1342 = vmatpush2.msra.mxu0 0.0
        %1343 = vmatprep.subr.mxu0 0.0
        %1344 = vmatpush2.msra.mxu0 0.0
        %1345 = vmatprep.subr.mxu0 0.0
        %1346 = vmatpush2.msra.mxu0 0.0
        %1347 = vmatprep.subr.mxu0 0.0
        %1348 = vmatpush2.msra.mxu0 0.0
        %1349 = vmatprep.subr.mxu0 0.0
        %1350 = vmatpush2.msra.mxu0 0.0
        %1351 = vmatprep.subr.mxu0 0.0
        %1352 = vmatpush2.msra.mxu0 0.0
        %1353 = vmatprep.subr.mxu0 0.0
        %1354 = vmatpush2.msra.mxu0 0.0
        %1355 = vmatprep.subr.mxu0 0.0
        %1356 = vmatpush2.msra.mxu0 0.0
        %1357 = vmatprep.subr.mxu0 0.0
        %1358 = vmatpush2.msra.mxu0 0.0
        %1359 = vmatprep.subr.mxu0 0.0
        %1360 = vmatpush2.msra.mxu0 0.0
        %1361 = vmatprep.mubr.f32.mxu0 0.0
        %1362 = vmatmul.mubr.f32.gmra.mxu0 %v1294
        %v1363 = vpop.f32.mrf.mxu0
        %v1364 = vadd.f32 0.0, %v1363
        %v1365 = vpop.f32.mrf.mxu0
        %1366 = vmatprep.mubr.f32.mxu0 0.0
        %1367 = vmatmul.mubr.f32.gmra.mxu0 %v1295
        %v1368 = vpop.f32.mrf.mxu0
        %v1369 = vadd.f32 0.0, %v1368
        %v1370 = vpop.f32.mrf.mxu0
        %1371 = vmatprep.mubr.f32.mxu0 0.0
        %1372 = vmatmul.mubr.f32.gmra.mxu0 %v1296
        %v1373 = vpop.f32.mrf.mxu0
        %v1374 = vadd.f32 0.0, %v1373
        %v1375 = vpop.f32.mrf.mxu0
        %1376 = vdwg.mxu0
        %1377 = vmatprep.subr.mxu0 0.0
        %1378 = vmatpush1.msra.mxu0 0.0
        %1379 = vmatprep.subr.mxu0 0.0
        %1380 = vmatpush1.msra.mxu0 0.0
        %1381 = vmatprep.subr.mxu0 0.0
        %1382 = vmatpush1.msra.mxu0 0.0
        %1383 = vmatprep.subr.mxu0 0.0
        %1384 = vmatpush1.msra.mxu0 0.0
        %1385 = vmatprep.subr.mxu0 0.0
        %1386 = vmatpush1.msra.mxu0 0.0
        %1387 = vmatprep.subr.mxu0 0.0
        %1388 = vmatpush1.msra.mxu0 0.0
        %1389 = vmatprep.subr.mxu0 0.0
        %1390 = vmatpush1.msra.mxu0 0.0
        %1391 = vmatprep.subr.mxu0 0.0
        %1392 = vmatpush1.msra.mxu0 0.0
        %1393 = vmatprep.subr.mxu0 0.0
        %1394 = vmatpush1.msra.mxu0 0.0
        %1395 = vmatprep.subr.mxu0 0.0
        %1396 = vmatpush1.msra.mxu0 0.0
        %1397 = vmatprep.subr.mxu0 0.0
        %1398 = vmatpush1.msra.mxu0 0.0
        %1399 = vmatprep.subr.mxu0 0.0
        %1400 = vmatpush1.msra.mxu0 0.0
        %1401 = vmatprep.subr.mxu0 0.0
        %1402 = vmatpush1.msra.mxu0 0.0
        %1403 = vmatprep.subr.mxu0 0.0
        %1404 = vmatpush1.msra.mxu0 %v1374
        %1405 = vmatprep.subr.mxu0 0.0
        %1406 = vmatpush1.msra.mxu0 %v1369
        %1407 = vmatprep.subr.mxu0 0.0
        %1408 = vmatpush1.msra.mxu0 %v1364
        %1409 = vmatprep.subr.mxu0 0.0
        %1410 = vmatpush2.msra.mxu0 0.0
        %1411 = vmatprep.subr.mxu0 0.0
        %1412 = vmatpush2.msra.mxu0 0.0
        %1413 = vmatprep.subr.mxu0 0.0
        %1414 = vmatpush2.msra.mxu0 0.0
        %1415 = vmatprep.subr.mxu0 0.0
        %1416 = vmatpush2.msra.mxu0 0.0
        %1417 = vmatprep.subr.mxu0 0.0
        %1418 = vmatpush2.msra.mxu0 0.0
        %1419 = vmatprep.subr.mxu0 0.0
        %1420 = vmatpush2.msra.mxu0 0.0
        %1421 = vmatprep.subr.mxu0 0.0
        %1422 = vmatpush2.msra.mxu0 0.0
        %1423 = vmatprep.subr.mxu0 0.0
        %1424 = vmatpush2.msra.mxu0 0.0
        %1425 = vmatprep.subr.mxu0 0.0
        %1426 = vmatpush2.msra.mxu0 0.0
        %1427 = vmatprep.subr.mxu0 0.0
        %1428 = vmatpush2.msra.mxu0 0.0
        %1429 = vmatprep.subr.mxu0 0.0
        %1430 = vmatpush2.msra.mxu0 0.0
        %1431 = vmatprep.subr.mxu0 0.0
        %1432 = vmatpush2.msra.mxu0 0.0
        %1433 = vmatprep.subr.mxu0 0.0
        %1434 = vmatpush2.msra.mxu0 0.0
        %1435 = vmatprep.subr.mxu0 0.0
        %1436 = vmatpush2.msra.mxu0 0.0
        %1437 = vmatprep.subr.mxu0 0.0
        %1438 = vmatpush2.msra.mxu0 0.0
        %1439 = vmatprep.subr.mxu0 0.0
        %1440 = vmatpush2.msra.mxu0 0.0
        %1441 = vmatprep.mubr.f32.mxu0 0.0
        %1442 = vmatmul.mubr.f32.gmra.mxu0 %v481
        %v1443 = vpop.f32.mrf.mxu0
        %v1444 = vadd.f32 0.0, %v1443
        %v1445 = vpop.f32.mrf.mxu0
        %1446 = vmatprep.mubr.f32.mxu0 0.0
        %1447 = vmatmul.mubr.f32.gmra.mxu0 %v484
        %v1448 = vpop.f32.mrf.mxu0
        %v1449 = vadd.f32 0.0, %v1448
        %v1450 = vpop.f32.mrf.mxu0
        %1451 = vmatprep.mubr.f32.mxu0 0.0
        %1452 = vmatmul.mubr.f32.gmra.mxu0 %v487
        %v1453 = vpop.f32.mrf.mxu0
        %v1454 = vadd.f32 0.0, %v1453
        %v1455 = vpop.f32.mrf.mxu0
        %1456 = vdwg.mxu0
        %v1458 = vsel %vm569, %v1444, 0
        %v1461 = vsel %vm569, %v1449, 0
        %v1464 = vsel %vm569, %v1454, 0
        %1466 = vmatprep.subr.mxu0 0.0
        %1467 = vmatpush1.msra.mxu0 0.0
        %1468 = vmatprep.subr.mxu0 0.0
        %1469 = vmatpush1.msra.mxu0 0.0
        %1470 = vmatprep.subr.mxu0 0.0
        %1471 = vmatpush1.msra.mxu0 0.0
        %1472 = vmatprep.subr.mxu0 0.0
        %1473 = vmatpush1.msra.mxu0 0.0
        %1474 = vmatprep.subr.mxu0 0.0
        %1475 = vmatpush1.msra.mxu0 0.0
        %1476 = vmatprep.subr.mxu0 0.0
        %1477 = vmatpush1.msra.mxu0 0.0
        %1478 = vmatprep.subr.mxu0 0.0
        %1479 = vmatpush1.msra.mxu0 0.0
        %1480 = vmatprep.subr.mxu0 0.0
        %1481 = vmatpush1.msra.mxu0 0.0
        %1482 = vmatprep.subr.mxu0 0.0
        %1483 = vmatpush1.msra.mxu0 0.0
        %1484 = vmatprep.subr.mxu0 0.0
        %1485 = vmatpush1.msra.mxu0 0.0
        %1486 = vmatprep.subr.mxu0 0.0
        %1487 = vmatpush1.msra.mxu0 0.0
        %1488 = vmatprep.subr.mxu0 0.0
        %1489 = vmatpush1.msra.mxu0 0.0
        %1490 = vmatprep.subr.mxu0 0.0
        %1491 = vmatpush1.msra.mxu0 0.0
        %1492 = vmatprep.subr.mxu0 0.0
        %1493 = vmatpush1.msra.mxu0 0.0
        %1494 = vmatprep.subr.mxu0 0.0
        %1495 = vmatpush1.msra.mxu0 0.0
        %1496 = vmatprep.subr.mxu0 0.0
        %1497 = vmatpush1.msra.mxu0 %v358
        %1498 = vmatprep.subr.mxu0 0.0
        %1499 = vmatpush2.msra.mxu0 0.0
        %1500 = vmatprep.subr.mxu0 0.0
        %1501 = vmatpush2.msra.mxu0 0.0
        %1502 = vmatprep.subr.mxu0 0.0
        %1503 = vmatpush2.msra.mxu0 0.0
        %1504 = vmatprep.subr.mxu0 0.0
        %1505 = vmatpush2.msra.mxu0 0.0
        %1506 = vmatprep.subr.mxu0 0.0
        %1507 = vmatpush2.msra.mxu0 0.0
        %1508 = vmatprep.subr.mxu0 0.0
        %1509 = vmatpush2.msra.mxu0 0.0
        %1510 = vmatprep.subr.mxu0 0.0
        %1511 = vmatpush2.msra.mxu0 0.0
        %1512 = vmatprep.subr.mxu0 0.0
        %1513 = vmatpush2.msra.mxu0 0.0
        %1514 = vmatprep.subr.mxu0 0.0
        %1515 = vmatpush2.msra.mxu0 0.0
        %1516 = vmatprep.subr.mxu0 0.0
        %1517 = vmatpush2.msra.mxu0 0.0
        %1518 = vmatprep.subr.mxu0 0.0
        %1519 = vmatpush2.msra.mxu0 0.0
        %1520 = vmatprep.subr.mxu0 0.0
        %1521 = vmatpush2.msra.mxu0 0.0
        %1522 = vmatprep.subr.mxu0 0.0
        %1523 = vmatpush2.msra.mxu0 0.0
        %1524 = vmatprep.subr.mxu0 0.0
        %1525 = vmatpush2.msra.mxu0 0.0
        %1526 = vmatprep.subr.mxu0 0.0
        %1527 = vmatpush2.msra.mxu0 0.0
        %1528 = vmatprep.subr.mxu0 0.0
        %1529 = vmatpush2.msra.mxu0 0.0
        %1530 = vmatprep.mubr.f32.mxu0 0.0
        %1531 = vmatmul.mubr.f32.gmra.mxu0 %v1458
        %v1532 = vpop.f32.mrf.mxu0
        %v1533 = vadd.f32 0.0, %v1532
        %v1534 = vpop.f32.mrf.mxu0
        %1535 = vmatprep.mubr.f32.mxu0 0.0
        %1536 = vmatmul.mubr.f32.gmra.mxu0 %v1461
        %v1537 = vpop.f32.mrf.mxu0
        %v1538 = vadd.f32 0.0, %v1537
        %v1539 = vpop.f32.mrf.mxu0
        %1540 = vmatprep.mubr.f32.mxu0 0.0
        %1541 = vmatmul.mubr.f32.gmra.mxu0 %v1464
        %v1542 = vpop.f32.mrf.mxu0
        %v1543 = vadd.f32 0.0, %v1542
        %v1544 = vpop.f32.mrf.mxu0
        %1545 = vdwg.mxu0
        %v1546 = vmul.f32 %v1533, %v359
        %v1547 = vmul.f32 %v1538, %v360
        %v1548 = vmul.f32 %v1543, %v361
        %v1549 = vsub.f32 %v1294, %v1546
        %v1550 = vsub.f32 %v1295, %v1547
        %v1551 = vsub.f32 %v1296, %v1548
        %s1552 = scalar_lea.vmem %s323, 72 [#allocation9]
        %1553 = vst [vmem:[%s1552] sm:$0xff] %v1549
        %1554 = vst [vmem:[%s1552 + $0x8] sm:$0xff] %v1550
        %1555 = vst [vmem:[%s1552 + $0x10] sm:$0xff] %v1551
        %s1556 = sld [smem:[#allocation6 + $0x4]]
        %v1557 = vstv %s1556
        %v1558 = vmul.f32 %v324, %v1557
        %v1559 = vmul.f32 %v325, %v1557
        %v1560 = vmul.f32 %v326, %v1557
        %s1561 = sld [smem:[#allocation6 + $0x84]]
        %v1562 = vstv %s1561
        %v1563 = vmul.f32 %v328, %v1562
        %v1564 = vmul.f32 %v329, %v1562
        %v1565 = vmul.f32 %v330, %v1562
        %v1566 = vadd.f32 %v1558, %v1563
        %v1567 = vadd.f32 %v1559, %v1564
        %v1568 = vadd.f32 %v1560, %v1565
        %s1569 = sld [smem:[#allocation6 + $0x104]]
        %v1570 = vstv %s1569
        %v1571 = vmul.f32 %v332, %v1570
        %v1572 = vmul.f32 %v333, %v1570
        %v1573 = vmul.f32 %v334, %v1570
        %v1574 = vadd.f32 %v1566, %v1571
        %v1575 = vadd.f32 %v1567, %v1572
        %v1576 = vadd.f32 %v1568, %v1573
        %s1577 = sld [smem:[#allocation6 + $0x184]]
        %v1578 = vstv %s1577
        %v1579 = vmul.f32 %v336, %v1578
        %v1580 = vmul.f32 %v337, %v1578
        %v1581 = vmul.f32 %v338, %v1578
        %v1582 = vadd.f32 %v1574, %v1579
        %v1583 = vadd.f32 %v1575, %v1580
        %v1584 = vadd.f32 %v1576, %v1581
        %s1585 = sld [smem:[#allocation7 + $0x4]]
        %v1586 = vstv %s1585
        %v1587 = vadd.f32 %v1582, %v1586
        %v1588 = vadd.f32 %v1583, %v1586
        %v1589 = vadd.f32 %v1584, %v1586
        %v1590 = vmax.f32 %v1587, 0.0
        %v1591 = vmax.f32 %v1588, 0.0
        %v1592 = vmax.f32 %v1589, 0.0
        %1593 = vmatprep.subr.mxu0 0.0
        %1594 = vmatpush1.msra.mxu0 %v357
        %1595 = vmatprep.subr.mxu0 0.0
        %1596 = vmatpush1.msra.mxu0 %v356
        %1597 = vmatprep.subr.mxu0 0.0
        %1598 = vmatpush1.msra.mxu0 %v355
        %1599 = vmatprep.subr.mxu0 0.0
        %1600 = vmatpush1.msra.mxu0 %v354
        %1601 = vmatprep.subr.mxu0 0.0
        %1602 = vmatpush1.msra.mxu0 %v353
        %1603 = vmatprep.subr.mxu0 0.0
        %1604 = vmatpush1.msra.mxu0 %v352
        %1605 = vmatprep.subr.mxu0 0.0
        %1606 = vmatpush1.msra.mxu0 %v351
        %1607 = vmatprep.subr.mxu0 0.0
        %1608 = vmatpush1.msra.mxu0 %v350
        %1609 = vmatprep.subr.mxu0 0.0
        %1610 = vmatpush1.msra.mxu0 %v349
        %1611 = vmatprep.subr.mxu0 0.0
        %1612 = vmatpush1.msra.mxu0 %v348
        %1613 = vmatprep.subr.mxu0 0.0
        %1614 = vmatpush1.msra.mxu0 %v347
        %1615 = vmatprep.subr.mxu0 0.0
        %1616 = vmatpush1.msra.mxu0 %v346
        %1617 = vmatprep.subr.mxu0 0.0
        %1618 = vmatpush1.msra.mxu0 %v345
        %1619 = vmatprep.subr.mxu0 0.0
        %1620 = vmatpush1.msra.mxu0 %v344
        %1621 = vmatprep.subr.mxu0 0.0
        %1622 = vmatpush1.msra.mxu0 %v343
        %1623 = vmatprep.subr.mxu0 0.0
        %1624 = vmatpush1.msra.mxu0 %v342
        %1625 = vmatprep.subr.mxu0 0.0
        %1626 = vmatpush2.msra.mxu0 0.0
        %1627 = vmatprep.subr.mxu0 0.0
        %1628 = vmatpush2.msra.mxu0 0.0
        %1629 = vmatprep.subr.mxu0 0.0
        %1630 = vmatpush2.msra.mxu0 0.0
        %1631 = vmatprep.subr.mxu0 0.0
        %1632 = vmatpush2.msra.mxu0 0.0
        %1633 = vmatprep.subr.mxu0 0.0
        %1634 = vmatpush2.msra.mxu0 0.0
        %1635 = vmatprep.subr.mxu0 0.0
        %1636 = vmatpush2.msra.mxu0 0.0
        %1637 = vmatprep.subr.mxu0 0.0
        %1638 = vmatpush2.msra.mxu0 0.0
        %1639 = vmatprep.subr.mxu0 0.0
        %1640 = vmatpush2.msra.mxu0 0.0
        %1641 = vmatprep.subr.mxu0 0.0
        %1642 = vmatpush2.msra.mxu0 0.0
        %1643 = vmatprep.subr.mxu0 0.0
        %1644 = vmatpush2.msra.mxu0 0.0
        %1645 = vmatprep.subr.mxu0 0.0
        %1646 = vmatpush2.msra.mxu0 0.0
        %1647 = vmatprep.subr.mxu0 0.0
        %1648 = vmatpush2.msra.mxu0 0.0
        %1649 = vmatprep.subr.mxu0 0.0
        %1650 = vmatpush2.msra.mxu0 0.0
        %1651 = vmatprep.subr.mxu0 0.0
        %1652 = vmatpush2.msra.mxu0 0.0
        %1653 = vmatprep.subr.mxu0 0.0
        %1654 = vmatpush2.msra.mxu0 0.0
        %1655 = vmatprep.subr.mxu0 0.0
        %1656 = vmatpush2.msra.mxu0 0.0
        %1657 = vmatprep.mubr.f32.mxu0 0.0
        %1658 = vmatmul.mubr.f32.gmra.mxu0 %v1590
        %v1659 = vpop.f32.mrf.mxu0
        %v1660 = vadd.f32 0.0, %v1659
        %v1661 = vpop.f32.mrf.mxu0
        %1662 = vmatprep.mubr.f32.mxu0 0.0
        %1663 = vmatmul.mubr.f32.gmra.mxu0 %v1591
        %v1664 = vpop.f32.mrf.mxu0
        %v1665 = vadd.f32 0.0, %v1664
        %v1666 = vpop.f32.mrf.mxu0
        %1667 = vmatprep.mubr.f32.mxu0 0.0
        %1668 = vmatmul.mubr.f32.gmra.mxu0 %v1592
        %v1669 = vpop.f32.mrf.mxu0
        %v1670 = vadd.f32 0.0, %v1669
        %v1671 = vpop.f32.mrf.mxu0
        %1672 = vdwg.mxu0
        %1673 = vmatprep.subr.mxu0 0.0
        %1674 = vmatpush1.msra.mxu0 0.0
        %1675 = vmatprep.subr.mxu0 0.0
        %1676 = vmatpush1.msra.mxu0 0.0
        %1677 = vmatprep.subr.mxu0 0.0
        %1678 = vmatpush1.msra.mxu0 0.0
        %1679 = vmatprep.subr.mxu0 0.0
        %1680 = vmatpush1.msra.mxu0 0.0
        %1681 = vmatprep.subr.mxu0 0.0
        %1682 = vmatpush1.msra.mxu0 0.0
        %1683 = vmatprep.subr.mxu0 0.0
        %1684 = vmatpush1.msra.mxu0 0.0
        %1685 = vmatprep.subr.mxu0 0.0
        %1686 = vmatpush1.msra.mxu0 0.0
        %1687 = vmatprep.subr.mxu0 0.0
        %1688 = vmatpush1.msra.mxu0 0.0
        %1689 = vmatprep.subr.mxu0 0.0
        %1690 = vmatpush1.msra.mxu0 0.0
        %1691 = vmatprep.subr.mxu0 0.0
        %1692 = vmatpush1.msra.mxu0 0.0
        %1693 = vmatprep.subr.mxu0 0.0
        %1694 = vmatpush1.msra.mxu0 0.0
        %1695 = vmatprep.subr.mxu0 0.0
        %1696 = vmatpush1.msra.mxu0 0.0
        %1697 = vmatprep.subr.mxu0 0.0
        %1698 = vmatpush1.msra.mxu0 0.0
        %1699 = vmatprep.subr.mxu0 0.0
        %1700 = vmatpush1.msra.mxu0 %v1670
        %1701 = vmatprep.subr.mxu0 0.0
        %1702 = vmatpush1.msra.mxu0 %v1665
        %1703 = vmatprep.subr.mxu0 0.0
        %1704 = vmatpush1.msra.mxu0 %v1660
        %1705 = vmatprep.subr.mxu0 0.0
        %1706 = vmatpush2.msra.mxu0 0.0
        %1707 = vmatprep.subr.mxu0 0.0
        %1708 = vmatpush2.msra.mxu0 0.0
        %1709 = vmatprep.subr.mxu0 0.0
        %1710 = vmatpush2.msra.mxu0 0.0
        %1711 = vmatprep.subr.mxu0 0.0
        %1712 = vmatpush2.msra.mxu0 0.0
        %1713 = vmatprep.subr.mxu0 0.0
        %1714 = vmatpush2.msra.mxu0 0.0
        %1715 = vmatprep.subr.mxu0 0.0
        %1716 = vmatpush2.msra.mxu0 0.0
        %1717 = vmatprep.subr.mxu0 0.0
        %1718 = vmatpush2.msra.mxu0 0.0
        %1719 = vmatprep.subr.mxu0 0.0
        %1720 = vmatpush2.msra.mxu0 0.0
        %1721 = vmatprep.subr.mxu0 0.0
        %1722 = vmatpush2.msra.mxu0 0.0
        %1723 = vmatprep.subr.mxu0 0.0
        %1724 = vmatpush2.msra.mxu0 0.0
        %1725 = vmatprep.subr.mxu0 0.0
        %1726 = vmatpush2.msra.mxu0 0.0
        %1727 = vmatprep.subr.mxu0 0.0
        %1728 = vmatpush2.msra.mxu0 0.0
        %1729 = vmatprep.subr.mxu0 0.0
        %1730 = vmatpush2.msra.mxu0 0.0
        %1731 = vmatprep.subr.mxu0 0.0
        %1732 = vmatpush2.msra.mxu0 0.0
        %1733 = vmatprep.subr.mxu0 0.0
        %1734 = vmatpush2.msra.mxu0 0.0
        %1735 = vmatprep.subr.mxu0 0.0
        %1736 = vmatpush2.msra.mxu0 0.0
        %1737 = vmatprep.mubr.f32.mxu0 0.0
        %1738 = vmatmul.mubr.f32.gmra.mxu0 %v481
        %v1739 = vpop.f32.mrf.mxu0
        %v1740 = vadd.f32 0.0, %v1739
        %v1741 = vpop.f32.mrf.mxu0
        %1742 = vmatprep.mubr.f32.mxu0 0.0
        %1743 = vmatmul.mubr.f32.gmra.mxu0 %v484
        %v1744 = vpop.f32.mrf.mxu0
        %v1745 = vadd.f32 0.0, %v1744
        %v1746 = vpop.f32.mrf.mxu0
        %1747 = vmatprep.mubr.f32.mxu0 0.0
        %1748 = vmatmul.mubr.f32.gmra.mxu0 %v487
        %v1749 = vpop.f32.mrf.mxu0
        %v1750 = vadd.f32 0.0, %v1749
        %v1751 = vpop.f32.mrf.mxu0
        %1752 = vdwg.mxu0
        %v1754 = vsel %vm569, %v1740, 0
        %v1757 = vsel %vm569, %v1745, 0
        %v1760 = vsel %vm569, %v1750, 0
        %1762 = vmatprep.subr.mxu0 0.0
        %1763 = vmatpush1.msra.mxu0 0.0
        %1764 = vmatprep.subr.mxu0 0.0
        %1765 = vmatpush1.msra.mxu0 0.0
        %1766 = vmatprep.subr.mxu0 0.0
        %1767 = vmatpush1.msra.mxu0 0.0
        %1768 = vmatprep.subr.mxu0 0.0
        %1769 = vmatpush1.msra.mxu0 0.0
        %1770 = vmatprep.subr.mxu0 0.0
        %1771 = vmatpush1.msra.mxu0 0.0
        %1772 = vmatprep.subr.mxu0 0.0
        %1773 = vmatpush1.msra.mxu0 0.0
        %1774 = vmatprep.subr.mxu0 0.0
        %1775 = vmatpush1.msra.mxu0 0.0
        %1776 = vmatprep.subr.mxu0 0.0
        %1777 = vmatpush1.msra.mxu0 0.0
        %1778 = vmatprep.subr.mxu0 0.0
        %1779 = vmatpush1.msra.mxu0 0.0
        %1780 = vmatprep.subr.mxu0 0.0
        %1781 = vmatpush1.msra.mxu0 0.0
        %1782 = vmatprep.subr.mxu0 0.0
        %1783 = vmatpush1.msra.mxu0 0.0
        %1784 = vmatprep.subr.mxu0 0.0
        %1785 = vmatpush1.msra.mxu0 0.0
        %1786 = vmatprep.subr.mxu0 0.0
        %1787 = vmatpush1.msra.mxu0 0.0
        %1788 = vmatprep.subr.mxu0 0.0
        %1789 = vmatpush1.msra.mxu0 0.0
        %1790 = vmatprep.subr.mxu0 0.0
        %1791 = vmatpush1.msra.mxu0 0.0
        %1792 = vmatprep.subr.mxu0 0.0
        %1793 = vmatpush1.msra.mxu0 %v358
        %1794 = vmatprep.subr.mxu0 0.0
        %1795 = vmatpush2.msra.mxu0 0.0
        %1796 = vmatprep.subr.mxu0 0.0
        %1797 = vmatpush2.msra.mxu0 0.0
        %1798 = vmatprep.subr.mxu0 0.0
        %1799 = vmatpush2.msra.mxu0 0.0
        %1800 = vmatprep.subr.mxu0 0.0
        %1801 = vmatpush2.msra.mxu0 0.0
        %1802 = vmatprep.subr.mxu0 0.0
        %1803 = vmatpush2.msra.mxu0 0.0
        %1804 = vmatprep.subr.mxu0 0.0
        %1805 = vmatpush2.msra.mxu0 0.0
        %1806 = vmatprep.subr.mxu0 0.0
        %1807 = vmatpush2.msra.mxu0 0.0
        %1808 = vmatprep.subr.mxu0 0.0
        %1809 = vmatpush2.msra.mxu0 0.0
        %1810 = vmatprep.subr.mxu0 0.0
        %1811 = vmatpush2.msra.mxu0 0.0
        %1812 = vmatprep.subr.mxu0 0.0
        %1813 = vmatpush2.msra.mxu0 0.0
        %1814 = vmatprep.subr.mxu0 0.0
        %1815 = vmatpush2.msra.mxu0 0.0
        %1816 = vmatprep.subr.mxu0 0.0
        %1817 = vmatpush2.msra.mxu0 0.0
        %1818 = vmatprep.subr.mxu0 0.0
        %1819 = vmatpush2.msra.mxu0 0.0
        %1820 = vmatprep.subr.mxu0 0.0
        %1821 = vmatpush2.msra.mxu0 0.0
        %1822 = vmatprep.subr.mxu0 0.0
        %1823 = vmatpush2.msra.mxu0 0.0
        %1824 = vmatprep.subr.mxu0 0.0
        %1825 = vmatpush2.msra.mxu0 0.0
        %1826 = vmatprep.mubr.f32.mxu0 0.0
        %1827 = vmatmul.mubr.f32.gmra.mxu0 %v1754
        %v1828 = vpop.f32.mrf.mxu0
        %v1829 = vadd.f32 0.0, %v1828
        %v1830 = vpop.f32.mrf.mxu0
        %1831 = vmatprep.mubr.f32.mxu0 0.0
        %1832 = vmatmul.mubr.f32.gmra.mxu0 %v1757
        %v1833 = vpop.f32.mrf.mxu0
        %v1834 = vadd.f32 0.0, %v1833
        %v1835 = vpop.f32.mrf.mxu0
        %1836 = vmatprep.mubr.f32.mxu0 0.0
        %1837 = vmatmul.mubr.f32.gmra.mxu0 %v1760
        %v1838 = vpop.f32.mrf.mxu0
        %v1839 = vadd.f32 0.0, %v1838
        %v1840 = vpop.f32.mrf.mxu0
        %1841 = vdwg.mxu0
        %v1842 = vmul.f32 %v1829, %v359
        %v1843 = vmul.f32 %v1834, %v360
        %v1844 = vmul.f32 %v1839, %v361
        %v1845 = vsub.f32 %v1590, %v1842
        %v1846 = vsub.f32 %v1591, %v1843
        %v1847 = vsub.f32 %v1592, %v1844
        %s1848 = scalar_lea.vmem %s323, 96 [#allocation9]
        %1849 = vst [vmem:[%s1848] sm:$0xff] %v1845
        %1850 = vst [vmem:[%s1848 + $0x8] sm:$0xff] %v1846
        %1851 = vst [vmem:[%s1848 + $0x10] sm:$0xff] %v1847
        %s1852 = sld [smem:[#allocation6 + $0x5]]
        %v1853 = vstv %s1852
        %v1854 = vmul.f32 %v324, %v1853
        %v1855 = vmul.f32 %v325, %v1853
        %v1856 = vmul.f32 %v326, %v1853
        %s1857 = sld [smem:[#allocation6 + $0x85]]
        %v1858 = vstv %s1857
        %v1859 = vmul.f32 %v328, %v1858
        %v1860 = vmul.f32 %v329, %v1858
        %v1861 = vmul.f32 %v330, %v1858
        %v1862 = vadd.f32 %v1854, %v1859
        %v1863 = vadd.f32 %v1855, %v1860
        %v1864 = vadd.f32 %v1856, %v1861
        %s1865 = sld [smem:[#allocation6 + $0x105]]
        %v1866 = vstv %s1865
        %v1867 = vmul.f32 %v332, %v1866
        %v1868 = vmul.f32 %v333, %v1866
        %v1869 = vmul.f32 %v334, %v1866
        %v1870 = vadd.f32 %v1862, %v1867
        %v1871 = vadd.f32 %v1863, %v1868
        %v1872 = vadd.f32 %v1864, %v1869
        %s1873 = sld [smem:[#allocation6 + $0x185]]
        %v1874 = vstv %s1873
        %v1875 = vmul.f32 %v336, %v1874
        %v1876 = vmul.f32 %v337, %v1874
        %v1877 = vmul.f32 %v338, %v1874
        %v1878 = vadd.f32 %v1870, %v1875
        %v1879 = vadd.f32 %v1871, %v1876
        %v1880 = vadd.f32 %v1872, %v1877
        %s1881 = sld [smem:[#allocation7 + $0x5]]
        %v1882 = vstv %s1881
        %v1883 = vadd.f32 %v1878, %v1882
        %v1884 = vadd.f32 %v1879, %v1882
        %v1885 = vadd.f32 %v1880, %v1882
        %v1886 = vmax.f32 %v1883, 0.0
        %v1887 = vmax.f32 %v1884, 0.0
        %v1888 = vmax.f32 %v1885, 0.0
        %1889 = vmatprep.subr.mxu0 0.0
        %1890 = vmatpush1.msra.mxu0 %v357
        %1891 = vmatprep.subr.mxu0 0.0
        %1892 = vmatpush1.msra.mxu0 %v356
        %1893 = vmatprep.subr.mxu0 0.0
        %1894 = vmatpush1.msra.mxu0 %v355
        %1895 = vmatprep.subr.mxu0 0.0
        %1896 = vmatpush1.msra.mxu0 %v354
        %1897 = vmatprep.subr.mxu0 0.0
        %1898 = vmatpush1.msra.mxu0 %v353
        %1899 = vmatprep.subr.mxu0 0.0
        %1900 = vmatpush1.msra.mxu0 %v352
        %1901 = vmatprep.subr.mxu0 0.0
        %1902 = vmatpush1.msra.mxu0 %v351
        %1903 = vmatprep.subr.mxu0 0.0
        %1904 = vmatpush1.msra.mxu0 %v350
        %1905 = vmatprep.subr.mxu0 0.0
        %1906 = vmatpush1.msra.mxu0 %v349
        %1907 = vmatprep.subr.mxu0 0.0
        %1908 = vmatpush1.msra.mxu0 %v348
        %1909 = vmatprep.subr.mxu0 0.0
        %1910 = vmatpush1.msra.mxu0 %v347
        %1911 = vmatprep.subr.mxu0 0.0
        %1912 = vmatpush1.msra.mxu0 %v346
        %1913 = vmatprep.subr.mxu0 0.0
        %1914 = vmatpush1.msra.mxu0 %v345
        %1915 = vmatprep.subr.mxu0 0.0
        %1916 = vmatpush1.msra.mxu0 %v344
        %1917 = vmatprep.subr.mxu0 0.0
        %1918 = vmatpush1.msra.mxu0 %v343
        %1919 = vmatprep.subr.mxu0 0.0
        %1920 = vmatpush1.msra.mxu0 %v342
        %1921 = vmatprep.subr.mxu0 0.0
        %1922 = vmatpush2.msra.mxu0 0.0
        %1923 = vmatprep.subr.mxu0 0.0
        %1924 = vmatpush2.msra.mxu0 0.0
        %1925 = vmatprep.subr.mxu0 0.0
        %1926 = vmatpush2.msra.mxu0 0.0
        %1927 = vmatprep.subr.mxu0 0.0
        %1928 = vmatpush2.msra.mxu0 0.0
        %1929 = vmatprep.subr.mxu0 0.0
        %1930 = vmatpush2.msra.mxu0 0.0
        %1931 = vmatprep.subr.mxu0 0.0
        %1932 = vmatpush2.msra.mxu0 0.0
        %1933 = vmatprep.subr.mxu0 0.0
        %1934 = vmatpush2.msra.mxu0 0.0
        %1935 = vmatprep.subr.mxu0 0.0
        %1936 = vmatpush2.msra.mxu0 0.0
        %1937 = vmatprep.subr.mxu0 0.0
        %1938 = vmatpush2.msra.mxu0 0.0
        %1939 = vmatprep.subr.mxu0 0.0
        %1940 = vmatpush2.msra.mxu0 0.0
        %1941 = vmatprep.subr.mxu0 0.0
        %1942 = vmatpush2.msra.mxu0 0.0
        %1943 = vmatprep.subr.mxu0 0.0
        %1944 = vmatpush2.msra.mxu0 0.0
        %1945 = vmatprep.subr.mxu0 0.0
        %1946 = vmatpush2.msra.mxu0 0.0
        %1947 = vmatprep.subr.mxu0 0.0
        %1948 = vmatpush2.msra.mxu0 0.0
        %1949 = vmatprep.subr.mxu0 0.0
        %1950 = vmatpush2.msra.mxu0 0.0
        %1951 = vmatprep.subr.mxu0 0.0
        %1952 = vmatpush2.msra.mxu0 0.0
        %1953 = vmatprep.mubr.f32.mxu0 0.0
        %1954 = vmatmul.mubr.f32.gmra.mxu0 %v1886
        %v1955 = vpop.f32.mrf.mxu0
        %v1956 = vadd.f32 0.0, %v1955
        %v1957 = vpop.f32.mrf.mxu0
        %1958 = vmatprep.mubr.f32.mxu0 0.0
        %1959 = vmatmul.mubr.f32.gmra.mxu0 %v1887
        %v1960 = vpop.f32.mrf.mxu0
        %v1961 = vadd.f32 0.0, %v1960
        %v1962 = vpop.f32.mrf.mxu0
        %1963 = vmatprep.mubr.f32.mxu0 0.0
        %1964 = vmatmul.mubr.f32.gmra.mxu0 %v1888
        %v1965 = vpop.f32.mrf.mxu0
        %v1966 = vadd.f32 0.0, %v1965
        %v1967 = vpop.f32.mrf.mxu0
        %1968 = vdwg.mxu0
        %1969 = vmatprep.subr.mxu0 0.0
        %1970 = vmatpush1.msra.mxu0 0.0
        %1971 = vmatprep.subr.mxu0 0.0
        %1972 = vmatpush1.msra.mxu0 0.0
        %1973 = vmatprep.subr.mxu0 0.0
        %1974 = vmatpush1.msra.mxu0 0.0
        %1975 = vmatprep.subr.mxu0 0.0
        %1976 = vmatpush1.msra.mxu0 0.0
        %1977 = vmatprep.subr.mxu0 0.0
        %1978 = vmatpush1.msra.mxu0 0.0
        %1979 = vmatprep.subr.mxu0 0.0
        %1980 = vmatpush1.msra.mxu0 0.0
        %1981 = vmatprep.subr.mxu0 0.0
        %1982 = vmatpush1.msra.mxu0 0.0
        %1983 = vmatprep.subr.mxu0 0.0
        %1984 = vmatpush1.msra.mxu0 0.0
        %1985 = vmatprep.subr.mxu0 0.0
        %1986 = vmatpush1.msra.mxu0 0.0
        %1987 = vmatprep.subr.mxu0 0.0
        %1988 = vmatpush1.msra.mxu0 0.0
        %1989 = vmatprep.subr.mxu0 0.0
        %1990 = vmatpush1.msra.mxu0 0.0
        %1991 = vmatprep.subr.mxu0 0.0
        %1992 = vmatpush1.msra.mxu0 0.0
        %1993 = vmatprep.subr.mxu0 0.0
        %1994 = vmatpush1.msra.mxu0 0.0
        %1995 = vmatprep.subr.mxu0 0.0
        %1996 = vmatpush1.msra.mxu0 %v1966
        %1997 = vmatprep.subr.mxu0 0.0
        %1998 = vmatpush1.msra.mxu0 %v1961
        %1999 = vmatprep.subr.mxu0 0.0
        %2000 = vmatpush1.msra.mxu0 %v1956
        %2001 = vmatprep.subr.mxu0 0.0
        %2002 = vmatpush2.msra.mxu0 0.0
        %2003 = vmatprep.subr.mxu0 0.0
        %2004 = vmatpush2.msra.mxu0 0.0
        %2005 = vmatprep.subr.mxu0 0.0
        %2006 = vmatpush2.msra.mxu0 0.0
        %2007 = vmatprep.subr.mxu0 0.0
        %2008 = vmatpush2.msra.mxu0 0.0
        %2009 = vmatprep.subr.mxu0 0.0
        %2010 = vmatpush2.msra.mxu0 0.0
        %2011 = vmatprep.subr.mxu0 0.0
        %2012 = vmatpush2.msra.mxu0 0.0
        %2013 = vmatprep.subr.mxu0 0.0
        %2014 = vmatpush2.msra.mxu0 0.0
        %2015 = vmatprep.subr.mxu0 0.0
        %2016 = vmatpush2.msra.mxu0 0.0
        %2017 = vmatprep.subr.mxu0 0.0
        %2018 = vmatpush2.msra.mxu0 0.0
        %2019 = vmatprep.subr.mxu0 0.0
        %2020 = vmatpush2.msra.mxu0 0.0
        %2021 = vmatprep.subr.mxu0 0.0
        %2022 = vmatpush2.msra.mxu0 0.0
        %2023 = vmatprep.subr.mxu0 0.0
        %2024 = vmatpush2.msra.mxu0 0.0
        %2025 = vmatprep.subr.mxu0 0.0
        %2026 = vmatpush2.msra.mxu0 0.0
        %2027 = vmatprep.subr.mxu0 0.0
        %2028 = vmatpush2.msra.mxu0 0.0
        %2029 = vmatprep.subr.mxu0 0.0
        %2030 = vmatpush2.msra.mxu0 0.0
        %2031 = vmatprep.subr.mxu0 0.0
        %2032 = vmatpush2.msra.mxu0 0.0
        %2033 = vmatprep.mubr.f32.mxu0 0.0
        %2034 = vmatmul.mubr.f32.gmra.mxu0 %v481
        %v2035 = vpop.f32.mrf.mxu0
        %v2036 = vadd.f32 0.0, %v2035
        %v2037 = vpop.f32.mrf.mxu0
        %2038 = vmatprep.mubr.f32.mxu0 0.0
        %2039 = vmatmul.mubr.f32.gmra.mxu0 %v484
        %v2040 = vpop.f32.mrf.mxu0
        %v2041 = vadd.f32 0.0, %v2040
        %v2042 = vpop.f32.mrf.mxu0
        %2043 = vmatprep.mubr.f32.mxu0 0.0
        %2044 = vmatmul.mubr.f32.gmra.mxu0 %v487
        %v2045 = vpop.f32.mrf.mxu0
        %v2046 = vadd.f32 0.0, %v2045
        %v2047 = vpop.f32.mrf.mxu0
        %2048 = vdwg.mxu0
        %v2050 = vsel %vm569, %v2036, 0
        %v2053 = vsel %vm569, %v2041, 0
        %v2056 = vsel %vm569, %v2046, 0
        %2058 = vmatprep.subr.mxu0 0.0
        %2059 = vmatpush1.msra.mxu0 0.0
        %2060 = vmatprep.subr.mxu0 0.0
        %2061 = vmatpush1.msra.mxu0 0.0
        %2062 = vmatprep.subr.mxu0 0.0
        %2063 = vmatpush1.msra.mxu0 0.0
        %2064 = vmatprep.subr.mxu0 0.0
        %2065 = vmatpush1.msra.mxu0 0.0
        %2066 = vmatprep.subr.mxu0 0.0
        %2067 = vmatpush1.msra.mxu0 0.0
        %2068 = vmatprep.subr.mxu0 0.0
        %2069 = vmatpush1.msra.mxu0 0.0
        %2070 = vmatprep.subr.mxu0 0.0
        %2071 = vmatpush1.msra.mxu0 0.0
        %2072 = vmatprep.subr.mxu0 0.0
        %2073 = vmatpush1.msra.mxu0 0.0
        %2074 = vmatprep.subr.mxu0 0.0
        %2075 = vmatpush1.msra.mxu0 0.0
        %2076 = vmatprep.subr.mxu0 0.0
        %2077 = vmatpush1.msra.mxu0 0.0
        %2078 = vmatprep.subr.mxu0 0.0
        %2079 = vmatpush1.msra.mxu0 0.0
        %2080 = vmatprep.subr.mxu0 0.0
        %2081 = vmatpush1.msra.mxu0 0.0
        %2082 = vmatprep.subr.mxu0 0.0
        %2083 = vmatpush1.msra.mxu0 0.0
        %2084 = vmatprep.subr.mxu0 0.0
        %2085 = vmatpush1.msra.mxu0 0.0
        %2086 = vmatprep.subr.mxu0 0.0
        %2087 = vmatpush1.msra.mxu0 0.0
        %2088 = vmatprep.subr.mxu0 0.0
        %2089 = vmatpush1.msra.mxu0 %v358
        %2090 = vmatprep.subr.mxu0 0.0
        %2091 = vmatpush2.msra.mxu0 0.0
        %2092 = vmatprep.subr.mxu0 0.0
        %2093 = vmatpush2.msra.mxu0 0.0
        %2094 = vmatprep.subr.mxu0 0.0
        %2095 = vmatpush2.msra.mxu0 0.0
        %2096 = vmatprep.subr.mxu0 0.0
        %2097 = vmatpush2.msra.mxu0 0.0
        %2098 = vmatprep.subr.mxu0 0.0
        %2099 = vmatpush2.msra.mxu0 0.0
        %2100 = vmatprep.subr.mxu0 0.0
        %2101 = vmatpush2.msra.mxu0 0.0
        %2102 = vmatprep.subr.mxu0 0.0
        %2103 = vmatpush2.msra.mxu0 0.0
        %2104 = vmatprep.subr.mxu0 0.0
        %2105 = vmatpush2.msra.mxu0 0.0
        %2106 = vmatprep.subr.mxu0 0.0
        %2107 = vmatpush2.msra.mxu0 0.0
        %2108 = vmatprep.subr.mxu0 0.0
        %2109 = vmatpush2.msra.mxu0 0.0
        %2110 = vmatprep.subr.mxu0 0.0
        %2111 = vmatpush2.msra.mxu0 0.0
        %2112 = vmatprep.subr.mxu0 0.0
        %2113 = vmatpush2.msra.mxu0 0.0
        %2114 = vmatprep.subr.mxu0 0.0
        %2115 = vmatpush2.msra.mxu0 0.0
        %2116 = vmatprep.subr.mxu0 0.0
        %2117 = vmatpush2.msra.mxu0 0.0
        %2118 = vmatprep.subr.mxu0 0.0
        %2119 = vmatpush2.msra.mxu0 0.0
        %2120 = vmatprep.subr.mxu0 0.0
        %2121 = vmatpush2.msra.mxu0 0.0
        %2122 = vmatprep.mubr.f32.mxu0 0.0
        %2123 = vmatmul.mubr.f32.gmra.mxu0 %v2050
        %v2124 = vpop.f32.mrf.mxu0
        %v2125 = vadd.f32 0.0, %v2124
        %v2126 = vpop.f32.mrf.mxu0
        %2127 = vmatprep.mubr.f32.mxu0 0.0
        %2128 = vmatmul.mubr.f32.gmra.mxu0 %v2053
        %v2129 = vpop.f32.mrf.mxu0
        %v2130 = vadd.f32 0.0, %v2129
        %v2131 = vpop.f32.mrf.mxu0
        %2132 = vmatprep.mubr.f32.mxu0 0.0
        %2133 = vmatmul.mubr.f32.gmra.mxu0 %v2056
        %v2134 = vpop.f32.mrf.mxu0
        %v2135 = vadd.f32 0.0, %v2134
        %v2136 = vpop.f32.mrf.mxu0
        %2137 = vdwg.mxu0
        %v2138 = vmul.f32 %v2125, %v359
        %v2139 = vmul.f32 %v2130, %v360
        %v2140 = vmul.f32 %v2135, %v361
        %v2141 = vsub.f32 %v1886, %v2138
        %v2142 = vsub.f32 %v1887, %v2139
        %v2143 = vsub.f32 %v1888, %v2140
        %s2144 = scalar_lea.vmem %s323, 120 [#allocation9]
        %2145 = vst [vmem:[%s2144] sm:$0xff] %v2141
        %2146 = vst [vmem:[%s2144 + $0x8] sm:$0xff] %v2142
        %2147 = vst [vmem:[%s2144 + $0x10] sm:$0xff] %v2143
        %s2148 = sld [smem:[#allocation6 + $0x6]]
        %v2149 = vstv %s2148
        %v2150 = vmul.f32 %v324, %v2149
        %v2151 = vmul.f32 %v325, %v2149
        %v2152 = vmul.f32 %v326, %v2149
        %s2153 = sld [smem:[#allocation6 + $0x86]]
        %v2154 = vstv %s2153
        %v2155 = vmul.f32 %v328, %v2154
        %v2156 = vmul.f32 %v329, %v2154
        %v2157 = vmul.f32 %v330, %v2154
        %v2158 = vadd.f32 %v2150, %v2155
        %v2159 = vadd.f32 %v2151, %v2156
        %v2160 = vadd.f32 %v2152, %v2157
        %s2161 = sld [smem:[#allocation6 + $0x106]]
        %v2162 = vstv %s2161
        %v2163 = vmul.f32 %v332, %v2162
        %v2164 = vmul.f32 %v333, %v2162
        %v2165 = vmul.f32 %v334, %v2162
        %v2166 = vadd.f32 %v2158, %v2163
        %v2167 = vadd.f32 %v2159, %v2164
        %v2168 = vadd.f32 %v2160, %v2165
        %s2169 = sld [smem:[#allocation6 + $0x186]]
        %v2170 = vstv %s2169
        %v2171 = vmul.f32 %v336, %v2170
        %v2172 = vmul.f32 %v337, %v2170
        %v2173 = vmul.f32 %v338, %v2170
        %v2174 = vadd.f32 %v2166, %v2171
        %v2175 = vadd.f32 %v2167, %v2172
        %v2176 = vadd.f32 %v2168, %v2173
        %s2177 = sld [smem:[#allocation7 + $0x6]]
        %v2178 = vstv %s2177
        %v2179 = vadd.f32 %v2174, %v2178
        %v2180 = vadd.f32 %v2175, %v2178
        %v2181 = vadd.f32 %v2176, %v2178
        %v2182 = vmax.f32 %v2179, 0.0
        %v2183 = vmax.f32 %v2180, 0.0
        %v2184 = vmax.f32 %v2181, 0.0
        %2185 = vmatprep.subr.mxu0 0.0
        %2186 = vmatpush1.msra.mxu0 %v357
        %2187 = vmatprep.subr.mxu0 0.0
        %2188 = vmatpush1.msra.mxu0 %v356
        %2189 = vmatprep.subr.mxu0 0.0
        %2190 = vmatpush1.msra.mxu0 %v355
        %2191 = vmatprep.subr.mxu0 0.0
        %2192 = vmatpush1.msra.mxu0 %v354
        %2193 = vmatprep.subr.mxu0 0.0
        %2194 = vmatpush1.msra.mxu0 %v353
        %2195 = vmatprep.subr.mxu0 0.0
        %2196 = vmatpush1.msra.mxu0 %v352
        %2197 = vmatprep.subr.mxu0 0.0
        %2198 = vmatpush1.msra.mxu0 %v351
        %2199 = vmatprep.subr.mxu0 0.0
        %2200 = vmatpush1.msra.mxu0 %v350
        %2201 = vmatprep.subr.mxu0 0.0
        %2202 = vmatpush1.msra.mxu0 %v349
        %2203 = vmatprep.subr.mxu0 0.0
        %2204 = vmatpush1.msra.mxu0 %v348
        %2205 = vmatprep.subr.mxu0 0.0
        %2206 = vmatpush1.msra.mxu0 %v347
        %2207 = vmatprep.subr.mxu0 0.0
        %2208 = vmatpush1.msra.mxu0 %v346
        %2209 = vmatprep.subr.mxu0 0.0
        %2210 = vmatpush1.msra.mxu0 %v345
        %2211 = vmatprep.subr.mxu0 0.0
        %2212 = vmatpush1.msra.mxu0 %v344
        %2213 = vmatprep.subr.mxu0 0.0
        %2214 = vmatpush1.msra.mxu0 %v343
        %2215 = vmatprep.subr.mxu0 0.0
        %2216 = vmatpush1.msra.mxu0 %v342
        %2217 = vmatprep.subr.mxu0 0.0
        %2218 = vmatpush2.msra.mxu0 0.0
        %2219 = vmatprep.subr.mxu0 0.0
        %2220 = vmatpush2.msra.mxu0 0.0
        %2221 = vmatprep.subr.mxu0 0.0
        %2222 = vmatpush2.msra.mxu0 0.0
        %2223 = vmatprep.subr.mxu0 0.0
        %2224 = vmatpush2.msra.mxu0 0.0
        %2225 = vmatprep.subr.mxu0 0.0
        %2226 = vmatpush2.msra.mxu0 0.0
        %2227 = vmatprep.subr.mxu0 0.0
        %2228 = vmatpush2.msra.mxu0 0.0
        %2229 = vmatprep.subr.mxu0 0.0
        %2230 = vmatpush2.msra.mxu0 0.0
        %2231 = vmatprep.subr.mxu0 0.0
        %2232 = vmatpush2.msra.mxu0 0.0
        %2233 = vmatprep.subr.mxu0 0.0
        %2234 = vmatpush2.msra.mxu0 0.0
        %2235 = vmatprep.subr.mxu0 0.0
        %2236 = vmatpush2.msra.mxu0 0.0
        %2237 = vmatprep.subr.mxu0 0.0
        %2238 = vmatpush2.msra.mxu0 0.0
        %2239 = vmatprep.subr.mxu0 0.0
        %2240 = vmatpush2.msra.mxu0 0.0
        %2241 = vmatprep.subr.mxu0 0.0
        %2242 = vmatpush2.msra.mxu0 0.0
        %2243 = vmatprep.subr.mxu0 0.0
        %2244 = vmatpush2.msra.mxu0 0.0
        %2245 = vmatprep.subr.mxu0 0.0
        %2246 = vmatpush2.msra.mxu0 0.0
        %2247 = vmatprep.subr.mxu0 0.0
        %2248 = vmatpush2.msra.mxu0 0.0
        %2249 = vmatprep.mubr.f32.mxu0 0.0
        %2250 = vmatmul.mubr.f32.gmra.mxu0 %v2182
        %v2251 = vpop.f32.mrf.mxu0
        %v2252 = vadd.f32 0.0, %v2251
        %v2253 = vpop.f32.mrf.mxu0
        %2254 = vmatprep.mubr.f32.mxu0 0.0
        %2255 = vmatmul.mubr.f32.gmra.mxu0 %v2183
        %v2256 = vpop.f32.mrf.mxu0
        %v2257 = vadd.f32 0.0, %v2256
        %v2258 = vpop.f32.mrf.mxu0
        %2259 = vmatprep.mubr.f32.mxu0 0.0
        %2260 = vmatmul.mubr.f32.gmra.mxu0 %v2184
        %v2261 = vpop.f32.mrf.mxu0
        %v2262 = vadd.f32 0.0, %v2261
        %v2263 = vpop.f32.mrf.mxu0
        %2264 = vdwg.mxu0
        %2265 = vmatprep.subr.mxu0 0.0
        %2266 = vmatpush1.msra.mxu0 0.0
        %2267 = vmatprep.subr.mxu0 0.0
        %2268 = vmatpush1.msra.mxu0 0.0
        %2269 = vmatprep.subr.mxu0 0.0
        %2270 = vmatpush1.msra.mxu0 0.0
        %2271 = vmatprep.subr.mxu0 0.0
        %2272 = vmatpush1.msra.mxu0 0.0
        %2273 = vmatprep.subr.mxu0 0.0
        %2274 = vmatpush1.msra.mxu0 0.0
        %2275 = vmatprep.subr.mxu0 0.0
        %2276 = vmatpush1.msra.mxu0 0.0
        %2277 = vmatprep.subr.mxu0 0.0
        %2278 = vmatpush1.msra.mxu0 0.0
        %2279 = vmatprep.subr.mxu0 0.0
        %2280 = vmatpush1.msra.mxu0 0.0
        %2281 = vmatprep.subr.mxu0 0.0
        %2282 = vmatpush1.msra.mxu0 0.0
        %2283 = vmatprep.subr.mxu0 0.0
        %2284 = vmatpush1.msra.mxu0 0.0
        %2285 = vmatprep.subr.mxu0 0.0
        %2286 = vmatpush1.msra.mxu0 0.0
        %2287 = vmatprep.subr.mxu0 0.0
        %2288 = vmatpush1.msra.mxu0 0.0
        %2289 = vmatprep.subr.mxu0 0.0
        %2290 = vmatpush1.msra.mxu0 0.0
        %2291 = vmatprep.subr.mxu0 0.0
        %2292 = vmatpush1.msra.mxu0 %v2262
        %2293 = vmatprep.subr.mxu0 0.0
        %2294 = vmatpush1.msra.mxu0 %v2257
        %2295 = vmatprep.subr.mxu0 0.0
        %2296 = vmatpush1.msra.mxu0 %v2252
        %2297 = vmatprep.subr.mxu0 0.0
        %2298 = vmatpush2.msra.mxu0 0.0
        %2299 = vmatprep.subr.mxu0 0.0
        %2300 = vmatpush2.msra.mxu0 0.0
        %2301 = vmatprep.subr.mxu0 0.0
        %2302 = vmatpush2.msra.mxu0 0.0
        %2303 = vmatprep.subr.mxu0 0.0
        %2304 = vmatpush2.msra.mxu0 0.0
        %2305 = vmatprep.subr.mxu0 0.0
        %2306 = vmatpush2.msra.mxu0 0.0
        %2307 = vmatprep.subr.mxu0 0.0
        %2308 = vmatpush2.msra.mxu0 0.0
        %2309 = vmatprep.subr.mxu0 0.0
        %2310 = vmatpush2.msra.mxu0 0.0
        %2311 = vmatprep.subr.mxu0 0.0
        %2312 = vmatpush2.msra.mxu0 0.0
        %2313 = vmatprep.subr.mxu0 0.0
        %2314 = vmatpush2.msra.mxu0 0.0
        %2315 = vmatprep.subr.mxu0 0.0
        %2316 = vmatpush2.msra.mxu0 0.0
        %2317 = vmatprep.subr.mxu0 0.0
        %2318 = vmatpush2.msra.mxu0 0.0
        %2319 = vmatprep.subr.mxu0 0.0
        %2320 = vmatpush2.msra.mxu0 0.0
        %2321 = vmatprep.subr.mxu0 0.0
        %2322 = vmatpush2.msra.mxu0 0.0
        %2323 = vmatprep.subr.mxu0 0.0
        %2324 = vmatpush2.msra.mxu0 0.0
        %2325 = vmatprep.subr.mxu0 0.0
        %2326 = vmatpush2.msra.mxu0 0.0
        %2327 = vmatprep.subr.mxu0 0.0
        %2328 = vmatpush2.msra.mxu0 0.0
        %2329 = vmatprep.mubr.f32.mxu0 0.0
        %2330 = vmatmul.mubr.f32.gmra.mxu0 %v481
        %v2331 = vpop.f32.mrf.mxu0
        %v2332 = vadd.f32 0.0, %v2331
        %v2333 = vpop.f32.mrf.mxu0
        %2334 = vmatprep.mubr.f32.mxu0 0.0
        %2335 = vmatmul.mubr.f32.gmra.mxu0 %v484
        %v2336 = vpop.f32.mrf.mxu0
        %v2337 = vadd.f32 0.0, %v2336
        %v2338 = vpop.f32.mrf.mxu0
        %2339 = vmatprep.mubr.f32.mxu0 0.0
        %2340 = vmatmul.mubr.f32.gmra.mxu0 %v487
        %v2341 = vpop.f32.mrf.mxu0
        %v2342 = vadd.f32 0.0, %v2341
        %v2343 = vpop.f32.mrf.mxu0
        %2344 = vdwg.mxu0
        %v2346 = vsel %vm569, %v2332, 0
        %v2349 = vsel %vm569, %v2337, 0
        %v2352 = vsel %vm569, %v2342, 0
        %2354 = vmatprep.subr.mxu0 0.0
        %2355 = vmatpush1.msra.mxu0 0.0
        %2356 = vmatprep.subr.mxu0 0.0
        %2357 = vmatpush1.msra.mxu0 0.0
        %2358 = vmatprep.subr.mxu0 0.0
        %2359 = vmatpush1.msra.mxu0 0.0
        %2360 = vmatprep.subr.mxu0 0.0
        %2361 = vmatpush1.msra.mxu0 0.0
        %2362 = vmatprep.subr.mxu0 0.0
        %2363 = vmatpush1.msra.mxu0 0.0
        %2364 = vmatprep.subr.mxu0 0.0
        %2365 = vmatpush1.msra.mxu0 0.0
        %2366 = vmatprep.subr.mxu0 0.0
        %2367 = vmatpush1.msra.mxu0 0.0
        %2368 = vmatprep.subr.mxu0 0.0
        %2369 = vmatpush1.msra.mxu0 0.0
        %2370 = vmatprep.subr.mxu0 0.0
        %2371 = vmatpush1.msra.mxu0 0.0
        %2372 = vmatprep.subr.mxu0 0.0
        %2373 = vmatpush1.msra.mxu0 0.0
        %2374 = vmatprep.subr.mxu0 0.0
        %2375 = vmatpush1.msra.mxu0 0.0
        %2376 = vmatprep.subr.mxu0 0.0
        %2377 = vmatpush1.msra.mxu0 0.0
        %2378 = vmatprep.subr.mxu0 0.0
        %2379 = vmatpush1.msra.mxu0 0.0
        %2380 = vmatprep.subr.mxu0 0.0
        %2381 = vmatpush1.msra.mxu0 0.0
        %2382 = vmatprep.subr.mxu0 0.0
        %2383 = vmatpush1.msra.mxu0 0.0
        %2384 = vmatprep.subr.mxu0 0.0
        %2385 = vmatpush1.msra.mxu0 %v358
        %2386 = vmatprep.subr.mxu0 0.0
        %2387 = vmatpush2.msra.mxu0 0.0
        %2388 = vmatprep.subr.mxu0 0.0
        %2389 = vmatpush2.msra.mxu0 0.0
        %2390 = vmatprep.subr.mxu0 0.0
        %2391 = vmatpush2.msra.mxu0 0.0
        %2392 = vmatprep.subr.mxu0 0.0
        %2393 = vmatpush2.msra.mxu0 0.0
        %2394 = vmatprep.subr.mxu0 0.0
        %2395 = vmatpush2.msra.mxu0 0.0
        %2396 = vmatprep.subr.mxu0 0.0
        %2397 = vmatpush2.msra.mxu0 0.0
        %2398 = vmatprep.subr.mxu0 0.0
        %2399 = vmatpush2.msra.mxu0 0.0
        %2400 = vmatprep.subr.mxu0 0.0
        %2401 = vmatpush2.msra.mxu0 0.0
        %2402 = vmatprep.subr.mxu0 0.0
        %2403 = vmatpush2.msra.mxu0 0.0
        %2404 = vmatprep.subr.mxu0 0.0
        %2405 = vmatpush2.msra.mxu0 0.0
        %2406 = vmatprep.subr.mxu0 0.0
        %2407 = vmatpush2.msra.mxu0 0.0
        %2408 = vmatprep.subr.mxu0 0.0
        %2409 = vmatpush2.msra.mxu0 0.0
        %2410 = vmatprep.subr.mxu0 0.0
        %2411 = vmatpush2.msra.mxu0 0.0
        %2412 = vmatprep.subr.mxu0 0.0
        %2413 = vmatpush2.msra.mxu0 0.0
        %2414 = vmatprep.subr.mxu0 0.0
        %2415 = vmatpush2.msra.mxu0 0.0
        %2416 = vmatprep.subr.mxu0 0.0
        %2417 = vmatpush2.msra.mxu0 0.0
        %2418 = vmatprep.mubr.f32.mxu0 0.0
        %2419 = vmatmul.mubr.f32.gmra.mxu0 %v2346
        %v2420 = vpop.f32.mrf.mxu0
        %v2421 = vadd.f32 0.0, %v2420
        %v2422 = vpop.f32.mrf.mxu0
        %2423 = vmatprep.mubr.f32.mxu0 0.0
        %2424 = vmatmul.mubr.f32.gmra.mxu0 %v2349
        %v2425 = vpop.f32.mrf.mxu0
        %v2426 = vadd.f32 0.0, %v2425
        %v2427 = vpop.f32.mrf.mxu0
        %2428 = vmatprep.mubr.f32.mxu0 0.0
        %2429 = vmatmul.mubr.f32.gmra.mxu0 %v2352
        %v2430 = vpop.f32.mrf.mxu0
        %v2431 = vadd.f32 0.0, %v2430
        %v2432 = vpop.f32.mrf.mxu0
        %2433 = vdwg.mxu0
        %v2434 = vmul.f32 %v2421, %v359
        %v2435 = vmul.f32 %v2426, %v360
        %v2436 = vmul.f32 %v2431, %v361
        %v2437 = vsub.f32 %v2182, %v2434
        %v2438 = vsub.f32 %v2183, %v2435
        %v2439 = vsub.f32 %v2184, %v2436
        %s2440 = scalar_lea.vmem %s323, 144 [#allocation9]
        %2441 = vst [vmem:[%s2440] sm:$0xff] %v2437
        %2442 = vst [vmem:[%s2440 + $0x8] sm:$0xff] %v2438
        %2443 = vst [vmem:[%s2440 + $0x10] sm:$0xff] %v2439
        %s2444 = sld [smem:[#allocation6 + $0x7]]
        %v2445 = vstv %s2444
        %v2446 = vmul.f32 %v324, %v2445
        %v2447 = vmul.f32 %v325, %v2445
        %v2448 = vmul.f32 %v326, %v2445
        %s2449 = sld [smem:[#allocation6 + $0x87]]
        %v2450 = vstv %s2449
        %v2451 = vmul.f32 %v328, %v2450
        %v2452 = vmul.f32 %v329, %v2450
        %v2453 = vmul.f32 %v330, %v2450
        %v2454 = vadd.f32 %v2446, %v2451
        %v2455 = vadd.f32 %v2447, %v2452
        %v2456 = vadd.f32 %v2448, %v2453
        %s2457 = sld [smem:[#allocation6 + $0x107]]
        %v2458 = vstv %s2457
        %v2459 = vmul.f32 %v332, %v2458
        %v2460 = vmul.f32 %v333, %v2458
        %v2461 = vmul.f32 %v334, %v2458
        %v2462 = vadd.f32 %v2454, %v2459
        %v2463 = vadd.f32 %v2455, %v2460
        %v2464 = vadd.f32 %v2456, %v2461
        %s2465 = sld [smem:[#allocation6 + $0x187]]
        %v2466 = vstv %s2465
        %v2467 = vmul.f32 %v336, %v2466
        %v2468 = vmul.f32 %v337, %v2466
        %v2469 = vmul.f32 %v338, %v2466
        %v2470 = vadd.f32 %v2462, %v2467
        %v2471 = vadd.f32 %v2463, %v2468
        %v2472 = vadd.f32 %v2464, %v2469
        %s2473 = sld [smem:[#allocation7 + $0x7]]
        %v2474 = vstv %s2473
        %v2475 = vadd.f32 %v2470, %v2474
        %v2476 = vadd.f32 %v2471, %v2474
        %v2477 = vadd.f32 %v2472, %v2474
        %v2478 = vmax.f32 %v2475, 0.0
        %v2479 = vmax.f32 %v2476, 0.0
        %v2480 = vmax.f32 %v2477, 0.0
        %2481 = vmatprep.subr.mxu0 0.0
        %2482 = vmatpush1.msra.mxu0 %v357
        %2483 = vmatprep.subr.mxu0 0.0
        %2484 = vmatpush1.msra.mxu0 %v356
        %2485 = vmatprep.subr.mxu0 0.0
        %2486 = vmatpush1.msra.mxu0 %v355
        %2487 = vmatprep.subr.mxu0 0.0
        %2488 = vmatpush1.msra.mxu0 %v354
        %2489 = vmatprep.subr.mxu0 0.0
        %2490 = vmatpush1.msra.mxu0 %v353
        %2491 = vmatprep.subr.mxu0 0.0
        %2492 = vmatpush1.msra.mxu0 %v352
        %2493 = vmatprep.subr.mxu0 0.0
        %2494 = vmatpush1.msra.mxu0 %v351
        %2495 = vmatprep.subr.mxu0 0.0
        %2496 = vmatpush1.msra.mxu0 %v350
        %2497 = vmatprep.subr.mxu0 0.0
        %2498 = vmatpush1.msra.mxu0 %v349
        %2499 = vmatprep.subr.mxu0 0.0
        %2500 = vmatpush1.msra.mxu0 %v348
        %2501 = vmatprep.subr.mxu0 0.0
        %2502 = vmatpush1.msra.mxu0 %v347
        %2503 = vmatprep.subr.mxu0 0.0
        %2504 = vmatpush1.msra.mxu0 %v346
        %2505 = vmatprep.subr.mxu0 0.0
        %2506 = vmatpush1.msra.mxu0 %v345
        %2507 = vmatprep.subr.mxu0 0.0
        %2508 = vmatpush1.msra.mxu0 %v344
        %2509 = vmatprep.subr.mxu0 0.0
        %2510 = vmatpush1.msra.mxu0 %v343
        %2511 = vmatprep.subr.mxu0 0.0
        %2512 = vmatpush1.msra.mxu0 %v342
        %2513 = vmatprep.subr.mxu0 0.0
        %2514 = vmatpush2.msra.mxu0 0.0
        %2515 = vmatprep.subr.mxu0 0.0
        %2516 = vmatpush2.msra.mxu0 0.0
        %2517 = vmatprep.subr.mxu0 0.0
        %2518 = vmatpush2.msra.mxu0 0.0
        %2519 = vmatprep.subr.mxu0 0.0
        %2520 = vmatpush2.msra.mxu0 0.0
        %2521 = vmatprep.subr.mxu0 0.0
        %2522 = vmatpush2.msra.mxu0 0.0
        %2523 = vmatprep.subr.mxu0 0.0
        %2524 = vmatpush2.msra.mxu0 0.0
        %2525 = vmatprep.subr.mxu0 0.0
        %2526 = vmatpush2.msra.mxu0 0.0
        %2527 = vmatprep.subr.mxu0 0.0
        %2528 = vmatpush2.msra.mxu0 0.0
        %2529 = vmatprep.subr.mxu0 0.0
        %2530 = vmatpush2.msra.mxu0 0.0
        %2531 = vmatprep.subr.mxu0 0.0
        %2532 = vmatpush2.msra.mxu0 0.0
        %2533 = vmatprep.subr.mxu0 0.0
        %2534 = vmatpush2.msra.mxu0 0.0
        %2535 = vmatprep.subr.mxu0 0.0
        %2536 = vmatpush2.msra.mxu0 0.0
        %2537 = vmatprep.subr.mxu0 0.0
        %2538 = vmatpush2.msra.mxu0 0.0
        %2539 = vmatprep.subr.mxu0 0.0
        %2540 = vmatpush2.msra.mxu0 0.0
        %2541 = vmatprep.subr.mxu0 0.0
        %2542 = vmatpush2.msra.mxu0 0.0
        %2543 = vmatprep.subr.mxu0 0.0
        %2544 = vmatpush2.msra.mxu0 0.0
        %2545 = vmatprep.mubr.f32.mxu0 0.0
        %2546 = vmatmul.mubr.f32.gmra.mxu0 %v2478
        %v2547 = vpop.f32.mrf.mxu0
        %v2548 = vadd.f32 0.0, %v2547
        %v2549 = vpop.f32.mrf.mxu0
        %2550 = vmatprep.mubr.f32.mxu0 0.0
        %2551 = vmatmul.mubr.f32.gmra.mxu0 %v2479
        %v2552 = vpop.f32.mrf.mxu0
        %v2553 = vadd.f32 0.0, %v2552
        %v2554 = vpop.f32.mrf.mxu0
        %2555 = vmatprep.mubr.f32.mxu0 0.0
        %2556 = vmatmul.mubr.f32.gmra.mxu0 %v2480
        %v2557 = vpop.f32.mrf.mxu0
        %v2558 = vadd.f32 0.0, %v2557
        %v2559 = vpop.f32.mrf.mxu0
        %2560 = vdwg.mxu0
        %2561 = vmatprep.subr.mxu0 0.0
        %2562 = vmatpush1.msra.mxu0 0.0
        %2563 = vmatprep.subr.mxu0 0.0
        %2564 = vmatpush1.msra.mxu0 0.0
        %2565 = vmatprep.subr.mxu0 0.0
        %2566 = vmatpush1.msra.mxu0 0.0
        %2567 = vmatprep.subr.mxu0 0.0
        %2568 = vmatpush1.msra.mxu0 0.0
        %2569 = vmatprep.subr.mxu0 0.0
        %2570 = vmatpush1.msra.mxu0 0.0
        %2571 = vmatprep.subr.mxu0 0.0
        %2572 = vmatpush1.msra.mxu0 0.0
        %2573 = vmatprep.subr.mxu0 0.0
        %2574 = vmatpush1.msra.mxu0 0.0
        %2575 = vmatprep.subr.mxu0 0.0
        %2576 = vmatpush1.msra.mxu0 0.0
        %2577 = vmatprep.subr.mxu0 0.0
        %2578 = vmatpush1.msra.mxu0 0.0
        %2579 = vmatprep.subr.mxu0 0.0
        %2580 = vmatpush1.msra.mxu0 0.0
        %2581 = vmatprep.subr.mxu0 0.0
        %2582 = vmatpush1.msra.mxu0 0.0
        %2583 = vmatprep.subr.mxu0 0.0
        %2584 = vmatpush1.msra.mxu0 0.0
        %2585 = vmatprep.subr.mxu0 0.0
        %2586 = vmatpush1.msra.mxu0 0.0
        %2587 = vmatprep.subr.mxu0 0.0
        %2588 = vmatpush1.msra.mxu0 %v2558
        %2589 = vmatprep.subr.mxu0 0.0
        %2590 = vmatpush1.msra.mxu0 %v2553
        %2591 = vmatprep.subr.mxu0 0.0
        %2592 = vmatpush1.msra.mxu0 %v2548
        %2593 = vmatprep.subr.mxu0 0.0
        %2594 = vmatpush2.msra.mxu0 0.0
        %2595 = vmatprep.subr.mxu0 0.0
        %2596 = vmatpush2.msra.mxu0 0.0
        %2597 = vmatprep.subr.mxu0 0.0
        %2598 = vmatpush2.msra.mxu0 0.0
        %2599 = vmatprep.subr.mxu0 0.0
        %2600 = vmatpush2.msra.mxu0 0.0
        %2601 = vmatprep.subr.mxu0 0.0
        %2602 = vmatpush2.msra.mxu0 0.0
        %2603 = vmatprep.subr.mxu0 0.0
        %2604 = vmatpush2.msra.mxu0 0.0
        %2605 = vmatprep.subr.mxu0 0.0
        %2606 = vmatpush2.msra.mxu0 0.0
        %2607 = vmatprep.subr.mxu0 0.0
        %2608 = vmatpush2.msra.mxu0 0.0
        %2609 = vmatprep.subr.mxu0 0.0
        %2610 = vmatpush2.msra.mxu0 0.0
        %2611 = vmatprep.subr.mxu0 0.0
        %2612 = vmatpush2.msra.mxu0 0.0
        %2613 = vmatprep.subr.mxu0 0.0
        %2614 = vmatpush2.msra.mxu0 0.0
        %2615 = vmatprep.subr.mxu0 0.0
        %2616 = vmatpush2.msra.mxu0 0.0
        %2617 = vmatprep.subr.mxu0 0.0
        %2618 = vmatpush2.msra.mxu0 0.0
        %2619 = vmatprep.subr.mxu0 0.0
        %2620 = vmatpush2.msra.mxu0 0.0
        %2621 = vmatprep.subr.mxu0 0.0
        %2622 = vmatpush2.msra.mxu0 0.0
        %2623 = vmatprep.subr.mxu0 0.0
        %2624 = vmatpush2.msra.mxu0 0.0
        %2625 = vmatprep.mubr.f32.mxu0 0.0
        %2626 = vmatmul.mubr.f32.gmra.mxu0 %v481
        %v2627 = vpop.f32.mrf.mxu0
        %v2628 = vadd.f32 0.0, %v2627
        %v2629 = vpop.f32.mrf.mxu0
        %2630 = vmatprep.mubr.f32.mxu0 0.0
        %2631 = vmatmul.mubr.f32.gmra.mxu0 %v484
        %v2632 = vpop.f32.mrf.mxu0
        %v2633 = vadd.f32 0.0, %v2632
        %v2634 = vpop.f32.mrf.mxu0
        %2635 = vmatprep.mubr.f32.mxu0 0.0
        %2636 = vmatmul.mubr.f32.gmra.mxu0 %v487
        %v2637 = vpop.f32.mrf.mxu0
        %v2638 = vadd.f32 0.0, %v2637
        %v2639 = vpop.f32.mrf.mxu0
        %2640 = vdwg.mxu0
        %v2642 = vsel %vm569, %v2628, 0
        %v2645 = vsel %vm569, %v2633, 0
        %v2648 = vsel %vm569, %v2638, 0
        %2650 = vmatprep.subr.mxu0 0.0
        %2651 = vmatpush1.msra.mxu0 0.0
        %2652 = vmatprep.subr.mxu0 0.0
        %2653 = vmatpush1.msra.mxu0 0.0
        %2654 = vmatprep.subr.mxu0 0.0
        %2655 = vmatpush1.msra.mxu0 0.0
        %2656 = vmatprep.subr.mxu0 0.0
        %2657 = vmatpush1.msra.mxu0 0.0
        %2658 = vmatprep.subr.mxu0 0.0
        %2659 = vmatpush1.msra.mxu0 0.0
        %2660 = vmatprep.subr.mxu0 0.0
        %2661 = vmatpush1.msra.mxu0 0.0
        %2662 = vmatprep.subr.mxu0 0.0
        %2663 = vmatpush1.msra.mxu0 0.0
        %2664 = vmatprep.subr.mxu0 0.0
        %2665 = vmatpush1.msra.mxu0 0.0
        %2666 = vmatprep.subr.mxu0 0.0
        %2667 = vmatpush1.msra.mxu0 0.0
        %2668 = vmatprep.subr.mxu0 0.0
        %2669 = vmatpush1.msra.mxu0 0.0
        %2670 = vmatprep.subr.mxu0 0.0
        %2671 = vmatpush1.msra.mxu0 0.0
        %2672 = vmatprep.subr.mxu0 0.0
        %2673 = vmatpush1.msra.mxu0 0.0
        %2674 = vmatprep.subr.mxu0 0.0
        %2675 = vmatpush1.msra.mxu0 0.0
        %2676 = vmatprep.subr.mxu0 0.0
        %2677 = vmatpush1.msra.mxu0 0.0
        %2678 = vmatprep.subr.mxu0 0.0
        %2679 = vmatpush1.msra.mxu0 0.0
        %2680 = vmatprep.subr.mxu0 0.0
        %2681 = vmatpush1.msra.mxu0 %v358
        %2682 = vmatprep.subr.mxu0 0.0
        %2683 = vmatpush2.msra.mxu0 0.0
        %2684 = vmatprep.subr.mxu0 0.0
        %2685 = vmatpush2.msra.mxu0 0.0
        %2686 = vmatprep.subr.mxu0 0.0
        %2687 = vmatpush2.msra.mxu0 0.0
        %2688 = vmatprep.subr.mxu0 0.0
        %2689 = vmatpush2.msra.mxu0 0.0
        %2690 = vmatprep.subr.mxu0 0.0
        %2691 = vmatpush2.msra.mxu0 0.0
        %2692 = vmatprep.subr.mxu0 0.0
        %2693 = vmatpush2.msra.mxu0 0.0
        %2694 = vmatprep.subr.mxu0 0.0
        %2695 = vmatpush2.msra.mxu0 0.0
        %2696 = vmatprep.subr.mxu0 0.0
        %2697 = vmatpush2.msra.mxu0 0.0
        %2698 = vmatprep.subr.mxu0 0.0
        %2699 = vmatpush2.msra.mxu0 0.0
        %2700 = vmatprep.subr.mxu0 0.0
        %2701 = vmatpush2.msra.mxu0 0.0
        %2702 = vmatprep.subr.mxu0 0.0
        %2703 = vmatpush2.msra.mxu0 0.0
        %2704 = vmatprep.subr.mxu0 0.0
        %2705 = vmatpush2.msra.mxu0 0.0
        %2706 = vmatprep.subr.mxu0 0.0
        %2707 = vmatpush2.msra.mxu0 0.0
        %2708 = vmatprep.subr.mxu0 0.0
        %2709 = vmatpush2.msra.mxu0 0.0
        %2710 = vmatprep.subr.mxu0 0.0
        %2711 = vmatpush2.msra.mxu0 0.0
        %2712 = vmatprep.subr.mxu0 0.0
        %2713 = vmatpush2.msra.mxu0 0.0
        %2714 = vmatprep.mubr.f32.mxu0 0.0
        %2715 = vmatmul.mubr.f32.gmra.mxu0 %v2642
        %v2716 = vpop.f32.mrf.mxu0
        %v2717 = vadd.f32 0.0, %v2716
        %v2718 = vpop.f32.mrf.mxu0
        %2719 = vmatprep.mubr.f32.mxu0 0.0
        %2720 = vmatmul.mubr.f32.gmra.mxu0 %v2645
        %v2721 = vpop.f32.mrf.mxu0
        %v2722 = vadd.f32 0.0, %v2721
        %v2723 = vpop.f32.mrf.mxu0
        %2724 = vmatprep.mubr.f32.mxu0 0.0
        %2725 = vmatmul.mubr.f32.gmra.mxu0 %v2648
        %v2726 = vpop.f32.mrf.mxu0
        %v2727 = vadd.f32 0.0, %v2726
        %v2728 = vpop.f32.mrf.mxu0
        %2729 = vdwg.mxu0
        %v2730 = vmul.f32 %v2717, %v359
        %v2731 = vmul.f32 %v2722, %v360
        %v2732 = vmul.f32 %v2727, %v361
        %v2733 = vsub.f32 %v2478, %v2730
        %v2734 = vsub.f32 %v2479, %v2731
        %v2735 = vsub.f32 %v2480, %v2732
        %s2736 = scalar_lea.vmem %s323, 168 [#allocation9]
        %2737 = vst [vmem:[%s2736] sm:$0xff] %v2733
        %2738 = vst [vmem:[%s2736 + $0x8] sm:$0xff] %v2734
        %2739 = vst [vmem:[%s2736 + $0x10] sm:$0xff] %v2735
        %s2740 = sand.u32 %s186, 1
        %s2741 = scalar_lea.sflag [#allocation4], %s2740
        %s2742 = sand.u32 %s186, 1
        %s2743 = smul.addr %s2742, 192
        %s2744 = scalar_lea.vmem [#allocation9], %s2743
        // Predicated region
        $region61: #{tpu_custom_call.1} parent=47 // pred_check
          %p2745 = pneg %p196
        $region62: #{tpu_custom_call.1} parent=47 // pred_check_branch
          %2747 = sbr.rel (%p2745) target = $region64
        $region63: #{tpu_custom_call.1} parent=47 // pred_region
          %s2749 = ssub.s32 3072, 3072
          %2750 = vsyncadd %s2741, %s2749
          %s2751 = smul.addr %s26, 24
          %s2752 = smul.addr %s2751, 128
          %s2753 = scalar_lea.hbm %s7, %s2752
          %s2754 = sshll.u32 %s2744, 4
          %s2755 = int_to_ptr.vmem [resolvable:$true] %s2754
          %2760 = dma.vmem_to_hbm [thread:$0]  %s2755, 3072, %s2753, %s2741, 128, 128, 8
        $region64: #{tpu_custom_call.1} parent=47 // pred_fallthru
          _
      $region48: #{tpu_custom_call.1} parent=5 // pred_fallthru
        _
      %p2761 = scmp.le.s32.totalorder 2, %s21
      // Predicated region
      $region65: #{tpu_custom_call.1} parent=5 // pred_check
        %p2762 = pneg %p2761
      $region66: #{tpu_custom_call.1} parent=5 // pred_check_branch
        %2764 = sbr.rel (%p2762) target = $region68
      $region67: #{tpu_custom_call.1} parent=5 // pred_region
        %s2765 = ssub.s32 %s21, 2
        // Predicated region
        $region69: #{tpu_custom_call.1} parent=67 // pred_check
          %p2766 = pneg %p202
        $region70: #{tpu_custom_call.1} parent=67 // pred_check_branch
          %2768 = sbr.rel (%p2766) target = $region72
        $region71: #{tpu_custom_call.1} parent=67 // pred_region
          %s2769 = sand.u32 %s187, 1
          %s2770 = scalar_lea.sflag [#allocation4], %s2769
          %s2771 = sand.u32 %s187, 1
          %s2772 = smul.addr %s2771, 192
          %s2773 = scalar_lea.vmem [#allocation9], %s2772
          %2774 = dma.done %s2770, 3072
        $region72: #{tpu_custom_call.1} parent=67 // pred_fallthru
          _
      $region68: #{tpu_custom_call.1} parent=5 // pred_fallthru
        _
    $region6: #{tpu_custom_call.1} parent=1 // loop_footer
      %s25 = sadd.s32 1, %s21
    $region7: #{tpu_custom_call.1} parent=1 // loop_footer_branch
      %20 = sbr.rel target = $region3
    $region8: #{tpu_custom_call.1} parent=1 // loop_exit
      _
    %2775 = vsyncpa [#allocation3], 1
    %s2776 = scalar_lea.sflag [#allocation3], 1
    %2777 = vsyncpa %s2776, 1
    %2778 = vsyncpa [#allocation4], 1
    %s2779 = scalar_lea.sflag [#allocation4], 1
    %2780 = vsyncpa %s2779, 1
    %2781 = vsyncpa [#allocation5], 1
    %s2782 = scalar_lea.sflag [#allocation5], 1
    %2783 = vsyncpa %s2782, 1
    %2784 = vsyncpa [#allocation8], 1

</llo_original>
